<compile_context>
chip_gen: v6e
topology: v6e:2x2x1
jax: 0.10.0
libtpu: 0.0.40
codegen_flags: <defaults>
</compile_context>

<pallas_src>
import functools

import jax
import jax.numpy as jnp
from jax import lax
from jax.experimental import pallas as pl
from jax.experimental.pallas import tpu as pltpu

EPS = 1e-5       # nn.BatchNorm2d default
LANE = 128       # TPU lane width


def _round_up(x, m):
    return (x + m - 1) // m * m


def _pick_tile_h(h, target):
    th = max(1, min(h, target))
    while h % th:
        th -= 1
    return th


def _vmem_limit_bytes():
    try:
        cap = int(pltpu.get_tpu_info().vmem_capacity_bytes)
    except Exception:
        cap = 64 * 1024 * 1024
    return max(32 * 1024 * 1024, (cap * 3) // 4)


def _conv3x3_stats_kernel(body_ref, top_ref, bot_ref, w_ref, sc_ref, sh_ref,
                          y_ref, st_ref, *, apply_prenorm, h_true, w_true):
    """One (image, row-tile) step: [optional fused BN+ReLU prenorm] -> 3x3 conv ->
    masked raw-output store + per-tile BatchNorm partial statistics."""
    t = pl.program_id(1)
    tile_h, wp, ci = body_ref.shape[1], body_ref.shape[2], body_ref.shape[3]
    co = w_ref.shape[2]
    cdt = body_ref.dtype

    # (tile_h + 2)-row halo window; concat is along the major axis -> cheap and aligned.
    win = jnp.concatenate([top_ref[0], body_ref[0], bot_ref[0]], axis=0)  # (tile_h+2, wp, ci)

    # Validity of each window element (real image rows, real data columns 1..w_true).
    grow = t * tile_h - 1 + lax.broadcasted_iota(jnp.int32, (tile_h + 2, wp, 1), 0)
    gcol = lax.broadcasted_iota(jnp.int32, (tile_h + 2, wp, 1), 1)
    valid = (grow >= 0) & (grow < h_true) & (gcol >= 1) & (gcol <= w_true)

    if apply_prenorm:
        # Fused BatchNorm(scale/shift from the previous pass) + ReLU of the previous conv's raw
        # output; halo/pad positions are forced back to zero afterwards (f32 math, bf16 operands).
        a = jnp.maximum(win.astype(jnp.float32) * sc_ref[...] + sh_ref[...], 0.0)
        win = jnp.where(valid, a, 0.0).astype(cdt)
    else:
        win = jnp.where(valid, win, jnp.zeros_like(win))

    # Column-shifted copies: winR[c] = win[c-1], winL[c] = win[c+1].  Edge columns are
    # don't-care (they only feed masked pad output columns).  Two relayouts per tile replace
    # nine misaligned per-tap slices; every ky/kx tap below is a free major-axis row slice.
    winR = jnp.concatenate([win[:, :1], win[:, :-1]], axis=1)
    winL = jnp.concatenate([win[:, 1:], win[:, -1:]], axis=1)
    srcs = (winR, win, winL)  # kx = 0, 1, 2

    acc = jnp.zeros((tile_h * wp, co), jnp.float32)
    for ky in range(3):
        for kx in range(3):
            tap = srcs[kx][ky:ky + tile_h].reshape(tile_h * wp, ci)
            acc = acc + jnp.dot(tap, w_ref[ky * 3 + kx], preferred_element_type=jnp.float32)

    # Zero the pad columns of the conv output: stored pads stay exactly zero, stats stay exact.
    ocol = lax.broadcasted_iota(jnp.int32, (tile_h * wp, 1), 0) % wp
    ovalid = (ocol >= 1) & (ocol <= w_true)
    acc = jnp.where(ovalid, acc, 0.0)

    # Per-tile BatchNorm partial statistics: sum and centered sum-of-squares (f32).
    cnt = tile_h * w_true
    s = jnp.sum(acc, axis=0, keepdims=True)                         # (1, co)
    d = jnp.where(ovalid, acc - s * (1.0 / cnt), 0.0)
    m2 = jnp.sum(d * d, axis=0, keepdims=True)                      # (1, co)
    st_ref[0, 0] = jnp.concatenate([s, m2], axis=0)

    y_ref[0] = acc.reshape(tile_h, wp, co).astype(y_ref.dtype)


def _bn_relu_apply_kernel(x_ref, sc_ref, sh_ref, o_ref):
    y = jnp.maximum(x_ref[...].astype(jnp.float32) * sc_ref[...] + sh_ref[...], 0.0)
    o_ref[...] = y.astype(o_ref.dtype)


def _conv3x3_stats_pass(x, w_mat, pre_scale, pre_shift, *, apply_prenorm, h_true, w_true,
                        tile_h, store_dtype, vmem_limit):
    n, h, wp, ci = x.shape
    co = w_mat.shape[2]
    nt = h // tile_h

    kern = functools.partial(_conv3x3_stats_kernel, apply_prenorm=apply_prenorm,
                             h_true=h_true, w_true=w_true)

    body_spec = pl.BlockSpec((1, tile_h, wp, ci), lambda i, t: (i, t, 0, 0))
    # Halo rows as 1-row blocks (block index == row index); clamped at image edges, the clamped
    # content is masked to zero inside the kernel.
    top_spec = pl.BlockSpec((1, 1, wp, ci),
                            lambda i, t: (i, jnp.maximum(t * tile_h - 1, 0), 0, 0))
    bot_spec = pl.BlockSpec((1, 1, wp, ci),
                            lambda i, t: (i, jnp.minimum(t * tile_h + tile_h, h - 1), 0, 0))
    w_spec = pl.BlockSpec((9, ci, co), lambda i, t: (0, 0, 0))       # resident weights
    row_spec = pl.BlockSpec((1, ci), lambda i, t: (0, 0))
    y_spec = pl.BlockSpec((1, tile_h, wp, co), lambda i, t: (i, t, 0, 0))
    st_spec = pl.BlockSpec((1, 1, 2, co), lambda i, t: (i, t, 0, 0))

    item = jnp.dtype(store_dtype).itemsize
    flops = 2 * n * h * wp * 9 * ci * co
    bytes_accessed = int((x.size + n * h * wp * co) * item + w_mat.size * item
                         + n * nt * 2 * co * 4)

    return pl.pallas_call(
        kern,
        grid=(n, nt),
        in_specs=[body_spec, top_spec, bot_spec, w_spec, row_spec, row_spec],
        out_specs=(y_spec, st_spec),
        out_shape=(jax.ShapeDtypeStruct((n, h, wp, co), store_dtype),
                   jax.ShapeDtypeStruct((n, nt, 2, co), jnp.float32)),
        compiler_params=pltpu.CompilerParams(
            dimension_semantics=("parallel", "parallel"),
            vmem_limit_bytes=vmem_limit),
        cost_estimate=pl.CostEstimate(flops=flops, transcendentals=0,
                                      bytes_accessed=bytes_accessed),
    )(x, x, x, w_mat, pre_scale, pre_shift)


def _bn_relu_apply_pass(x, scale, shift, *, tile_h, out_dtype, vmem_limit):
    n, h, wp, c = x.shape
    nt = h // tile_h
    blk = pl.BlockSpec((1, tile_h, wp, c), lambda i, t: (i, t, 0, 0))
    row = pl.BlockSpec((1, c), lambda i, t: (0, 0))
    return pl.pallas_call(
        _bn_relu_apply_kernel,
        grid=(n, nt),
        in_specs=[blk, row, row],
        out_specs=blk,
        out_shape=jax.ShapeDtypeStruct((n, h, wp, c), out_dtype),
        compiler_params=pltpu.CompilerParams(
            dimension_semantics=("parallel", "parallel"),
            vmem_limit_bytes=vmem_limit),
    )(x, scale, shift)


def _finalize_bn(stats, gamma_p, beta_p, tile_count, total_count):
    """Chan-combine per-tile (sum, centered-sum-of-squares) into scale/shift rows (f32)."""
    s = stats[:, :, 0, :]
    m2 = stats[:, :, 1, :]
    mean = jnp.sum(s, axis=(0, 1)) / total_count
    mu_t = s / tile_count
    m2_tot = jnp.sum(m2, axis=(0, 1)) + jnp.sum(tile_count * (mu_t - mean) ** 2, axis=(0, 1))
    var = m2_tot / total_count                      # biased, matches training-mode BN
    scale = gamma_p * lax.rsqrt(var + EPS)
    shift = beta_p - mean * scale
    c = scale.shape[0]
    return (scale.reshape(1, c).astype(jnp.float32),
            shift.reshape(1, c).astype(jnp.float32))


def conv_block_forward_nhwc(x_nhwc, params, *, compute_dtype=jnp.bfloat16,
                            out_dtype=None, tile_h_target=8):
    """Fused ConvBlock forward, NHWC in / NHWC out.  compute_dtype = MXU operand / activation
    storage dtype (bf16 recommended on all TPU generations); BN stats & apply are f32."""
    w1, b1, g1, bt1, w2, b2, g2, bt2 = params
    del b1, b2  # conv bias is exactly cancelled by the training-mode BatchNorm that follows
    if out_dtype is None:
        out_dtype = compute_dtype

    n, h, w, cin = x_nhwc.shape
    cmid, cout = w1.shape[3], w2.shape[3]
    # Lane-aligned channel padding (zero weights / identity BN params for the pad channels).
    ci_p = _round_up(max(cin, LANE), LANE)
    cm_p = _round_up(max(cmid, LANE), LANE)
    co_p = _round_up(max(cout, LANE), LANE)
    wp = _round_up(w + 2, 8)        # [1 left pad | w data cols | >=1 right pad], sublane aligned
    tile_h = _pick_tile_h(h, tile_h_target)
    m_total = n * h * w
    vmem_limit = _vmem_limit_bytes()

    x_p = jnp.pad(x_nhwc, ((0, 0), (0, 0), (1, wp - w - 1), (0, ci_p - cin))).astype(compute_dtype)

    def prep_w(wt, cip, cop):
        wt = jnp.pad(wt, ((0, 0), (0, 0), (0, cip - wt.shape[2]), (0, cop - wt.shape[3])))
        return wt.reshape(9, cip, cop).astype(compute_dtype)   # index = ky*3 + kx

    w1_p = prep_w(w1, ci_p, cm_p)
    w2_p = prep_w(w2, cm_p, co_p)
    g1_p = jnp.pad(g1.astype(jnp.float32), (0, cm_p - cmid), constant_values=1.0)
    bt1_p = jnp.pad(bt1.astype(jnp.float32), (0, cm_p - cmid))
    g2_p = jnp.pad(g2.astype(jnp.float32), (0, co_p - cout), constant_values=1.0)
    bt2_p = jnp.pad(bt2.astype(jnp.float32), (0, co_p - cout))

    ident = jnp.ones((1, ci_p), jnp.float32)
    zero = jnp.zeros((1, ci_p), jnp.float32)

    # Pass 1: conv1 + per-tile BN1 partial statistics.
    y1, st1 = _conv3x3_stats_pass(x_p, w1_p, ident, zero, apply_prenorm=False,
                                  h_true=h, w_true=w, tile_h=tile_h,
                                  store_dtype=compute_dtype, vmem_limit=vmem_limit)
    scale1, shift1 = _finalize_bn(st1, g1_p, bt1_p, tile_h * w, m_total)

    # Pass 2: fused BN1-apply + ReLU + conv2 + per-tile BN2 partial statistics.
    y2, st2 = _conv3x3_stats_pass(y1, w2_p, scale1, shift1, apply_prenorm=True,
                                  h_true=h, w_true=w, tile_h=tile_h,
                                  store_dtype=compute_dtype, vmem_limit=vmem_limit)
    scale2, shift2 = _finalize_bn(st2, g2_p, bt2_p, tile_h * w, m_total)

    # Pass 3: BN2-apply + ReLU, emitted in the requested output dtype.
    out_p = _bn_relu_apply_pass(y2, scale2, shift2, tile_h=tile_h,
                                out_dtype=out_dtype, vmem_limit=vmem_limit)

    return out_p[:, :, 1:1 + w, :cout]


def conv_block_forward(x_nchw, params, *, compute_dtype=jnp.bfloat16, out_dtype=None,
                       tile_h_target=8):
    """NCHW wrapper (PyTorch layout); keep the surrounding model NHWC and call
    conv_block_forward_nhwc directly to avoid the transposes."""
    x_nhwc = jnp.transpose(x_nchw, (0, 2, 3, 1))
    out = conv_block_forward_nhwc(x_nhwc, params, compute_dtype=compute_dtype,
                                  out_dtype=out_dtype, tile_h_target=tile_h_target)
    return jnp.transpose(out, (0, 3, 1, 2))


def reference_forward(x_nchw, params):
    """Pure-JAX reference matching PyTorch semantics (conv+bias, training-mode BN, ReLU)."""
    w1, b1, g1, bt1, w2, b2, g2, bt2 = params

    def conv(x, w, b):  # w: (3,3,Cin,Cout) HWIO
        y = lax.conv_general_dilated(x, w, window_strides=(1, 1), padding='SAME',
                                     dimension_numbers=('NCHW', 'HWIO', 'NCHW'))
        return y + b[None, :, None, None]

    def bn_relu(x, g, bt):
        m = jnp.mean(x, axis=(0, 2, 3), keepdims=True)
        v = jnp.mean((x - m) ** 2, axis=(0, 2, 3), keepdims=True)
        y = (x - m) * lax.rsqrt(v + EPS) * g[None, :, None, None] + bt[None, :, None, None]
        return jnp.maximum(y, 0.0)

    x = bn_relu(conv(x_nchw, w1, b1), g1, bt1)
    x = bn_relu(conv(x, w2, b2), g2, bt2)
    return x


def make_params(key, cin, cmid, cout):
    k1, k2, k3, k4 = jax.random.split(key, 4)
    w1 = 0.1 * jax.random.normal(k1, (3, 3, cin, cmid), jnp.float32)
    b1 = 0.1 * jax.random.normal(k2, (cmid,), jnp.float32)
    g1 = jnp.ones((cmid,), jnp.float32)
    bt1 = jnp.zeros((cmid,), jnp.float32)
    w2 = 0.1 * jax.random.normal(k3, (3, 3, cmid, cout), jnp.float32)
    b2 = 0.1 * jax.random.normal(k4, (cout,), jnp.float32)
    g2 = jnp.ones((cout,), jnp.float32)
    bt2 = jnp.zeros((cout,), jnp.float32)
    return (w1, b1, g1, bt1, w2, b2, g2, bt2)


if __name__ == "__main__":
    key = jax.random.PRNGKey(0)
    kx_, kp = jax.random.split(key)

    N, Cin, Cmid, Cout, H, W = 2, 4, 8, 8, 16, 16
    x = jax.random.normal(kx_, (N, Cin, H, W), jnp.float32)
    params = make_params(kp, Cin, Cmid, Cout)

    ref = jax.block_until_ready(reference_forward(x, params))

    # f32 path (correctness baseline).
    out_f32 = jax.block_until_ready(
        conv_block_forward(x, params, compute_dtype=jnp.float32, out_dtype=jnp.float32))
    assert out_f32.shape == (N, Cout, H, W)
    err32 = float(jnp.max(jnp.abs(out_f32 - ref)))
    assert jnp.allclose(out_f32, ref, atol=1e-3, rtol=1e-3), err32

    # bf16 MXU path (all generations): bf16 operands / activation storage, f32 accumulation & BN.
    out_bf16 = jax.block_until_ready(
        conv_block_forward(x, params, compute_dtype=jnp.bfloat16, out_dtype=jnp.float32))
    assert out_bf16.shape == (N, Cout, H, W)
    errbf = float(jnp.max(jnp.abs(out_bf16 - ref)))
    assert jnp.allclose(out_bf16, ref, atol=1e-1, rtol=1e-1), errbf

    print("KERNEL_OK")
</pallas_src>

<mosaic_0001>
module attributes {stable_mosaic.version = 11 : i64} {
  func.func @_conv3x3_stats_kernel(%arg0: i32, %arg1: i32, %arg2: memref<1x8x24x128xf32, #tpu.memory_space<vmem>>, %arg3: memref<1x1x24x128xf32, #tpu.memory_space<vmem>>, %arg4: memref<1x1x24x128xf32, #tpu.memory_space<vmem>>, %arg5: memref<9x128x128xf32, #tpu.memory_space<vmem>>, %arg6: memref<1x128xf32, #tpu.memory_space<vmem>>, %arg7: memref<1x128xf32, #tpu.memory_space<vmem>>, %arg8: memref<1x8x24x128xf32, #tpu.memory_space<vmem>>, %arg9: memref<1x1x2x128xf32, #tpu.memory_space<vmem>>) attributes {dimension_semantics = [#tpu.dimension_semantics<parallel>, #tpu.dimension_semantics<parallel>], iteration_bounds = array<i64: 2, 2>, scalar_prefetch = 0 : i64, scratch_operands = 0 : i64, tpu.core_type = #tpu.core_type<tc>, window_params = [{transform_indices = @transform_0, window_bounds = array<i64: 1, 8, 24, 128>}, {transform_indices = @transform_1, window_bounds = array<i64: 1, 1, 24, 128>}, {transform_indices = @transform_2, window_bounds = array<i64: 1, 1, 24, 128>}, {pipeline_mode = #tpu.pipeline_mode<synchronous>, transform_indices = @transform_3, window_bounds = array<i64: 9, 128, 128>}, {pipeline_mode = #tpu.pipeline_mode<synchronous>, transform_indices = @transform_4, window_bounds = array<i64: 1, 128>}, {pipeline_mode = #tpu.pipeline_mode<synchronous>, transform_indices = @transform_5, window_bounds = array<i64: 1, 128>}, {transform_indices = @transform_6, window_bounds = array<i64: 1, 8, 24, 128>}, {transform_indices = @transform_7, window_bounds = array<i64: 1, 1, 2, 128>}]} {
    %c0 = arith.constant 0 : index
    %c0_0 = arith.constant 0 : index
    %c0_1 = arith.constant 0 : index
    %c0_2 = arith.constant 0 : index
    %0 = vector.load %arg3[%c0, %c0_0, %c0_1, %c0_2] : memref<1x1x24x128xf32, #tpu.memory_space<vmem>>, vector<1x1x24x128xf32>
    %1 = vector.shape_cast %0 : vector<1x1x24x128xf32> to vector<1x24x128xf32>
    %c0_3 = arith.constant 0 : index
    %c0_4 = arith.constant 0 : index
    %c0_5 = arith.constant 0 : index
    %c0_6 = arith.constant 0 : index
    %2 = vector.load %arg2[%c0_3, %c0_4, %c0_5, %c0_6] : memref<1x8x24x128xf32, #tpu.memory_space<vmem>>, vector<1x8x24x128xf32>
    %3 = vector.shape_cast %2 : vector<1x8x24x128xf32> to vector<8x24x128xf32>
    %c0_7 = arith.constant 0 : index
    %c0_8 = arith.constant 0 : index
    %c0_9 = arith.constant 0 : index
    %c0_10 = arith.constant 0 : index
    %4 = vector.load %arg4[%c0_7, %c0_8, %c0_9, %c0_10] : memref<1x1x24x128xf32, #tpu.memory_space<vmem>>, vector<1x1x24x128xf32>
    %5 = vector.shape_cast %4 : vector<1x1x24x128xf32> to vector<1x24x128xf32>
    %6 = tpu.concatenate %1, %3, %5 in 0 : vector<1x24x128xf32>, vector<8x24x128xf32>, vector<1x24x128xf32> -> vector<10x24x128xf32>
    %c8_i32 = arith.constant 8 : i32
    %7 = arith.muli %arg1, %c8_i32 : i32
    %c1_i32 = arith.constant 1 : i32
    %8 = arith.subi %7, %c1_i32 : i32
    %9 = tpu.iota {dimensions = array<i32: 0>} : vector<10x24x1xi32>
    %10 = vector.broadcast %8 : i32 to vector<10x24x1xi32>
    %11 = arith.addi %10, %9 : vector<10x24x1xi32>
    %12 = tpu.iota {dimensions = array<i32: 1>} : vector<10x24x1xi32>
    %c0_i32 = arith.constant 0 : i32
    %13 = vector.broadcast %c0_i32 : i32 to vector<10x24x1xi32>
    %14 = arith.cmpi sge, %11, %13 : vector<10x24x1xi32>
    %c16_i32 = arith.constant 16 : i32
    %15 = vector.broadcast %c16_i32 : i32 to vector<10x24x1xi32>
    %16 = arith.cmpi slt, %11, %15 : vector<10x24x1xi32>
    %17 = arith.andi %14, %16 : vector<10x24x1xi1>
    %c1_i32_11 = arith.constant 1 : i32
    %18 = vector.broadcast %c1_i32_11 : i32 to vector<10x24x1xi32>
    %19 = arith.cmpi sge, %12, %18 : vector<10x24x1xi32>
    %20 = arith.andi %17, %19 : vector<10x24x1xi1>
    %c16_i32_12 = arith.constant 16 : i32
    %21 = vector.broadcast %c16_i32_12 : i32 to vector<10x24x1xi32>
    %22 = arith.cmpi sle, %12, %21 : vector<10x24x1xi32>
    %23 = arith.andi %20, %22 : vector<10x24x1xi1>
    %cst = arith.constant 0.000000e+00 : f32
    %24 = vector.broadcast %cst : f32 to vector<10x24x128xf32>
    %25 = vector.shape_cast %23 : vector<10x24x1xi1> to vector<10x24x1xi1>
    %26 = vector.broadcast %25 : vector<10x24x1xi1> to vector<10x24x128xi1>
    %27 = arith.select %26, %6, %24 : vector<10x24x128xi1>, vector<10x24x128xf32>
    %28 = vector.extract_strided_slice %27 {offsets = [0, 0, 0], sizes = [10, 1, 128], strides = [1, 1, 1]} : vector<10x24x128xf32> to vector<10x1x128xf32>
    %29 = vector.extract_strided_slice %27 {offsets = [0, 0, 0], sizes = [10, 23, 128], strides = [1, 1, 1]} : vector<10x24x128xf32> to vector<10x23x128xf32>
    %30 = tpu.concatenate %28, %29 in 1 : vector<10x1x128xf32>, vector<10x23x128xf32> -> vector<10x24x128xf32>
    %31 = vector.extract_strided_slice %27 {offsets = [0, 1, 0], sizes = [10, 23, 128], strides = [1, 1, 1]} : vector<10x24x128xf32> to vector<10x23x128xf32>
    %32 = vector.extract_strided_slice %27 {offsets = [0, 23, 0], sizes = [10, 1, 128], strides = [1, 1, 1]} : vector<10x24x128xf32> to vector<10x1x128xf32>
    %33 = tpu.concatenate %31, %32 in 1 : vector<10x23x128xf32>, vector<10x1x128xf32> -> vector<10x24x128xf32>
    %cst_13 = arith.constant 0.000000e+00 : f32
    %34 = vector.broadcast %cst_13 : f32 to vector<192x128xf32>
    %35 = vector.extract_strided_slice %30 {offsets = [0, 0, 0], sizes = [8, 24, 128], strides = [1, 1, 1]} : vector<10x24x128xf32> to vector<8x24x128xf32>
    %36 = vector.shape_cast %35 : vector<8x24x128xf32> to vector<192x128xf32>
    %c0_14 = arith.constant 0 : index
    %c0_15 = arith.constant 0 : index
    %c0_16 = arith.constant 0 : index
    %37 = vector.load %arg5[%c0_14, %c0_15, %c0_16] : memref<9x128x128xf32, #tpu.memory_space<vmem>>, vector<1x128x128xf32>
    %38 = vector.shape_cast %37 : vector<1x128x128xf32> to vector<128x128xf32>
    %cst_17 = arith.constant dense<0.000000e+00> : vector<192x128xf32>
    %39 = tpu.matmul %36, %38, %cst_17 {dimension_numbers = #tpu.dot_dimension_numbers<[1], [0], [0], [1], [0, 0, 1, 1], [], []>} : vector<192x128xf32>, vector<128x128xf32>, vector<192x128xf32> -> vector<192x128xf32>
    %40 = arith.addf %34, %39 : vector<192x128xf32>
    %41 = vector.extract_strided_slice %27 {offsets = [0, 0, 0], sizes = [8, 24, 128], strides = [1, 1, 1]} : vector<10x24x128xf32> to vector<8x24x128xf32>
    %42 = vector.shape_cast %41 : vector<8x24x128xf32> to vector<192x128xf32>
    %c1 = arith.constant 1 : index
    %c0_18 = arith.constant 0 : index
    %c0_19 = arith.constant 0 : index
    %43 = vector.load %arg5[%c1, %c0_18, %c0_19] : memref<9x128x128xf32, #tpu.memory_space<vmem>>, vector<1x128x128xf32>
    %44 = vector.shape_cast %43 : vector<1x128x128xf32> to vector<128x128xf32>
    %cst_20 = arith.constant dense<0.000000e+00> : vector<192x128xf32>
    %45 = tpu.matmul %42, %44, %cst_20 {dimension_numbers = #tpu.dot_dimension_numbers<[1], [0], [0], [1], [0, 0, 1, 1], [], []>} : vector<192x128xf32>, vector<128x128xf32>, vector<192x128xf32> -> vector<192x128xf32>
    %46 = arith.addf %40, %45 : vector<192x128xf32>
    %47 = vector.extract_strided_slice %33 {offsets = [0, 0, 0], sizes = [8, 24, 128], strides = [1, 1, 1]} : vector<10x24x128xf32> to vector<8x24x128xf32>
    %48 = vector.shape_cast %47 : vector<8x24x128xf32> to vector<192x128xf32>
    %c2 = arith.constant 2 : index
    %c0_21 = arith.constant 0 : index
    %c0_22 = arith.constant 0 : index
    %49 = vector.load %arg5[%c2, %c0_21, %c0_22] : memref<9x128x128xf32, #tpu.memory_space<vmem>>, vector<1x128x128xf32>
    %50 = vector.shape_cast %49 : vector<1x128x128xf32> to vector<128x128xf32>
    %cst_23 = arith.constant dense<0.000000e+00> : vector<192x128xf32>
    %51 = tpu.matmul %48, %50, %cst_23 {dimension_numbers = #tpu.dot_dimension_numbers<[1], [0], [0], [1], [0, 0, 1, 1], [], []>} : vector<192x128xf32>, vector<128x128xf32>, vector<192x128xf32> -> vector<192x128xf32>
    %52 = arith.addf %46, %51 : vector<192x128xf32>
    %53 = vector.extract_strided_slice %30 {offsets = [1, 0, 0], sizes = [8, 24, 128], strides = [1, 1, 1]} : vector<10x24x128xf32> to vector<8x24x128xf32>
    %54 = vector.shape_cast %53 : vector<8x24x128xf32> to vector<192x128xf32>
    %c3 = arith.constant 3 : index
    %c0_24 = arith.constant 0 : index
    %c0_25 = arith.constant 0 : index
    %55 = vector.load %arg5[%c3, %c0_24, %c0_25] : memref<9x128x128xf32, #tpu.memory_space<vmem>>, vector<1x128x128xf32>
    %56 = vector.shape_cast %55 : vector<1x128x128xf32> to vector<128x128xf32>
    %cst_26 = arith.constant dense<0.000000e+00> : vector<192x128xf32>
    %57 = tpu.matmul %54, %56, %cst_26 {dimension_numbers = #tpu.dot_dimension_numbers<[1], [0], [0], [1], [0, 0, 1, 1], [], []>} : vector<192x128xf32>, vector<128x128xf32>, vector<192x128xf32> -> vector<192x128xf32>
    %58 = arith.addf %52, %57 : vector<192x128xf32>
    %59 = vector.extract_strided_slice %27 {offsets = [1, 0, 0], sizes = [8, 24, 128], strides = [1, 1, 1]} : vector<10x24x128xf32> to vector<8x24x128xf32>
    %60 = vector.shape_cast %59 : vector<8x24x128xf32> to vector<192x128xf32>
    %c4 = arith.constant 4 : index
    %c0_27 = arith.constant 0 : index
    %c0_28 = arith.constant 0 : index
    %61 = vector.load %arg5[%c4, %c0_27, %c0_28] : memref<9x128x128xf32, #tpu.memory_space<vmem>>, vector<1x128x128xf32>
    %62 = vector.shape_cast %61 : vector<1x128x128xf32> to vector<128x128xf32>
    %cst_29 = arith.constant dense<0.000000e+00> : vector<192x128xf32>
    %63 = tpu.matmul %60, %62, %cst_29 {dimension_numbers = #tpu.dot_dimension_numbers<[1], [0], [0], [1], [0, 0, 1, 1], [], []>} : vector<192x128xf32>, vector<128x128xf32>, vector<192x128xf32> -> vector<192x128xf32>
    %64 = arith.addf %58, %63 : vector<192x128xf32>
    %65 = vector.extract_strided_slice %33 {offsets = [1, 0, 0], sizes = [8, 24, 128], strides = [1, 1, 1]} : vector<10x24x128xf32> to vector<8x24x128xf32>
    %66 = vector.shape_cast %65 : vector<8x24x128xf32> to vector<192x128xf32>
    %c5 = arith.constant 5 : index
    %c0_30 = arith.constant 0 : index
    %c0_31 = arith.constant 0 : index
    %67 = vector.load %arg5[%c5, %c0_30, %c0_31] : memref<9x128x128xf32, #tpu.memory_space<vmem>>, vector<1x128x128xf32>
    %68 = vector.shape_cast %67 : vector<1x128x128xf32> to vector<128x128xf32>
    %cst_32 = arith.constant dense<0.000000e+00> : vector<192x128xf32>
    %69 = tpu.matmul %66, %68, %cst_32 {dimension_numbers = #tpu.dot_dimension_numbers<[1], [0], [0], [1], [0, 0, 1, 1], [], []>} : vector<192x128xf32>, vector<128x128xf32>, vector<192x128xf32> -> vector<192x128xf32>
    %70 = arith.addf %64, %69 : vector<192x128xf32>
    %71 = vector.extract_strided_slice %30 {offsets = [2, 0, 0], sizes = [8, 24, 128], strides = [1, 1, 1]} : vector<10x24x128xf32> to vector<8x24x128xf32>
    %72 = vector.shape_cast %71 : vector<8x24x128xf32> to vector<192x128xf32>
    %c6 = arith.constant 6 : index
    %c0_33 = arith.constant 0 : index
    %c0_34 = arith.constant 0 : index
    %73 = vector.load %arg5[%c6, %c0_33, %c0_34] : memref<9x128x128xf32, #tpu.memory_space<vmem>>, vector<1x128x128xf32>
    %74 = vector.shape_cast %73 : vector<1x128x128xf32> to vector<128x128xf32>
    %cst_35 = arith.constant dense<0.000000e+00> : vector<192x128xf32>
    %75 = tpu.matmul %72, %74, %cst_35 {dimension_numbers = #tpu.dot_dimension_numbers<[1], [0], [0], [1], [0, 0, 1, 1], [], []>} : vector<192x128xf32>, vector<128x128xf32>, vector<192x128xf32> -> vector<192x128xf32>
    %76 = arith.addf %70, %75 : vector<192x128xf32>
    %77 = vector.extract_strided_slice %27 {offsets = [2, 0, 0], sizes = [8, 24, 128], strides = [1, 1, 1]} : vector<10x24x128xf32> to vector<8x24x128xf32>
    %78 = vector.shape_cast %77 : vector<8x24x128xf32> to vector<192x128xf32>
    %c7 = arith.constant 7 : index
    %c0_36 = arith.constant 0 : index
    %c0_37 = arith.constant 0 : index
    %79 = vector.load %arg5[%c7, %c0_36, %c0_37] : memref<9x128x128xf32, #tpu.memory_space<vmem>>, vector<1x128x128xf32>
    %80 = vector.shape_cast %79 : vector<1x128x128xf32> to vector<128x128xf32>
    %cst_38 = arith.constant dense<0.000000e+00> : vector<192x128xf32>
    %81 = tpu.matmul %78, %80, %cst_38 {dimension_numbers = #tpu.dot_dimension_numbers<[1], [0], [0], [1], [0, 0, 1, 1], [], []>} : vector<192x128xf32>, vector<128x128xf32>, vector<192x128xf32> -> vector<192x128xf32>
    %82 = arith.addf %76, %81 : vector<192x128xf32>
    %83 = vector.extract_strided_slice %33 {offsets = [2, 0, 0], sizes = [8, 24, 128], strides = [1, 1, 1]} : vector<10x24x128xf32> to vector<8x24x128xf32>
    %84 = vector.shape_cast %83 : vector<8x24x128xf32> to vector<192x128xf32>
    %c8 = arith.constant 8 : index
    %c0_39 = arith.constant 0 : index
    %c0_40 = arith.constant 0 : index
    %85 = vector.load %arg5[%c8, %c0_39, %c0_40] : memref<9x128x128xf32, #tpu.memory_space<vmem>>, vector<1x128x128xf32>
    %86 = vector.shape_cast %85 : vector<1x128x128xf32> to vector<128x128xf32>
    %cst_41 = arith.constant dense<0.000000e+00> : vector<192x128xf32>
    %87 = tpu.matmul %84, %86, %cst_41 {dimension_numbers = #tpu.dot_dimension_numbers<[1], [0], [0], [1], [0, 0, 1, 1], [], []>} : vector<192x128xf32>, vector<128x128xf32>, vector<192x128xf32> -> vector<192x128xf32>
    %88 = arith.addf %82, %87 : vector<192x128xf32>
    %89 = tpu.iota {dimensions = array<i32: 0>} : vector<192x1xi32>
    %c24_i32 = arith.constant 24 : i32
    %c0_i32_42 = arith.constant 0 : i32
    %90 = arith.cmpi eq, %c24_i32, %c0_i32_42 : i32
    %c1_i32_43 = arith.constant 1 : i32
    %91 = arith.select %90, %c1_i32_43, %c24_i32 : i32
    %92 = vector.broadcast %91 : i32 to vector<192x1xi32>
    %93 = arith.remsi %89, %92 : vector<192x1xi32>
    %c0_i32_44 = arith.constant 0 : i32
    %94 = vector.broadcast %c0_i32_44 : i32 to vector<192x1xi32>
    %95 = arith.cmpi ne, %93, %94 : vector<192x1xi32>
    %c0_i32_45 = arith.constant 0 : i32
    %96 = vector.broadcast %c0_i32_45 : i32 to vector<192x1xi32>
    %97 = arith.cmpi slt, %93, %96 : vector<192x1xi32>
    %c0_i32_46 = arith.constant 0 : i32
    %98 = arith.cmpi slt, %91, %c0_i32_46 : i32
    %99 = vector.broadcast %98 : i1 to vector<192x1xi1>
    %100 = vector.broadcast %99 : vector<192x1xi1> to vector<192x1xi1>
    %101 = arith.xori %97, %100 : vector<192x1xi1>
    %102 = arith.andi %101, %95 : vector<192x1xi1>
    %103 = vector.broadcast %91 : i32 to vector<192x1xi32>
    %104 = arith.addi %93, %103 : vector<192x1xi32>
    %105 = arith.select %102, %104, %93 : vector<192x1xi1>, vector<192x1xi32>
    %c1_i32_47 = arith.constant 1 : i32
    %106 = vector.broadcast %c1_i32_47 : i32 to vector<192x1xi32>
    %107 = arith.cmpi sge, %105, %106 : vector<192x1xi32>
    %c16_i32_48 = arith.constant 16 : i32
    %108 = vector.broadcast %c16_i32_48 : i32 to vector<192x1xi32>
    %109 = arith.cmpi sle, %105, %108 : vector<192x1xi32>
    %110 = arith.andi %107, %109 : vector<192x1xi1>
    %cst_49 = arith.constant 0.000000e+00 : f32
    %111 = vector.shape_cast %110 : vector<192x1xi1> to vector<192x1xi1>
    %112 = vector.broadcast %111 : vector<192x1xi1> to vector<192x128xi1>
    %113 = vector.broadcast %cst_49 : f32 to vector<192x128xf32>
    %114 = arith.select %112, %88, %113 : vector<192x128xi1>, vector<192x128xf32>
    %cst_50 = arith.constant dense<0.000000e+00> : vector<128xf32>
    %115 = vector.multi_reduction <add>, %114, %cst_50 [0] : vector<192x128xf32> to vector<128xf32>
    %116 = vector.shape_cast %115 : vector<128xf32> to vector<1x128xf32>
    %cst_51 = arith.constant 7.812500e-03 : f32
    %117 = vector.broadcast %cst_51 : f32 to vector<1x128xf32>
    %118 = arith.mulf %116, %117 : vector<1x128xf32>
    %119 = vector.broadcast %118 : vector<1x128xf32> to vector<192x128xf32>
    %120 = arith.subf %114, %119 : vector<192x128xf32>
    %cst_52 = arith.constant 0.000000e+00 : f32
    %121 = vector.shape_cast %110 : vector<192x1xi1> to vector<192x1xi1>
    %122 = vector.broadcast %121 : vector<192x1xi1> to vector<192x128xi1>
    %123 = vector.broadcast %cst_52 : f32 to vector<192x128xf32>
    %124 = arith.select %122, %120, %123 : vector<192x128xi1>, vector<192x128xf32>
    %125 = arith.mulf %124, %124 : vector<192x128xf32>
    %cst_53 = arith.constant dense<0.000000e+00> : vector<128xf32>
    %126 = vector.multi_reduction <add>, %125, %cst_53 [0] : vector<192x128xf32> to vector<128xf32>
    %127 = vector.shape_cast %126 : vector<128xf32> to vector<1x128xf32>
    %128 = tpu.concatenate %116, %127 in 0 : vector<1x128xf32>, vector<1x128xf32> -> vector<2x128xf32>
    %c0_54 = arith.constant 0 : index
    %c0_55 = arith.constant 0 : index
    %c0_56 = arith.constant 0 : index
    %c0_57 = arith.constant 0 : index
    %129 = vector.load %arg9[%c0_54, %c0_55, %c0_56, %c0_57] : memref<1x1x2x128xf32, #tpu.memory_space<vmem>>, vector<1x1x2x128xf32>
    %130 = vector.shape_cast %129 : vector<1x1x2x128xf32> to vector<2x128xf32>
    %131 = vector.shape_cast %128 : vector<2x128xf32> to vector<1x1x2x128xf32>
    tpu.vector_store %arg9[%c0_54, %c0_55, %c0_56, %c0_57], %131 {strides = array<i32>} : memref<1x1x2x128xf32, #tpu.memory_space<vmem>>, vector<1x1x2x128xf32>,
    %132 = vector.shape_cast %114 : vector<192x128xf32> to vector<8x24x128xf32>
    %c0_58 = arith.constant 0 : index
    %c0_59 = arith.constant 0 : index
    %c0_60 = arith.constant 0 : index
    %c0_61 = arith.constant 0 : index
    %133 = vector.load %arg8[%c0_58, %c0_59, %c0_60, %c0_61] : memref<1x8x24x128xf32, #tpu.memory_space<vmem>>, vector<1x8x24x128xf32>
    %134 = vector.shape_cast %133 : vector<1x8x24x128xf32> to vector<8x24x128xf32>
    %135 = vector.shape_cast %132 : vector<8x24x128xf32> to vector<1x8x24x128xf32>
    tpu.vector_store %arg8[%c0_58, %c0_59, %c0_60, %c0_61], %135 {strides = array<i32>} : memref<1x8x24x128xf32, #tpu.memory_space<vmem>>, vector<1x8x24x128xf32>,
    return
  }
  func.func @transform_0(%arg0: i32, %arg1: i32) -> (i32, i32, i32, i32) {
    %c0_i32 = arith.constant 0 : i32
    %c0_i32_0 = arith.constant 0 : i32
    %c0_i32_1 = arith.constant 0 : i32
    return %arg0, %arg1, %c0_i32, %c0_i32_0 : i32, i32, i32, i32
  }
  func.func @transform_1(%arg0: i32, %arg1: i32) -> (i32, i32, i32, i32) {
    %c8_i32 = arith.constant 8 : i32
    %0 = arith.muli %arg1, %c8_i32 : i32
    %c1_i32 = arith.constant 1 : i32
    %1 = arith.subi %0, %c1_i32 : i32
    %c0_i32 = arith.constant 0 : i32
    %2 = arith.maxsi %1, %c0_i32 : i32
    %c0_i32_0 = arith.constant 0 : i32
    %c0_i32_1 = arith.constant 0 : i32
    %c0_i32_2 = arith.constant 0 : i32
    return %arg0, %2, %c0_i32_0, %c0_i32_1 : i32, i32, i32, i32
  }
  func.func @transform_2(%arg0: i32, %arg1: i32) -> (i32, i32, i32, i32) {
    %c8_i32 = arith.constant 8 : i32
    %0 = arith.muli %arg1, %c8_i32 : i32
    %c8_i32_0 = arith.constant 8 : i32
    %1 = arith.addi %0, %c8_i32_0 : i32
    %c15_i32 = arith.constant 15 : i32
    %2 = arith.minsi %1, %c15_i32 : i32
    %c0_i32 = arith.constant 0 : i32
    %c0_i32_1 = arith.constant 0 : i32
    %c0_i32_2 = arith.constant 0 : i32
    return %arg0, %2, %c0_i32, %c0_i32_1 : i32, i32, i32, i32
  }
  func.func @transform_3(%arg0: i32, %arg1: i32) -> (i32, i32, i32) {
    %c0_i32 = arith.constant 0 : i32
    %c0_i32_0 = arith.constant 0 : i32
    %c0_i32_1 = arith.constant 0 : i32
    %c0_i32_2 = arith.constant 0 : i32
    return %c0_i32, %c0_i32_0, %c0_i32_1 : i32, i32, i32
  }
  func.func @transform_4(%arg0: i32, %arg1: i32) -> (i32, i32) {
    %c0_i32 = arith.constant 0 : i32
    %c0_i32_0 = arith.constant 0 : i32
    %c0_i32_1 = arith.constant 0 : i32
    return %c0_i32, %c0_i32_0 : i32, i32
  }
  func.func @transform_5(%arg0: i32, %arg1: i32) -> (i32, i32) {
    %c0_i32 = arith.constant 0 : i32
    %c0_i32_0 = arith.constant 0 : i32
    %c0_i32_1 = arith.constant 0 : i32
    return %c0_i32, %c0_i32_0 : i32, i32
  }
  func.func @transform_6(%arg0: i32, %arg1: i32) -> (i32, i32, i32, i32) {
    %c0_i32 = arith.constant 0 : i32
    %c0_i32_0 = arith.constant 0 : i32
    %c0_i32_1 = arith.constant 0 : i32
    return %arg0, %arg1, %c0_i32, %c0_i32_0 : i32, i32, i32, i32
  }
  func.func @transform_7(%arg0: i32, %arg1: i32) -> (i32, i32, i32, i32) {
    %c0_i32 = arith.constant 0 : i32
    %c0_i32_0 = arith.constant 0 : i32
    %c0_i32_1 = arith.constant 0 : i32
    return %arg0, %arg1, %c0_i32, %c0_i32_0 : i32, i32, i32, i32
  }
}

</mosaic_0001>

<llo_original>
// kernel: tpu_custom_call.1
$region0: #{tpu_custom_call.1}
  #allocation0 [shape = 'u32[]', space=smem, size = 0x4, offset = 0x4, fixed_abs, tag = 'smem constant byte address 0x4 - core index']
  #allocation1 [shape = 'u32[144,128]{1,0:T(1,128)}', space=vmem, size = 0x12000, scoped, tag = 'internal scratch']
  %s0 = inlined_call_operand.hbm [shape: f32[2,16,24,128], index: 0, kind: input, shape index: {}]
  %s1 = inlined_call_operand.hbm [shape: f32[2,16,24,128], index: 1, kind: input, shape index: {}]
  %s2 = inlined_call_operand.hbm [shape: f32[2,16,24,128], index: 2, kind: input, shape index: {}]
  %s3 = inlined_call_operand.hbm [shape: f32[9,128,128], index: 3, kind: input, shape index: {}]
  %s4 = inlined_call_operand.vmem [shape: f32[1,128], index: 4, kind: input, shape index: {}]
  %s5 = inlined_call_operand.vmem [shape: f32[1,128], index: 5, kind: input, shape index: {}]
  %s6 = inlined_call_operand.hbm [shape: f32[2,16,24,128], index: 6, kind: output, shape index: {0}]
  %s7 = inlined_call_operand.hbm [shape: f32[2,2,2,128], index: 7, kind: output, shape index: {1}]
  %8 = xla_tuple %s6, %s7
  %s9 = sld [smem:[#allocation0]]
  $region81: #{tpu_custom_call.1} parent=0
    _
  %s11 = ssub.s32 1, %s9
  %s12 = scalar_select 0, %s11, %s9
  $region1: #{tpu_custom_call.1} parent=0
    #allocation2 [shape = 'u8[196608]{0}', space=vmem, size = 0x30000, scoped, tag = 'input window, operand 0']
    #allocation3 [shape = 's32[2]{0}', space=sflag, size = 0x8, scoped, tag = 'scoped memory for tpu_custom_call.1']
    #allocation4 [shape = 's32[2]{0}', space=sflag, size = 0x8, scoped, tag = 'scoped memory for tpu_custom_call.1']
    #allocation5 [shape = 'u8[24576]{0}', space=vmem, size = 0x6000, scoped, tag = 'input window, operand 1']
    #allocation6 [shape = 's32[2]{0}', space=sflag, size = 0x8, scoped, tag = 'scoped memory for tpu_custom_call.1']
    #allocation7 [shape = 'u8[24576]{0}', space=vmem, size = 0x6000, scoped, tag = 'input window, operand 2']
    #allocation8 [shape = 'u8[589824]{0}', space=vmem, size = 0x90000, scoped, tag = 'input window, operand 3, single buffered']
    #allocation9 [shape = 's32[1]{0}', space=sflag, size = 0x4, scoped, tag = 'scoped memory for tpu_custom_call.1']
    #allocation10 [shape = 'u8[196608]{0}', space=vmem, size = 0x30000, scoped, tag = 'output window, operand 0']
    #allocation11 [shape = 'u8[2048]{0}', space=vmem, size = 0x800, scoped, tag = 'output window, operand 1']
    #allocation12 [shape = 's32[2]{0}', space=sflag, size = 0x8, scoped, tag = 'scoped memory for tpu_custom_call.1']
    %13 = vsyncpa [#allocation3], 0
    %s14 = scalar_lea.sflag [#allocation3], 1
    %15 = vsyncpa %s14, 0
    %16 = vsyncpa [#allocation6], 0
    %s17 = scalar_lea.sflag [#allocation6], 1
    %18 = vsyncpa %s17, 0
    %19 = vsyncpa [#allocation9], 0
    %20 = vsyncpa [#allocation4], 0
    %s21 = scalar_lea.sflag [#allocation4], 1
    %22 = vsyncpa %s21, 0
    %23 = vsyncpa [#allocation12], 0
    %s24 = scalar_lea.sflag [#allocation12], 1
    %25 = vsyncpa %s24, 0
    loop: start=0, step=1, limit=6
    $region2: #{tpu_custom_call.1} parent=1 // loop_pre_header
      _
    $region3: #{tpu_custom_call.1} parent=1 // loop_header
      %s27 = sphi 0, %s31
      %p28 = scmp.ge.s32.totalorder %s27, 6
      %s34 = sphi 0, %s46
      %s35 = sphi 0, %s42
      %s36 = sphi 0, %s34
      %s37 = sphi 0, %s35
      %s38 = sphi 0, %s36
      %s39 = sphi 0, %s37
      %s51 = sphi 0, %s53
      %s54 = sphi 0, %s51
      %s55 = sphi 0, %s54
      %s71 = sphi 0, %s55
      %s87 = sphi 0, %s89
      %s90 = sphi 0, %s87
      %s91 = sphi 0, %s90
      %s107 = sphi 0, %s91
      %s123 = sphi 0, %s125
      %s126 = sphi 0, %s123
      %s127 = sphi 0, %s126
      %s143 = sphi 0, %s127
      %s147 = sphi 0, %s147
      %s149 = sphi 0, %s147
      %s150 = sphi 0, %s149
      %s164 = sphi 0, %s150
      %s168 = sphi 0, %s168
      %s170 = sphi 0, %s168
      %s171 = sphi 0, %s170
      %s185 = sphi 0, %s171
      %s189 = sphi 0, %s189
      %s191 = sphi 0, %s189
      %s192 = sphi 0, %s191
      %s206 = sphi 0, %s192
      %s214 = sphi 0, %s216
      %s217 = sphi 0, %s214
      %s218 = sphi 0, %s217
      %s234 = sphi 0, %s218
      %s242 = sphi 0, %s244
      %s245 = sphi 0, %s242
      %s246 = sphi 0, %s245
      %s262 = sphi 0, %s246
    $region4: #{tpu_custom_call.1} parent=1 // loop_header_branch
      %30 = sbr.rel (%p28) target = $region8
    $region5: #{tpu_custom_call.1} parent=1 // loop_body
      %s32 = ssub.s32 %s27, 1
      %s33 = ssub.s32 %s27, 2
      %s40 = sadd.s32 1, %s35
      %p41 = scmp.ge.s32.totalorder %s40, 2
      %s42 = scalar_select %p41, 0, %s40
      %s43 = sadd.s32 1, %s34
      %s44 = scalar_select %p41, %s43, %s34
      %p45 = scmp.ge.s32.totalorder %s44, 2
      %s46 = scalar_select %p45, 0, %s44
      %s47 = ssub.s32 %s34, %s46
      %s48 = ssub.s32 %s35, %s42
      %s49 = sor.u32 %s47, %s48
      %p50 = scmp.eq.s32.totalorder %s49, 0
      %s52 = sadd.s32 %s51, 1
      %s53 = scalar_select %p50, %s51, %s52
      %p56 = pneg %p50
      %p57 = scmp.eq.s32.totalorder %s27, 3
      %p58 = por %p56, %p57
      %p59 = scmp.ne.s32.totalorder %s51, %s54
      %p60 = scmp.eq.s32.totalorder %s27, 0
      %p61 = por %p59, %p60
      %p62 = scmp.ne.s32.totalorder %s51, %s54
      %p63 = scmp.eq.s32.totalorder %s32, 3
      %p64 = por %p62, %p63
      %p65 = scmp.ne.s32.totalorder %s54, %s55
      %p66 = scmp.eq.s32.totalorder %s32, 0
      %p67 = por %p65, %p66
      %p68 = scmp.ne.s32.totalorder %s54, %s55
      %p69 = scmp.eq.s32.totalorder %s33, 3
      %p70 = por %p68, %p69
      %p72 = scmp.ne.s32.totalorder %s55, %s71
      %p73 = scmp.eq.s32.totalorder %s33, 0
      %p74 = por %p72, %p73
      %s75 = smul.u32 %s35, 8
      %s76 = ssub.s32 %s75, 1
      %p77 = scmp.gt.s32.totalorder %s76, 0
      %s78 = scalar_select %p77, %s76, 0
      %s79 = smul.u32 %s42, 8
      %s80 = ssub.s32 %s79, 1
      %p81 = scmp.gt.s32.totalorder %s80, 0
      %s82 = scalar_select %p81, %s80, 0
      %s83 = ssub.s32 %s34, %s46
      %s84 = ssub.s32 %s78, %s82
      %s85 = sor.u32 %s83, %s84
      %p86 = scmp.eq.s32.totalorder %s85, 0
      %s88 = sadd.s32 %s87, 1
      %s89 = scalar_select %p86, %s87, %s88
      %p92 = pneg %p86
      %p93 = scmp.eq.s32.totalorder %s27, 3
      %p94 = por %p92, %p93
      %p95 = scmp.ne.s32.totalorder %s87, %s90
      %p96 = scmp.eq.s32.totalorder %s27, 0
      %p97 = por %p95, %p96
      %p98 = scmp.ne.s32.totalorder %s87, %s90
      %p99 = scmp.eq.s32.totalorder %s32, 3
      %p100 = por %p98, %p99
      %p101 = scmp.ne.s32.totalorder %s90, %s91
      %p102 = scmp.eq.s32.totalorder %s32, 0
      %p103 = por %p101, %p102
      %p104 = scmp.ne.s32.totalorder %s90, %s91
      %p105 = scmp.eq.s32.totalorder %s33, 3
      %p106 = por %p104, %p105
      %p108 = scmp.ne.s32.totalorder %s91, %s107
      %p109 = scmp.eq.s32.totalorder %s33, 0
      %p110 = por %p108, %p109
      %s111 = smul.u32 %s35, 8
      %s112 = sadd.s32 %s111, 8
      %p113 = scmp.lt.s32.totalorder %s112, 15
      %s114 = scalar_select %p113, %s112, 15
      %s115 = smul.u32 %s42, 8
      %s116 = sadd.s32 %s115, 8
      %p117 = scmp.lt.s32.totalorder %s116, 15
      %s118 = scalar_select %p117, %s116, 15
      %s119 = ssub.s32 %s34, %s46
      %s120 = ssub.s32 %s114, %s118
      %s121 = sor.u32 %s119, %s120
      %p122 = scmp.eq.s32.totalorder %s121, 0
      %s124 = sadd.s32 %s123, 1
      %s125 = scalar_select %p122, %s123, %s124
      %p128 = pneg %p122
      %p129 = scmp.eq.s32.totalorder %s27, 3
      %p130 = por %p128, %p129
      %p131 = scmp.ne.s32.totalorder %s123, %s126
      %p132 = scmp.eq.s32.totalorder %s27, 0
      %p133 = por %p131, %p132
      %p134 = scmp.ne.s32.totalorder %s123, %s126
      %p135 = scmp.eq.s32.totalorder %s32, 3
      %p136 = por %p134, %p135
      %p137 = scmp.ne.s32.totalorder %s126, %s127
      %p138 = scmp.eq.s32.totalorder %s32, 0
      %p139 = por %p137, %p138
      %p140 = scmp.ne.s32.totalorder %s126, %s127
      %p141 = scmp.eq.s32.totalorder %s33, 3
      %p142 = por %p140, %p141
      %p144 = scmp.ne.s32.totalorder %s127, %s143
      %p145 = scmp.eq.s32.totalorder %s33, 0
      %p146 = por %p144, %p145
      %s148 = sadd.s32 %s147, 1
      %p151 = scmp.eq.s32.totalorder %s27, 3
      %p152 = scmp.ne.s32.totalorder %s147, %s149
      %p153 = scmp.eq.s32.totalorder %s27, 0
      %p154 = por %p152, %p153
      %p155 = scmp.ne.s32.totalorder %s147, %s149
      %p156 = scmp.eq.s32.totalorder %s32, 3
      %p157 = por %p155, %p156
      %p158 = scmp.ne.s32.totalorder %s149, %s150
      %p159 = scmp.eq.s32.totalorder %s32, 0
      %p160 = por %p158, %p159
      %p161 = scmp.ne.s32.totalorder %s149, %s150
      %p162 = scmp.eq.s32.totalorder %s33, 3
      %p163 = por %p161, %p162
      %p165 = scmp.ne.s32.totalorder %s150, %s164
      %p166 = scmp.eq.s32.totalorder %s33, 0
      %p167 = por %p165, %p166
      %s169 = sadd.s32 %s168, 1
      %p172 = scmp.eq.s32.totalorder %s27, 3
      %p173 = scmp.ne.s32.totalorder %s168, %s170
      %p174 = scmp.eq.s32.totalorder %s27, 0
      %p175 = por %p173, %p174
      %p176 = scmp.ne.s32.totalorder %s168, %s170
      %p177 = scmp.eq.s32.totalorder %s32, 3
      %p178 = por %p176, %p177
      %p179 = scmp.ne.s32.totalorder %s170, %s171
      %p180 = scmp.eq.s32.totalorder %s32, 0
      %p181 = por %p179, %p180
      %p182 = scmp.ne.s32.totalorder %s170, %s171
      %p183 = scmp.eq.s32.totalorder %s33, 3
      %p184 = por %p182, %p183
      %p186 = scmp.ne.s32.totalorder %s171, %s185
      %p187 = scmp.eq.s32.totalorder %s33, 0
      %p188 = por %p186, %p187
      %s190 = sadd.s32 %s189, 1
      %p193 = scmp.eq.s32.totalorder %s27, 3
      %p194 = scmp.ne.s32.totalorder %s189, %s191
      %p195 = scmp.eq.s32.totalorder %s27, 0
      %p196 = por %p194, %p195
      %p197 = scmp.ne.s32.totalorder %s189, %s191
      %p198 = scmp.eq.s32.totalorder %s32, 3
      %p199 = por %p197, %p198
      %p200 = scmp.ne.s32.totalorder %s191, %s192
      %p201 = scmp.eq.s32.totalorder %s32, 0
      %p202 = por %p200, %p201
      %p203 = scmp.ne.s32.totalorder %s191, %s192
      %p204 = scmp.eq.s32.totalorder %s33, 3
      %p205 = por %p203, %p204
      %p207 = scmp.ne.s32.totalorder %s192, %s206
      %p208 = scmp.eq.s32.totalorder %s33, 0
      %p209 = por %p207, %p208
      %s210 = ssub.s32 %s34, %s46
      %s211 = ssub.s32 %s35, %s42
      %s212 = sor.u32 %s210, %s211
      %p213 = scmp.eq.s32.totalorder %s212, 0
      %s215 = sadd.s32 %s214, 1
      %s216 = scalar_select %p213, %s214, %s215
      %p219 = pneg %p213
      %p220 = scmp.eq.s32.totalorder %s27, 3
      %p221 = por %p219, %p220
      %p222 = scmp.ne.s32.totalorder %s214, %s217
      %p223 = scmp.eq.s32.totalorder %s27, 0
      %p224 = por %p222, %p223
      %p225 = scmp.ne.s32.totalorder %s214, %s217
      %p226 = scmp.eq.s32.totalorder %s32, 3
      %p227 = por %p225, %p226
      %p228 = scmp.ne.s32.totalorder %s217, %s218
      %p229 = scmp.eq.s32.totalorder %s32, 0
      %p230 = por %p228, %p229
      %p231 = scmp.ne.s32.totalorder %s217, %s218
      %p232 = scmp.eq.s32.totalorder %s33, 3
      %p233 = por %p231, %p232
      %p235 = scmp.ne.s32.totalorder %s218, %s234
      %p236 = scmp.eq.s32.totalorder %s33, 0
      %p237 = por %p235, %p236
      %s238 = ssub.s32 %s34, %s46
      %s239 = ssub.s32 %s35, %s42
      %s240 = sor.u32 %s238, %s239
      %p241 = scmp.eq.s32.totalorder %s240, 0
      %s243 = sadd.s32 %s242, 1
      %s244 = scalar_select %p241, %s242, %s243
      %p247 = pneg %p241
      %p248 = scmp.eq.s32.totalorder %s27, 3
      %p249 = por %p247, %p248
      %p250 = scmp.ne.s32.totalorder %s242, %s245
      %p251 = scmp.eq.s32.totalorder %s27, 0
      %p252 = por %p250, %p251
      %p253 = scmp.ne.s32.totalorder %s242, %s245
      %p254 = scmp.eq.s32.totalorder %s32, 3
      %p255 = por %p253, %p254
      %p256 = scmp.ne.s32.totalorder %s245, %s246
      %p257 = scmp.eq.s32.totalorder %s32, 0
      %p258 = por %p256, %p257
      %p259 = scmp.ne.s32.totalorder %s245, %s246
      %p260 = scmp.eq.s32.totalorder %s33, 3
      %p261 = por %p259, %p260
      %p263 = scmp.ne.s32.totalorder %s246, %s262
      %p264 = scmp.eq.s32.totalorder %s33, 0
      %p265 = por %p263, %p264
      %p266 = scmp.le.s32.totalorder 1, %s27
      %p267 = scmp.lt.s32.totalorder %s27, 5
      %p268 = pnand %p266, %p267
      %p269 = pneg %p268
      // Predicated region
      $region9: #{tpu_custom_call.1} parent=5 // pred_check
        _
      $region10: #{tpu_custom_call.1} parent=5 // pred_check_branch
        %271 = sbr.rel (%p268) target = $region12
      $region11: #{tpu_custom_call.1} parent=5 // pred_region
        %s272 = ssub.s32 %s27, 1
        // Predicated region
        $region13: #{tpu_custom_call.1} parent=11 // pred_check
          %p273 = pneg %p160
        $region14: #{tpu_custom_call.1} parent=11 // pred_check_branch
          %275 = sbr.rel (%p273) target = $region16
        $region15: #{tpu_custom_call.1} parent=11 // pred_region
          %s277 = ssub.s32 18432, 18432
          %278 = vsyncadd [#allocation9], %s277
          %s279 = sshll.u32 [#allocation8], 4
          %s280 = int_to_ptr.vmem [resolvable:$true] %s279
          %285 = dma.hbm_to_vmem [thread:$0]  %s3, 18432, %s280, [#allocation9], 128, 128, 8
        $region16: #{tpu_custom_call.1} parent=11 // pred_fallthru
          _
        // Predicated region
        $region17: #{tpu_custom_call.1} parent=11 // pred_check
          %p286 = pneg %p181
        $region18: #{tpu_custom_call.1} parent=11 // pred_check_branch
          %288 = sbr.rel (%p286) target = $region20
        $region19: #{tpu_custom_call.1} parent=11 // pred_region
          _
        $region20: #{tpu_custom_call.1} parent=11 // pred_fallthru
          _
        // Predicated region
        $region21: #{tpu_custom_call.1} parent=11 // pred_check
          %p289 = pneg %p202
        $region22: #{tpu_custom_call.1} parent=11 // pred_check_branch
          %291 = sbr.rel (%p289) target = $region24
        $region23: #{tpu_custom_call.1} parent=11 // pred_region
          _
        $region24: #{tpu_custom_call.1} parent=11 // pred_fallthru
          _
      $region12: #{tpu_custom_call.1} parent=5 // pred_fallthru
        _
      %p292 = scmp.lt.s32.totalorder %s27, 4
      // Predicated region
      $region25: #{tpu_custom_call.1} parent=5 // pred_check
        %p293 = pneg %p292
      $region26: #{tpu_custom_call.1} parent=5 // pred_check_branch
        %295 = sbr.rel (%p293) target = $region28
      $region27: #{tpu_custom_call.1} parent=5 // pred_region
        // Predicated region
        $region29: #{tpu_custom_call.1} parent=27 // pred_check
          %p296 = pneg %p61
        $region30: #{tpu_custom_call.1} parent=27 // pred_check_branch
          %298 = sbr.rel (%p296) target = $region32
        $region31: #{tpu_custom_call.1} parent=27 // pred_region
          %s299 = sand.u32 %s51, 1
          %s300 = scalar_lea.sflag [#allocation3], %s299
          %s301 = sand.u32 %s51, 1
          %s302 = smul.addr %s301, 192
          %s303 = scalar_lea.vmem [#allocation2], %s302
          %s304 = smul.u32 8, %s35
          %s306 = ssub.s32 3072, 3072
          %307 = vsyncadd %s300, %s306
          %s308 = smul.addr %s304, 3
          %s309 = smul.addr %s34, 48
          %s310 = sadd.s32 %s308, %s309
          %s311 = smul.addr %s310, 128
          %s312 = scalar_lea.hbm %s0, %s311
          %s313 = sshll.u32 %s303, 4
          %s314 = int_to_ptr.vmem [resolvable:$true] %s313
          %319 = dma.hbm_to_vmem [thread:$0]  %s312, 3072, %s314, %s300, 128, 128, 8
        $region32: #{tpu_custom_call.1} parent=27 // pred_fallthru
          _
        // Predicated region
        $region33: #{tpu_custom_call.1} parent=27 // pred_check
          %p320 = pneg %p97
        $region34: #{tpu_custom_call.1} parent=27 // pred_check_branch
          %322 = sbr.rel (%p320) target = $region36
        $region35: #{tpu_custom_call.1} parent=27 // pred_region
          %s323 = sand.u32 %s27, 1
          %s324 = scalar_lea.sflag [#allocation6], %s323
          %s325 = sand.u32 %s87, 1
          %s326 = smul.addr %s325, 24
          %s327 = scalar_lea.vmem [#allocation5], %s326
          %s328 = smul.u32 %s35, 8
          %s329 = ssub.s32 %s328, 1
          %p330 = scmp.gt.s32.totalorder %s329, 0
          %s331 = scalar_select %p330, %s329, 0
          %s333 = ssub.s32 384, 384
          %334 = vsyncadd %s324, %s333
          %s335 = smul.addr %s331, 3
          %s336 = smul.addr %s34, 48
          %s337 = sadd.s32 %s335, %s336
          %s338 = smul.addr %s337, 128
          %s339 = scalar_lea.hbm %s1, %s338
          %s340 = sshll.u32 %s327, 4
          %s341 = int_to_ptr.vmem [resolvable:$true] %s340
          %346 = dma.hbm_to_vmem [thread:$0]  %s339, 384, %s341, %s324, 128, 128, 8
        $region36: #{tpu_custom_call.1} parent=27 // pred_fallthru
          _
        // Predicated region
        $region37: #{tpu_custom_call.1} parent=27 // pred_check
          %p347 = pneg %p133
        $region38: #{tpu_custom_call.1} parent=27 // pred_check_branch
          %349 = sbr.rel (%p347) target = $region40
        $region39: #{tpu_custom_call.1} parent=27 // pred_region
          %s350 = sand.u32 %s27, 1
          %s351 = scalar_lea.sflag [#allocation6], %s350
          %s352 = sand.u32 %s123, 1
          %s353 = smul.addr %s352, 24
          %s354 = scalar_lea.vmem [#allocation7], %s353
          %s355 = smul.u32 %s35, 8
          %s356 = sadd.s32 %s355, 8
          %p357 = scmp.lt.s32.totalorder %s356, 15
          %s358 = scalar_select %p357, %s356, 15
          %s360 = ssub.s32 384, 384
          %361 = vsyncadd %s351, %s360
          %s362 = smul.addr %s358, 3
          %s363 = smul.addr %s34, 48
          %s364 = sadd.s32 %s362, %s363
          %s365 = smul.addr %s364, 128
          %s366 = scalar_lea.hbm %s2, %s365
          %s367 = sshll.u32 %s354, 4
          %s368 = int_to_ptr.vmem [resolvable:$true] %s367
          %373 = dma.hbm_to_vmem [thread:$0]  %s366, 384, %s368, %s351, 128, 128, 8
        $region40: #{tpu_custom_call.1} parent=27 // pred_fallthru
          _
      $region28: #{tpu_custom_call.1} parent=5 // pred_fallthru
        _
      %p374 = scmp.le.s32.totalorder 1, %s27
      %p375 = scmp.lt.s32.totalorder %s27, 5
      %p376 = pnand %p374, %p375
      %p377 = pneg %p376
      // Predicated region
      $region41: #{tpu_custom_call.1} parent=5 // pred_check
        _
      $region42: #{tpu_custom_call.1} parent=5 // pred_check_branch
        %379 = sbr.rel (%p376) target = $region44
      $region43: #{tpu_custom_call.1} parent=5 // pred_region
        %s380 = ssub.s32 %s27, 1
        %s381 = sand.u32 %s54, 1
        %s382 = scalar_lea.sflag [#allocation3], %s381
        %s383 = sand.u32 %s54, 1
        %s384 = smul.addr %s383, 192
        %s385 = scalar_lea.vmem [#allocation2], %s384
        // Predicated region
        $region45: #{tpu_custom_call.1} parent=43 // pred_check
          %p386 = pneg %p67
        $region46: #{tpu_custom_call.1} parent=43 // pred_check_branch
          %388 = sbr.rel (%p386) target = $region48
        $region47: #{tpu_custom_call.1} parent=43 // pred_region
          %389 = dma.done %s382, 3072
        $region48: #{tpu_custom_call.1} parent=43 // pred_fallthru
          _
        %s390 = sand.u32 %s32, 1
        %s391 = scalar_lea.sflag [#allocation6], %s390
        %s392 = sand.u32 %s90, 1
        %s393 = smul.addr %s392, 24
        %s394 = scalar_lea.vmem [#allocation5], %s393
        // Predicated region
        $region49: #{tpu_custom_call.1} parent=43 // pred_check
          %p395 = pneg %p103
        $region50: #{tpu_custom_call.1} parent=43 // pred_check_branch
          %397 = sbr.rel (%p395) target = $region52
        $region51: #{tpu_custom_call.1} parent=43 // pred_region
          %398 = dma.done %s391, 384
        $region52: #{tpu_custom_call.1} parent=43 // pred_fallthru
          _
        %s399 = sand.u32 %s32, 1
        %s400 = scalar_lea.sflag [#allocation6], %s399
        %s401 = sand.u32 %s126, 1
        %s402 = smul.addr %s401, 24
        %s403 = scalar_lea.vmem [#allocation7], %s402
        // Predicated region
        $region53: #{tpu_custom_call.1} parent=43 // pred_check
          %p404 = pneg %p139
        $region54: #{tpu_custom_call.1} parent=43 // pred_check_branch
          %406 = sbr.rel (%p404) target = $region56
        $region55: #{tpu_custom_call.1} parent=43 // pred_region
          %407 = dma.done %s400, 384
        $region56: #{tpu_custom_call.1} parent=43 // pred_fallthru
          _
        // Predicated region
        $region57: #{tpu_custom_call.1} parent=43 // pred_check
          %p408 = pneg %p160
        $region58: #{tpu_custom_call.1} parent=43 // pred_check_branch
          %410 = sbr.rel (%p408) target = $region60
        $region59: #{tpu_custom_call.1} parent=43 // pred_region
          %411 = dma.done [#allocation9], 18432
        $region60: #{tpu_custom_call.1} parent=43 // pred_fallthru
          _
        %s412 = sand.u32 %s54, 1
        %s413 = scalar_lea.sflag [#allocation3], %s412
        %s414 = sand.u32 %s54, 1
        %s415 = smul.addr %s414, 192
        %s416 = scalar_lea.vmem [#allocation2], %s415
        %p417 = pneg %p67
        %p418 = pneg %p64
        %s419 = sand.u32 %s32, 1
        %s420 = scalar_lea.sflag [#allocation6], %s419
        %s421 = sand.u32 %s90, 1
        %s422 = smul.addr %s421, 24
        %s423 = scalar_lea.vmem [#allocation5], %s422
        %p424 = pneg %p103
        %p425 = pneg %p100
        %s426 = sand.u32 %s32, 1
        %s427 = scalar_lea.sflag [#allocation6], %s426
        %s428 = sand.u32 %s126, 1
        %s429 = smul.addr %s428, 24
        %s430 = scalar_lea.vmem [#allocation7], %s429
        %p431 = pneg %p139
        %p432 = pneg %p136
        %p433 = pneg %p160
        %p434 = pneg %p157
        %p435 = pneg %p181
        %p436 = pneg %p178
        %p437 = pneg %p202
        %p438 = pneg %p199
        %p439 = pneg %p230
        %p440 = pneg %p227
        %s441 = sand.u32 %s217, 1
        %s442 = scalar_lea.sflag [#allocation4], %s441
        %s443 = sand.u32 %s217, 1
        %s444 = smul.addr %s443, 192
        %s445 = scalar_lea.vmem [#allocation10], %s444
        %p446 = pneg %p258
        %p447 = pneg %p255
        %s448 = sand.u32 %s245, 1
        %s449 = scalar_lea.sflag [#allocation12], %s448
        %s450 = sand.u32 %s245, 1
        %s451 = smul.addr %s450, 2
        %s452 = scalar_lea.vmem [#allocation11], %s451
        %s453 = smul.u32 8, %s37
        %s454 = smul.u32 %s37, 8
        %s455 = ssub.s32 %s454, 1
        %p456 = scmp.gt.s32.totalorder %s455, 0
        %s457 = scalar_select %p456, %s455, 0
        %s458 = smul.u32 %s37, 8
        %s459 = sadd.s32 %s458, 8
        %p460 = scmp.lt.s32.totalorder %s459, 15
        %s461 = scalar_select %p460, %s459, 15
        %s462 = smul.u32 8, %s37
        %v463 = vld [vmem:[%s394] sm:$0xff]
        %v464 = vld [vmem:[%s394 + $0x8] sm:$0xff]
        %v465 = vld [vmem:[%s394 + $0x10] sm:$0xff]
        %v466 = vld [vmem:[%s385] sm:$0xff]
        %v467 = vld [vmem:[%s385 + $0x8] sm:$0xff]
        %v468 = vld [vmem:[%s385 + $0x10] sm:$0xff]
        %v469 = vld [vmem:[%s385 + $0x18] sm:$0xff]
        %v470 = vld [vmem:[%s385 + $0x20] sm:$0xff]
        %v471 = vld [vmem:[%s385 + $0x28] sm:$0xff]
        %v472 = vld [vmem:[%s385 + $0x30] sm:$0xff]
        %v473 = vld [vmem:[%s385 + $0x38] sm:$0xff]
        %v474 = vld [vmem:[%s385 + $0x40] sm:$0xff]
        %v475 = vld [vmem:[%s385 + $0x48] sm:$0xff]
        %v476 = vld [vmem:[%s385 + $0x50] sm:$0xff]
        %v477 = vld [vmem:[%s385 + $0x58] sm:$0xff]
        %v478 = vld [vmem:[%s385 + $0x60] sm:$0xff]
        %v479 = vld [vmem:[%s385 + $0x68] sm:$0xff]
        %v480 = vld [vmem:[%s385 + $0x70] sm:$0xff]
        %v481 = vld [vmem:[%s385 + $0x78] sm:$0xff]
        %v482 = vld [vmem:[%s385 + $0x80] sm:$0xff]
        %v483 = vld [vmem:[%s385 + $0x88] sm:$0xff]
        %v484 = vld [vmem:[%s385 + $0x90] sm:$0xff]
        %v485 = vld [vmem:[%s385 + $0x98] sm:$0xff]
        %v486 = vld [vmem:[%s385 + $0xa0] sm:$0xff]
        %v487 = vld [vmem:[%s385 + $0xa8] sm:$0xff]
        %v488 = vld [vmem:[%s385 + $0xb0] sm:$0xff]
        %v489 = vld [vmem:[%s385 + $0xb8] sm:$0xff]
        %v490 = vld [vmem:[%s403] sm:$0xff]
        %v491 = vld [vmem:[%s403 + $0x8] sm:$0xff]
        %v492 = vld [vmem:[%s403 + $0x10] sm:$0xff]
        %s493 = smul.u32 %s37, 8
        %s494 = ssub.s32 %s493, 1
        %v495 = vstv %s494
        %v496 = vadd.s32 %v495, 1
        %v497 = vadd.s32 %v495, 2
        %v498 = vadd.s32 %v495, 3
        %v499 = vadd.s32 %v495, 4
        %v500 = vadd.s32 %v495, 5
        %v501 = vadd.s32 %v495, 6
        %v502 = vadd.s32 %v495, 7
        %v503 = vadd.s32 %v495, 8
        %v504 = vadd.s32 %v495, 9
        %v505 = vlaneseq
        %v506 = vshrl.u32 %v505, 7
        %v507 = vadd.s32 %v506, 8
        %v508 = vadd.s32 %v506, 16
        %vm509 = vcmp.ge.s32.totalorder %v495, 0
        %vm510 = vcmp.ge.s32.totalorder %v496, 0
        %vm511 = vcmp.ge.s32.totalorder %v497, 0
        %vm512 = vcmp.ge.s32.totalorder %v498, 0
        %vm513 = vcmp.ge.s32.totalorder %v499, 0
        %vm514 = vcmp.ge.s32.totalorder %v500, 0
        %vm515 = vcmp.ge.s32.totalorder %v501, 0
        %vm516 = vcmp.ge.s32.totalorder %v502, 0
        %vm517 = vcmp.ge.s32.totalorder %v503, 0
        %vm518 = vcmp.ge.s32.totalorder %v504, 0
        %vm519 = vcmp.lt.s32.totalorder %v495, 16
        %vm520 = vcmp.lt.s32.totalorder %v496, 16
        %vm521 = vcmp.lt.s32.totalorder %v497, 16
        %vm522 = vcmp.lt.s32.totalorder %v498, 16
        %vm523 = vcmp.lt.s32.totalorder %v499, 16
        %vm524 = vcmp.lt.s32.totalorder %v500, 16
        %vm525 = vcmp.lt.s32.totalorder %v501, 16
        %vm526 = vcmp.lt.s32.totalorder %v502, 16
        %vm527 = vcmp.lt.s32.totalorder %v503, 16
        %vm528 = vcmp.lt.s32.totalorder %v504, 16
        %vm529 = vmand %vm509, %vm519
        %vm530 = vmand %vm510, %vm520
        %vm531 = vmand %vm511, %vm521
        %vm532 = vmand %vm512, %vm522
        %vm533 = vmand %vm513, %vm523
        %vm534 = vmand %vm514, %vm524
        %vm535 = vmand %vm515, %vm525
        %vm536 = vmand %vm516, %vm526
        %vm537 = vmand %vm517, %vm527
        %vm538 = vmand %vm518, %vm528
        %vm539 = vcmp.ge.s32.totalorder %v506, 1
        %vm540 = vcmp.ge.s32.totalorder %v507, 1
        %vm541 = vcmp.ge.s32.totalorder %v508, 1
        %vm542 = vmand %vm529, %vm539
        %vm543 = vmand %vm529, %vm540
        %vm544 = vmand %vm529, %vm541
        %vm545 = vmand %vm530, %vm539
        %vm546 = vmand %vm530, %vm540
        %vm547 = vmand %vm530, %vm541
        %vm548 = vmand %vm531, %vm539
        %vm549 = vmand %vm531, %vm540
        %vm550 = vmand %vm531, %vm541
        %vm551 = vmand %vm532, %vm539
        %vm552 = vmand %vm532, %vm540
        %vm553 = vmand %vm532, %vm541
        %vm554 = vmand %vm533, %vm539
        %vm555 = vmand %vm533, %vm540
        %vm556 = vmand %vm533, %vm541
        %vm557 = vmand %vm534, %vm539
        %vm558 = vmand %vm534, %vm540
        %vm559 = vmand %vm534, %vm541
        %vm560 = vmand %vm535, %vm539
        %vm561 = vmand %vm535, %vm540
        %vm562 = vmand %vm535, %vm541
        %vm563 = vmand %vm536, %vm539
        %vm564 = vmand %vm536, %vm540
        %vm565 = vmand %vm536, %vm541
        %vm566 = vmand %vm537, %vm539
        %vm567 = vmand %vm537, %vm540
        %vm568 = vmand %vm537, %vm541
        %vm569 = vmand %vm538, %vm539
        %vm570 = vmand %vm538, %vm540
        %vm571 = vmand %vm538, %vm541
        %vm572 = vcmp.le.s32.totalorder %v506, 16
        %vm573 = vcmp.le.s32.totalorder %v507, 16
        %vm574 = vcmp.le.s32.totalorder %v508, 16
        %vm575 = vmand %vm542, %vm572
        %vm576 = vmand %vm543, %vm573
        %vm577 = vmand %vm544, %vm574
        %vm578 = vmand %vm545, %vm572
        %vm579 = vmand %vm546, %vm573
        %vm580 = vmand %vm547, %vm574
        %vm581 = vmand %vm548, %vm572
        %vm582 = vmand %vm549, %vm573
        %vm583 = vmand %vm550, %vm574
        %vm584 = vmand %vm551, %vm572
        %vm585 = vmand %vm552, %vm573
        %vm586 = vmand %vm553, %vm574
        %vm587 = vmand %vm554, %vm572
        %vm588 = vmand %vm555, %vm573
        %vm589 = vmand %vm556, %vm574
        %vm590 = vmand %vm557, %vm572
        %vm591 = vmand %vm558, %vm573
        %vm592 = vmand %vm559, %vm574
        %vm593 = vmand %vm560, %vm572
        %vm594 = vmand %vm561, %vm573
        %vm595 = vmand %vm562, %vm574
        %vm596 = vmand %vm563, %vm572
        %vm597 = vmand %vm564, %vm573
        %vm598 = vmand %vm565, %vm574
        %vm599 = vmand %vm566, %vm572
        %vm600 = vmand %vm567, %vm573
        %vm601 = vmand %vm568, %vm574
        %vm602 = vmand %vm569, %vm572
        %vm603 = vmand %vm570, %vm573
        %vm604 = vmand %vm571, %vm574
        %v605 = vsel %vm575, 1, 0
        %v606 = vsel %vm576, 1, 0
        %v607 = vsel %vm577, 1, 0
        %v608 = vsel %vm578, 1, 0
        %v609 = vsel %vm579, 1, 0
        %v610 = vsel %vm580, 1, 0
        %v611 = vsel %vm581, 1, 0
        %v612 = vsel %vm582, 1, 0
        %v613 = vsel %vm583, 1, 0
        %v614 = vsel %vm584, 1, 0
        %v615 = vsel %vm585, 1, 0
        %v616 = vsel %vm586, 1, 0
        %v617 = vsel %vm587, 1, 0
        %v618 = vsel %vm588, 1, 0
        %v619 = vsel %vm589, 1, 0
        %v620 = vsel %vm590, 1, 0
        %v621 = vsel %vm591, 1, 0
        %v622 = vsel %vm592, 1, 0
        %v623 = vsel %vm593, 1, 0
        %v624 = vsel %vm594, 1, 0
        %v625 = vsel %vm595, 1, 0
        %v626 = vsel %vm596, 1, 0
        %v627 = vsel %vm597, 1, 0
        %v628 = vsel %vm598, 1, 0
        %v629 = vsel %vm599, 1, 0
        %v630 = vsel %vm600, 1, 0
        %v631 = vsel %vm601, 1, 0
        %v632 = vsel %vm602, 1, 0
        %v633 = vsel %vm603, 1, 0
        %v634 = vsel %vm604, 1, 0
        %vm635 = vcmp.eq.s32.totalorder %v605, 1
        %vm636 = vcmp.eq.s32.totalorder %v606, 1
        %vm637 = vcmp.eq.s32.totalorder %v607, 1
        %vm638 = vcmp.eq.s32.totalorder %v608, 1
        %vm639 = vcmp.eq.s32.totalorder %v609, 1
        %vm640 = vcmp.eq.s32.totalorder %v610, 1
        %vm641 = vcmp.eq.s32.totalorder %v611, 1
        %vm642 = vcmp.eq.s32.totalorder %v612, 1
        %vm643 = vcmp.eq.s32.totalorder %v613, 1
        %vm644 = vcmp.eq.s32.totalorder %v614, 1
        %vm645 = vcmp.eq.s32.totalorder %v615, 1
        %vm646 = vcmp.eq.s32.totalorder %v616, 1
        %vm647 = vcmp.eq.s32.totalorder %v617, 1
        %vm648 = vcmp.eq.s32.totalorder %v618, 1
        %vm649 = vcmp.eq.s32.totalorder %v619, 1
        %vm650 = vcmp.eq.s32.totalorder %v620, 1
        %vm651 = vcmp.eq.s32.totalorder %v621, 1
        %vm652 = vcmp.eq.s32.totalorder %v622, 1
        %vm653 = vcmp.eq.s32.totalorder %v623, 1
        %vm654 = vcmp.eq.s32.totalorder %v624, 1
        %vm655 = vcmp.eq.s32.totalorder %v625, 1
        %vm656 = vcmp.eq.s32.totalorder %v626, 1
        %vm657 = vcmp.eq.s32.totalorder %v627, 1
        %vm658 = vcmp.eq.s32.totalorder %v628, 1
        %vm659 = vcmp.eq.s32.totalorder %v629, 1
        %vm660 = vcmp.eq.s32.totalorder %v630, 1
        %vm661 = vcmp.eq.s32.totalorder %v631, 1
        %vm662 = vcmp.eq.s32.totalorder %v632, 1
        %vm663 = vcmp.eq.s32.totalorder %v633, 1
        %vm664 = vcmp.eq.s32.totalorder %v634, 1
        %v665 = vsel %vm635, %v463, 0.0
        %v666 = vsel %vm636, %v464, 0.0
        %v667 = vsel %vm637, %v465, 0.0
        %v668 = vsel %vm638, %v466, 0.0
        %v669 = vsel %vm639, %v467, 0.0
        %v670 = vsel %vm640, %v468, 0.0
        %v671 = vsel %vm641, %v469, 0.0
        %v672 = vsel %vm642, %v470, 0.0
        %v673 = vsel %vm643, %v471, 0.0
        %v674 = vsel %vm644, %v472, 0.0
        %v675 = vsel %vm645, %v473, 0.0
        %v676 = vsel %vm646, %v474, 0.0
        %v677 = vsel %vm647, %v475, 0.0
        %v678 = vsel %vm648, %v476, 0.0
        %v679 = vsel %vm649, %v477, 0.0
        %v680 = vsel %vm650, %v478, 0.0
        %v681 = vsel %vm651, %v479, 0.0
        %v682 = vsel %vm652, %v480, 0.0
        %v683 = vsel %vm653, %v481, 0.0
        %v684 = vsel %vm654, %v482, 0.0
        %v685 = vsel %vm655, %v483, 0.0
        %v686 = vsel %vm656, %v484, 0.0
        %v687 = vsel %vm657, %v485, 0.0
        %v688 = vsel %vm658, %v486, 0.0
        %v689 = vsel %vm659, %v487, 0.0
        %v690 = vsel %vm660, %v488, 0.0
        %v691 = vsel %vm661, %v489, 0.0
        %v692 = vsel %vm662, %v490, 0.0
        %v693 = vsel %vm663, %v491, 0.0
        %v694 = vsel %vm664, %v492, 0.0
        %vm725 = vcmask 1040384
        %v726 = vrot.slane %v665, 7
        %v727 = vrot.slane %v666, 7
        %v728 = vsel %vm725, %v726, %v727
        %v729 = vrot.slane %v667, 7
        %v730 = vsel %vm725, %v727, %v729
        %v731 = vrot.slane %v668, 7
        %v732 = vrot.slane %v669, 7
        %v733 = vsel %vm725, %v731, %v732
        %v734 = vrot.slane %v670, 7
        %v735 = vsel %vm725, %v732, %v734
        %v736 = vrot.slane %v671, 7
        %v737 = vrot.slane %v672, 7
        %v738 = vsel %vm725, %v736, %v737
        %v739 = vrot.slane %v673, 7
        %v740 = vsel %vm725, %v737, %v739
        %v741 = vrot.slane %v674, 7
        %v742 = vrot.slane %v675, 7
        %v743 = vsel %vm725, %v741, %v742
        %v744 = vrot.slane %v676, 7
        %v745 = vsel %vm725, %v742, %v744
        %v746 = vrot.slane %v677, 7
        %v747 = vrot.slane %v678, 7
        %v748 = vsel %vm725, %v746, %v747
        %v749 = vrot.slane %v679, 7
        %v750 = vsel %vm725, %v747, %v749
        %v751 = vrot.slane %v680, 7
        %v752 = vrot.slane %v681, 7
        %v753 = vsel %vm725, %v751, %v752
        %v754 = vrot.slane %v682, 7
        %v755 = vsel %vm725, %v752, %v754
        %v756 = vrot.slane %v683, 7
        %v757 = vrot.slane %v684, 7
        %v758 = vsel %vm725, %v756, %v757
        %v759 = vrot.slane %v685, 7
        %v760 = vsel %vm725, %v757, %v759
        %v761 = vrot.slane %v686, 7
        %v762 = vrot.slane %v687, 7
        %v763 = vsel %vm725, %v761, %v762
        %v764 = vrot.slane %v688, 7
        %v765 = vsel %vm725, %v762, %v764
        %v766 = vrot.slane %v689, 7
        %v767 = vrot.slane %v690, 7
        %v768 = vsel %vm725, %v766, %v767
        %v769 = vrot.slane %v691, 7
        %v770 = vsel %vm725, %v767, %v769
        %v771 = vrot.slane %v692, 7
        %v772 = vrot.slane %v693, 7
        %v773 = vsel %vm725, %v771, %v772
        %v774 = vrot.slane %v694, 7
        %v775 = vsel %vm725, %v772, %v774
        %v806 = vsel %vm725, %v665, %v726
        %v807 = vsel %vm725, %v668, %v731
        %v808 = vsel %vm725, %v671, %v736
        %v809 = vsel %vm725, %v674, %v741
        %v810 = vsel %vm725, %v677, %v746
        %v811 = vsel %vm725, %v680, %v751
        %v812 = vsel %vm725, %v683, %v756
        %v813 = vsel %vm725, %v686, %v761
        %v814 = vsel %vm725, %v689, %v766
        %v815 = vsel %vm725, %v692, %v771
        %vm816 = vcmask 1046528
        %v817 = vrot.slane %v665, 1
        %v818 = vrot.slane %v666, 1
        %v819 = vsel %vm816, %v817, %v818
        %v820 = vrot.slane %v667, 1
        %v821 = vsel %vm816, %v818, %v820
        %v822 = vrot.slane %v668, 1
        %v823 = vrot.slane %v669, 1
        %v824 = vsel %vm816, %v822, %v823
        %v825 = vrot.slane %v670, 1
        %v826 = vsel %vm816, %v823, %v825
        %v827 = vrot.slane %v671, 1
        %v828 = vrot.slane %v672, 1
        %v829 = vsel %vm816, %v827, %v828
        %v830 = vrot.slane %v673, 1
        %v831 = vsel %vm816, %v828, %v830
        %v832 = vrot.slane %v674, 1
        %v833 = vrot.slane %v675, 1
        %v834 = vsel %vm816, %v832, %v833
        %v835 = vrot.slane %v676, 1
        %v836 = vsel %vm816, %v833, %v835
        %v837 = vrot.slane %v677, 1
        %v838 = vrot.slane %v678, 1
        %v839 = vsel %vm816, %v837, %v838
        %v840 = vrot.slane %v679, 1
        %v841 = vsel %vm816, %v838, %v840
        %v842 = vrot.slane %v680, 1
        %v843 = vrot.slane %v681, 1
        %v844 = vsel %vm816, %v842, %v843
        %v845 = vrot.slane %v682, 1
        %v846 = vsel %vm816, %v843, %v845
        %v847 = vrot.slane %v683, 1
        %v848 = vrot.slane %v684, 1
        %v849 = vsel %vm816, %v847, %v848
        %v850 = vrot.slane %v685, 1
        %v851 = vsel %vm816, %v848, %v850
        %v852 = vrot.slane %v686, 1
        %v853 = vrot.slane %v687, 1
        %v854 = vsel %vm816, %v852, %v853
        %v855 = vrot.slane %v688, 1
        %v856 = vsel %vm816, %v853, %v855
        %v857 = vrot.slane %v689, 1
        %v858 = vrot.slane %v690, 1
        %v859 = vsel %vm816, %v857, %v858
        %v860 = vrot.slane %v691, 1
        %v861 = vsel %vm816, %v858, %v860
        %v862 = vrot.slane %v692, 1
        %v863 = vrot.slane %v693, 1
        %v864 = vsel %vm816, %v862, %v863
        %v865 = vrot.slane %v694, 1
        %v866 = vsel %vm816, %v863, %v865
        %v897 = vsel %vm816, %v820, %v667
        %v898 = vsel %vm816, %v825, %v670
        %v899 = vsel %vm816, %v830, %v673
        %v900 = vsel %vm816, %v835, %v676
        %v901 = vsel %vm816, %v840, %v679
        %v902 = vsel %vm816, %v845, %v682
        %v903 = vsel %vm816, %v850, %v685
        %v904 = vsel %vm816, %v855, %v688
        %v905 = vsel %vm816, %v860, %v691
        %v906 = vsel %vm816, %v865, %v694
        %v907 = vld [vmem:[#allocation8] sm:$0xff]
        %v908 = vld [vmem:[#allocation8 + $0x8] sm:$0xff]
        %v909 = vld [vmem:[#allocation8 + $0x10] sm:$0xff]
        %v910 = vld [vmem:[#allocation8 + $0x18] sm:$0xff]
        %v911 = vld [vmem:[#allocation8 + $0x20] sm:$0xff]
        %v912 = vld [vmem:[#allocation8 + $0x28] sm:$0xff]
        %v913 = vld [vmem:[#allocation8 + $0x30] sm:$0xff]
        %v914 = vld [vmem:[#allocation8 + $0x38] sm:$0xff]
        %v915 = vld [vmem:[#allocation8 + $0x40] sm:$0xff]
        %v916 = vld [vmem:[#allocation8 + $0x48] sm:$0xff]
        %v917 = vld [vmem:[#allocation8 + $0x50] sm:$0xff]
        %v918 = vld [vmem:[#allocation8 + $0x58] sm:$0xff]
        %v919 = vld [vmem:[#allocation8 + $0x60] sm:$0xff]
        %v920 = vld [vmem:[#allocation8 + $0x68] sm:$0xff]
        %v921 = vld [vmem:[#allocation8 + $0x70] sm:$0xff]
        %v922 = vld [vmem:[#allocation8 + $0x78] sm:$0xff]
        %s923 = scalar_lea.vmem [#allocation8], 128
        %v924 = vld [vmem:[%s923] sm:$0xff]
        %v925 = vld [vmem:[%s923 + $0x8] sm:$0xff]
        %v926 = vld [vmem:[%s923 + $0x10] sm:$0xff]
        %v927 = vld [vmem:[%s923 + $0x18] sm:$0xff]
        %v928 = vld [vmem:[%s923 + $0x20] sm:$0xff]
        %v929 = vld [vmem:[%s923 + $0x28] sm:$0xff]
        %v930 = vld [vmem:[%s923 + $0x30] sm:$0xff]
        %v931 = vld [vmem:[%s923 + $0x38] sm:$0xff]
        %v932 = vld [vmem:[%s923 + $0x40] sm:$0xff]
        %v933 = vld [vmem:[%s923 + $0x48] sm:$0xff]
        %v934 = vld [vmem:[%s923 + $0x50] sm:$0xff]
        %v935 = vld [vmem:[%s923 + $0x58] sm:$0xff]
        %v936 = vld [vmem:[%s923 + $0x60] sm:$0xff]
        %v937 = vld [vmem:[%s923 + $0x68] sm:$0xff]
        %v938 = vld [vmem:[%s923 + $0x70] sm:$0xff]
        %v939 = vld [vmem:[%s923 + $0x78] sm:$0xff]
        %940 = vmatprep.subr.mxu0 0.0
        %941 = vmatpush1.msra.mxu0 %v939
        %942 = vmatprep.subr.mxu0 0.0
        %943 = vmatpush1.msra.mxu0 %v938
        %944 = vmatprep.subr.mxu0 0.0
        %945 = vmatpush1.msra.mxu0 %v937
        %946 = vmatprep.subr.mxu0 0.0
        %947 = vmatpush1.msra.mxu0 %v936
        %948 = vmatprep.subr.mxu0 0.0
        %949 = vmatpush1.msra.mxu0 %v935
        %950 = vmatprep.subr.mxu0 0.0
        %951 = vmatpush1.msra.mxu0 %v934
        %952 = vmatprep.subr.mxu0 0.0
        %953 = vmatpush1.msra.mxu0 %v933
        %954 = vmatprep.subr.mxu0 0.0
        %955 = vmatpush1.msra.mxu0 %v932
        %956 = vmatprep.subr.mxu0 0.0
        %957 = vmatpush1.msra.mxu0 %v931
        %958 = vmatprep.subr.mxu0 0.0
        %959 = vmatpush1.msra.mxu0 %v930
        %960 = vmatprep.subr.mxu0 0.0
        %961 = vmatpush1.msra.mxu0 %v929
        %962 = vmatprep.subr.mxu0 0.0
        %963 = vmatpush1.msra.mxu0 %v928
        %964 = vmatprep.subr.mxu0 0.0
        %965 = vmatpush1.msra.mxu0 %v927
        %966 = vmatprep.subr.mxu0 0.0
        %967 = vmatpush1.msra.mxu0 %v926
        %968 = vmatprep.subr.mxu0 0.0
        %969 = vmatpush1.msra.mxu0 %v925
        %970 = vmatprep.subr.mxu0 0.0
        %971 = vmatpush1.msra.mxu0 %v924
        %972 = vmatprep.subr.mxu0 0.0
        %973 = vmatpush2.msra.mxu0 0.0
        %974 = vmatprep.subr.mxu0 0.0
        %975 = vmatpush2.msra.mxu0 0.0
        %976 = vmatprep.subr.mxu0 0.0
        %977 = vmatpush2.msra.mxu0 0.0
        %978 = vmatprep.subr.mxu0 0.0
        %979 = vmatpush2.msra.mxu0 0.0
        %980 = vmatprep.subr.mxu0 0.0
        %981 = vmatpush2.msra.mxu0 0.0
        %982 = vmatprep.subr.mxu0 0.0
        %983 = vmatpush2.msra.mxu0 0.0
        %984 = vmatprep.subr.mxu0 0.0
        %985 = vmatpush2.msra.mxu0 0.0
        %986 = vmatprep.subr.mxu0 0.0
        %987 = vmatpush2.msra.mxu0 0.0
        %988 = vmatprep.subr.mxu0 0.0
        %989 = vmatpush2.msra.mxu0 0.0
        %990 = vmatprep.subr.mxu0 0.0
        %991 = vmatpush2.msra.mxu0 0.0
        %992 = vmatprep.subr.mxu0 0.0
        %993 = vmatpush2.msra.mxu0 0.0
        %994 = vmatprep.subr.mxu0 0.0
        %995 = vmatpush2.msra.mxu0 0.0
        %996 = vmatprep.subr.mxu0 0.0
        %997 = vmatpush2.msra.mxu0 0.0
        %998 = vmatprep.subr.mxu0 0.0
        %999 = vmatpush2.msra.mxu0 0.0
        %1000 = vmatprep.subr.mxu0 0.0
        %1001 = vmatpush2.msra.mxu0 0.0
        %1002 = vmatprep.subr.mxu0 0.0
        %1003 = vmatpush2.msra.mxu0 0.0
        %1004 = vmatprep.mubr.f32.mxu0 0.0
        %1005 = vmatmul.mubr.f32.gmra.mxu0 %v665
        %v1006 = vpop.f32.mrf.mxu0
        %v1007 = vadd.f32 0.0, %v1006
        %v1008 = vpop.f32.mrf.mxu0
        %1009 = vmatprep.mubr.f32.mxu0 0.0
        %1010 = vmatmul.mubr.f32.gmra.mxu0 %v666
        %v1011 = vpop.f32.mrf.mxu0
        %v1012 = vadd.f32 0.0, %v1011
        %v1013 = vpop.f32.mrf.mxu0
        %1014 = vmatprep.mubr.f32.mxu0 0.0
        %1015 = vmatmul.mubr.f32.gmra.mxu0 %v667
        %v1016 = vpop.f32.mrf.mxu0
        %v1017 = vadd.f32 0.0, %v1016
        %v1018 = vpop.f32.mrf.mxu0
        %1019 = vmatprep.mubr.f32.mxu0 0.0
        %1020 = vmatmul.mubr.f32.gmra.mxu0 %v668
        %v1021 = vpop.f32.mrf.mxu0
        %v1022 = vadd.f32 0.0, %v1021
        %v1023 = vpop.f32.mrf.mxu0
        %1024 = vmatprep.mubr.f32.mxu0 0.0
        %1025 = vmatmul.mubr.f32.gmra.mxu0 %v669
        %v1026 = vpop.f32.mrf.mxu0
        %v1027 = vadd.f32 0.0, %v1026
        %v1028 = vpop.f32.mrf.mxu0
        %1029 = vmatprep.mubr.f32.mxu0 0.0
        %1030 = vmatmul.mubr.f32.gmra.mxu0 %v670
        %v1031 = vpop.f32.mrf.mxu0
        %v1032 = vadd.f32 0.0, %v1031
        %v1033 = vpop.f32.mrf.mxu0
        %1034 = vmatprep.mubr.f32.mxu0 0.0
        %1035 = vmatmul.mubr.f32.gmra.mxu0 %v671
        %v1036 = vpop.f32.mrf.mxu0
        %v1037 = vadd.f32 0.0, %v1036
        %v1038 = vpop.f32.mrf.mxu0
        %1039 = vmatprep.mubr.f32.mxu0 0.0
        %1040 = vmatmul.mubr.f32.gmra.mxu0 %v672
        %v1041 = vpop.f32.mrf.mxu0
        %v1042 = vadd.f32 0.0, %v1041
        %v1043 = vpop.f32.mrf.mxu0
        %1044 = vmatprep.mubr.f32.mxu0 0.0
        %1045 = vmatmul.mubr.f32.gmra.mxu0 %v673
        %v1046 = vpop.f32.mrf.mxu0
        %v1047 = vadd.f32 0.0, %v1046
        %v1048 = vpop.f32.mrf.mxu0
        %1049 = vmatprep.mubr.f32.mxu0 0.0
        %1050 = vmatmul.mubr.f32.gmra.mxu0 %v674
        %v1051 = vpop.f32.mrf.mxu0
        %v1052 = vadd.f32 0.0, %v1051
        %v1053 = vpop.f32.mrf.mxu0
        %1054 = vmatprep.mubr.f32.mxu0 0.0
        %1055 = vmatmul.mubr.f32.gmra.mxu0 %v675
        %v1056 = vpop.f32.mrf.mxu0
        %v1057 = vadd.f32 0.0, %v1056
        %v1058 = vpop.f32.mrf.mxu0
        %1059 = vmatprep.mubr.f32.mxu0 0.0
        %1060 = vmatmul.mubr.f32.gmra.mxu0 %v676
        %v1061 = vpop.f32.mrf.mxu0
        %v1062 = vadd.f32 0.0, %v1061
        %v1063 = vpop.f32.mrf.mxu0
        %1064 = vmatprep.mubr.f32.mxu0 0.0
        %1065 = vmatmul.mubr.f32.gmra.mxu0 %v677
        %v1066 = vpop.f32.mrf.mxu0
        %v1067 = vadd.f32 0.0, %v1066
        %v1068 = vpop.f32.mrf.mxu0
        %1069 = vmatprep.mubr.f32.mxu0 0.0
        %1070 = vmatmul.mubr.f32.gmra.mxu0 %v678
        %v1071 = vpop.f32.mrf.mxu0
        %v1072 = vadd.f32 0.0, %v1071
        %v1073 = vpop.f32.mrf.mxu0
        %1074 = vmatprep.mubr.f32.mxu0 0.0
        %1075 = vmatmul.mubr.f32.gmra.mxu0 %v679
        %v1076 = vpop.f32.mrf.mxu0
        %v1077 = vadd.f32 0.0, %v1076
        %v1078 = vpop.f32.mrf.mxu0
        %1079 = vmatprep.mubr.f32.mxu0 0.0
        %1080 = vmatmul.mubr.f32.gmra.mxu0 %v680
        %v1081 = vpop.f32.mrf.mxu0
        %v1082 = vadd.f32 0.0, %v1081
        %v1083 = vpop.f32.mrf.mxu0
        %1084 = vmatprep.mubr.f32.mxu0 0.0
        %1085 = vmatmul.mubr.f32.gmra.mxu0 %v681
        %v1086 = vpop.f32.mrf.mxu0
        %v1087 = vadd.f32 0.0, %v1086
        %v1088 = vpop.f32.mrf.mxu0
        %1089 = vmatprep.mubr.f32.mxu0 0.0
        %1090 = vmatmul.mubr.f32.gmra.mxu0 %v682
        %v1091 = vpop.f32.mrf.mxu0
        %v1092 = vadd.f32 0.0, %v1091
        %v1093 = vpop.f32.mrf.mxu0
        %1094 = vmatprep.mubr.f32.mxu0 0.0
        %1095 = vmatmul.mubr.f32.gmra.mxu0 %v683
        %v1096 = vpop.f32.mrf.mxu0
        %v1097 = vadd.f32 0.0, %v1096
        %v1098 = vpop.f32.mrf.mxu0
        %1099 = vmatprep.mubr.f32.mxu0 0.0
        %1100 = vmatmul.mubr.f32.gmra.mxu0 %v684
        %v1101 = vpop.f32.mrf.mxu0
        %v1102 = vadd.f32 0.0, %v1101
        %v1103 = vpop.f32.mrf.mxu0
        %1104 = vmatprep.mubr.f32.mxu0 0.0
        %1105 = vmatmul.mubr.f32.gmra.mxu0 %v685
        %v1106 = vpop.f32.mrf.mxu0
        %v1107 = vadd.f32 0.0, %v1106
        %v1108 = vpop.f32.mrf.mxu0
        %1109 = vmatprep.mubr.f32.mxu0 0.0
        %1110 = vmatmul.mubr.f32.gmra.mxu0 %v686
        %v1111 = vpop.f32.mrf.mxu0
        %v1112 = vadd.f32 0.0, %v1111
        %v1113 = vpop.f32.mrf.mxu0
        %1114 = vmatprep.mubr.f32.mxu0 0.0
        %1115 = vmatmul.mubr.f32.gmra.mxu0 %v687
        %v1116 = vpop.f32.mrf.mxu0
        %v1117 = vadd.f32 0.0, %v1116
        %v1118 = vpop.f32.mrf.mxu0
        %1119 = vmatprep.mubr.f32.mxu0 0.0
        %1120 = vmatmul.mubr.f32.gmra.mxu0 %v688
        %v1121 = vpop.f32.mrf.mxu0
        %v1122 = vadd.f32 0.0, %v1121
        %v1123 = vpop.f32.mrf.mxu0
        %1124 = vdwg.mxu0
        %1125 = vmatprep.subr.mxu0 0.0
        %1126 = vmatpush1.msra.mxu0 %v922
        %1127 = vmatprep.subr.mxu0 0.0
        %1128 = vmatpush1.msra.mxu0 %v921
        %1129 = vmatprep.subr.mxu0 0.0
        %1130 = vmatpush1.msra.mxu0 %v920
        %1131 = vmatprep.subr.mxu0 0.0
        %1132 = vmatpush1.msra.mxu0 %v919
        %1133 = vmatprep.subr.mxu0 0.0
        %1134 = vmatpush1.msra.mxu0 %v918
        %1135 = vmatprep.subr.mxu0 0.0
        %1136 = vmatpush1.msra.mxu0 %v917
        %1137 = vmatprep.subr.mxu0 0.0
        %1138 = vmatpush1.msra.mxu0 %v916
        %1139 = vmatprep.subr.mxu0 0.0
        %1140 = vmatpush1.msra.mxu0 %v915
        %1141 = vmatprep.subr.mxu0 0.0
        %1142 = vmatpush1.msra.mxu0 %v914
        %1143 = vmatprep.subr.mxu0 0.0
        %1144 = vmatpush1.msra.mxu0 %v913
        %1145 = vmatprep.subr.mxu0 0.0
        %1146 = vmatpush1.msra.mxu0 %v912
        %1147 = vmatprep.subr.mxu0 0.0
        %1148 = vmatpush1.msra.mxu0 %v911
        %1149 = vmatprep.subr.mxu0 0.0
        %1150 = vmatpush1.msra.mxu0 %v910
        %1151 = vmatprep.subr.mxu0 0.0
        %1152 = vmatpush1.msra.mxu0 %v909
        %1153 = vmatprep.subr.mxu0 0.0
        %1154 = vmatpush1.msra.mxu0 %v908
        %1155 = vmatprep.subr.mxu0 0.0
        %1156 = vmatpush1.msra.mxu0 %v907
        %1157 = vmatprep.subr.mxu0 0.0
        %1158 = vmatpush2.msra.mxu0 0.0
        %1159 = vmatprep.subr.mxu0 0.0
        %1160 = vmatpush2.msra.mxu0 0.0
        %1161 = vmatprep.subr.mxu0 0.0
        %1162 = vmatpush2.msra.mxu0 0.0
        %1163 = vmatprep.subr.mxu0 0.0
        %1164 = vmatpush2.msra.mxu0 0.0
        %1165 = vmatprep.subr.mxu0 0.0
        %1166 = vmatpush2.msra.mxu0 0.0
        %1167 = vmatprep.subr.mxu0 0.0
        %1168 = vmatpush2.msra.mxu0 0.0
        %1169 = vmatprep.subr.mxu0 0.0
        %1170 = vmatpush2.msra.mxu0 0.0
        %1171 = vmatprep.subr.mxu0 0.0
        %1172 = vmatpush2.msra.mxu0 0.0
        %1173 = vmatprep.subr.mxu0 0.0
        %1174 = vmatpush2.msra.mxu0 0.0
        %1175 = vmatprep.subr.mxu0 0.0
        %1176 = vmatpush2.msra.mxu0 0.0
        %1177 = vmatprep.subr.mxu0 0.0
        %1178 = vmatpush2.msra.mxu0 0.0
        %1179 = vmatprep.subr.mxu0 0.0
        %1180 = vmatpush2.msra.mxu0 0.0
        %1181 = vmatprep.subr.mxu0 0.0
        %1182 = vmatpush2.msra.mxu0 0.0
        %1183 = vmatprep.subr.mxu0 0.0
        %1184 = vmatpush2.msra.mxu0 0.0
        %1185 = vmatprep.subr.mxu0 0.0
        %1186 = vmatpush2.msra.mxu0 0.0
        %1187 = vmatprep.subr.mxu0 0.0
        %1188 = vmatpush2.msra.mxu0 0.0
        %1189 = vmatprep.mubr.f32.mxu0 0.0
        %1190 = vmatmul.mubr.f32.gmra.mxu0 %v806
        %v1191 = vpop.f32.mrf.mxu0
        %v1192 = vadd.f32 %v1007, %v1191
        %v1193 = vpop.f32.mrf.mxu0
        %1194 = vmatprep.mubr.f32.mxu0 0.0
        %1195 = vmatmul.mubr.f32.gmra.mxu0 %v728
        %v1196 = vpop.f32.mrf.mxu0
        %v1197 = vadd.f32 %v1012, %v1196
        %v1198 = vpop.f32.mrf.mxu0
        %1199 = vmatprep.mubr.f32.mxu0 0.0
        %1200 = vmatmul.mubr.f32.gmra.mxu0 %v730
        %v1201 = vpop.f32.mrf.mxu0
        %v1202 = vadd.f32 %v1017, %v1201
        %v1203 = vpop.f32.mrf.mxu0
        %1204 = vmatprep.mubr.f32.mxu0 0.0
        %1205 = vmatmul.mubr.f32.gmra.mxu0 %v807
        %v1206 = vpop.f32.mrf.mxu0
        %v1207 = vadd.f32 %v1022, %v1206
        %v1208 = vpop.f32.mrf.mxu0
        %1209 = vmatprep.mubr.f32.mxu0 0.0
        %1210 = vmatmul.mubr.f32.gmra.mxu0 %v733
        %v1211 = vpop.f32.mrf.mxu0
        %v1212 = vadd.f32 %v1027, %v1211
        %v1213 = vpop.f32.mrf.mxu0
        %1214 = vmatprep.mubr.f32.mxu0 0.0
        %1215 = vmatmul.mubr.f32.gmra.mxu0 %v735
        %v1216 = vpop.f32.mrf.mxu0
        %v1217 = vadd.f32 %v1032, %v1216
        %v1218 = vpop.f32.mrf.mxu0
        %1219 = vmatprep.mubr.f32.mxu0 0.0
        %1220 = vmatmul.mubr.f32.gmra.mxu0 %v808
        %v1221 = vpop.f32.mrf.mxu0
        %v1222 = vadd.f32 %v1037, %v1221
        %v1223 = vpop.f32.mrf.mxu0
        %1224 = vmatprep.mubr.f32.mxu0 0.0
        %1225 = vmatmul.mubr.f32.gmra.mxu0 %v738
        %v1226 = vpop.f32.mrf.mxu0
        %v1227 = vadd.f32 %v1042, %v1226
        %v1228 = vpop.f32.mrf.mxu0
        %1229 = vmatprep.mubr.f32.mxu0 0.0
        %1230 = vmatmul.mubr.f32.gmra.mxu0 %v740
        %v1231 = vpop.f32.mrf.mxu0
        %v1232 = vadd.f32 %v1047, %v1231
        %v1233 = vpop.f32.mrf.mxu0
        %1234 = vmatprep.mubr.f32.mxu0 0.0
        %1235 = vmatmul.mubr.f32.gmra.mxu0 %v809
        %v1236 = vpop.f32.mrf.mxu0
        %v1237 = vadd.f32 %v1052, %v1236
        %v1238 = vpop.f32.mrf.mxu0
        %1239 = vmatprep.mubr.f32.mxu0 0.0
        %1240 = vmatmul.mubr.f32.gmra.mxu0 %v743
        %v1241 = vpop.f32.mrf.mxu0
        %v1242 = vadd.f32 %v1057, %v1241
        %v1243 = vpop.f32.mrf.mxu0
        %1244 = vmatprep.mubr.f32.mxu0 0.0
        %1245 = vmatmul.mubr.f32.gmra.mxu0 %v745
        %v1246 = vpop.f32.mrf.mxu0
        %v1247 = vadd.f32 %v1062, %v1246
        %v1248 = vpop.f32.mrf.mxu0
        %1249 = vmatprep.mubr.f32.mxu0 0.0
        %1250 = vmatmul.mubr.f32.gmra.mxu0 %v810
        %v1251 = vpop.f32.mrf.mxu0
        %v1252 = vadd.f32 %v1067, %v1251
        %v1253 = vpop.f32.mrf.mxu0
        %1254 = vmatprep.mubr.f32.mxu0 0.0
        %1255 = vmatmul.mubr.f32.gmra.mxu0 %v748
        %v1256 = vpop.f32.mrf.mxu0
        %v1257 = vadd.f32 %v1072, %v1256
        %v1258 = vpop.f32.mrf.mxu0
        %1259 = vmatprep.mubr.f32.mxu0 0.0
        %1260 = vmatmul.mubr.f32.gmra.mxu0 %v750
        %v1261 = vpop.f32.mrf.mxu0
        %v1262 = vadd.f32 %v1077, %v1261
        %v1263 = vpop.f32.mrf.mxu0
        %1264 = vmatprep.mubr.f32.mxu0 0.0
        %1265 = vmatmul.mubr.f32.gmra.mxu0 %v811
        %v1266 = vpop.f32.mrf.mxu0
        %v1267 = vadd.f32 %v1082, %v1266
        %v1268 = vpop.f32.mrf.mxu0
        %1269 = vmatprep.mubr.f32.mxu0 0.0
        %1270 = vmatmul.mubr.f32.gmra.mxu0 %v753
        %v1271 = vpop.f32.mrf.mxu0
        %v1272 = vadd.f32 %v1087, %v1271
        %v1273 = vpop.f32.mrf.mxu0
        %1274 = vmatprep.mubr.f32.mxu0 0.0
        %1275 = vmatmul.mubr.f32.gmra.mxu0 %v755
        %v1276 = vpop.f32.mrf.mxu0
        %v1277 = vadd.f32 %v1092, %v1276
        %v1278 = vpop.f32.mrf.mxu0
        %1279 = vmatprep.mubr.f32.mxu0 0.0
        %1280 = vmatmul.mubr.f32.gmra.mxu0 %v812
        %v1281 = vpop.f32.mrf.mxu0
        %v1282 = vadd.f32 %v1097, %v1281
        %v1283 = vpop.f32.mrf.mxu0
        %1284 = vmatprep.mubr.f32.mxu0 0.0
        %1285 = vmatmul.mubr.f32.gmra.mxu0 %v758
        %v1286 = vpop.f32.mrf.mxu0
        %v1287 = vadd.f32 %v1102, %v1286
        %v1288 = vpop.f32.mrf.mxu0
        %1289 = vmatprep.mubr.f32.mxu0 0.0
        %1290 = vmatmul.mubr.f32.gmra.mxu0 %v760
        %v1291 = vpop.f32.mrf.mxu0
        %v1292 = vadd.f32 %v1107, %v1291
        %v1293 = vpop.f32.mrf.mxu0
        %1294 = vmatprep.mubr.f32.mxu0 0.0
        %1295 = vmatmul.mubr.f32.gmra.mxu0 %v813
        %v1296 = vpop.f32.mrf.mxu0
        %v1297 = vadd.f32 %v1112, %v1296
        %v1298 = vpop.f32.mrf.mxu0
        %1299 = vmatprep.mubr.f32.mxu0 0.0
        %1300 = vmatmul.mubr.f32.gmra.mxu0 %v763
        %v1301 = vpop.f32.mrf.mxu0
        %v1302 = vadd.f32 %v1117, %v1301
        %v1303 = vpop.f32.mrf.mxu0
        %1304 = vmatprep.mubr.f32.mxu0 0.0
        %1305 = vmatmul.mubr.f32.gmra.mxu0 %v765
        %v1306 = vpop.f32.mrf.mxu0
        %v1307 = vadd.f32 %v1122, %v1306
        %v1308 = vpop.f32.mrf.mxu0
        %1309 = vdwg.mxu0
        %s1310 = scalar_lea.vmem [#allocation8], 256
        %v1311 = vld [vmem:[%s1310] sm:$0xff]
        %v1312 = vld [vmem:[%s1310 + $0x8] sm:$0xff]
        %v1313 = vld [vmem:[%s1310 + $0x10] sm:$0xff]
        %v1314 = vld [vmem:[%s1310 + $0x18] sm:$0xff]
        %v1315 = vld [vmem:[%s1310 + $0x20] sm:$0xff]
        %v1316 = vld [vmem:[%s1310 + $0x28] sm:$0xff]
        %v1317 = vld [vmem:[%s1310 + $0x30] sm:$0xff]
        %v1318 = vld [vmem:[%s1310 + $0x38] sm:$0xff]
        %v1319 = vld [vmem:[%s1310 + $0x40] sm:$0xff]
        %v1320 = vld [vmem:[%s1310 + $0x48] sm:$0xff]
        %v1321 = vld [vmem:[%s1310 + $0x50] sm:$0xff]
        %v1322 = vld [vmem:[%s1310 + $0x58] sm:$0xff]
        %v1323 = vld [vmem:[%s1310 + $0x60] sm:$0xff]
        %v1324 = vld [vmem:[%s1310 + $0x68] sm:$0xff]
        %v1325 = vld [vmem:[%s1310 + $0x70] sm:$0xff]
        %v1326 = vld [vmem:[%s1310 + $0x78] sm:$0xff]
        %1327 = vmatprep.subr.mxu0 0.0
        %1328 = vmatpush1.msra.mxu0 %v1326
        %1329 = vmatprep.subr.mxu0 0.0
        %1330 = vmatpush1.msra.mxu0 %v1325
        %1331 = vmatprep.subr.mxu0 0.0
        %1332 = vmatpush1.msra.mxu0 %v1324
        %1333 = vmatprep.subr.mxu0 0.0
        %1334 = vmatpush1.msra.mxu0 %v1323
        %1335 = vmatprep.subr.mxu0 0.0
        %1336 = vmatpush1.msra.mxu0 %v1322
        %1337 = vmatprep.subr.mxu0 0.0
        %1338 = vmatpush1.msra.mxu0 %v1321
        %1339 = vmatprep.subr.mxu0 0.0
        %1340 = vmatpush1.msra.mxu0 %v1320
        %1341 = vmatprep.subr.mxu0 0.0
        %1342 = vmatpush1.msra.mxu0 %v1319
        %1343 = vmatprep.subr.mxu0 0.0
        %1344 = vmatpush1.msra.mxu0 %v1318
        %1345 = vmatprep.subr.mxu0 0.0
        %1346 = vmatpush1.msra.mxu0 %v1317
        %1347 = vmatprep.subr.mxu0 0.0
        %1348 = vmatpush1.msra.mxu0 %v1316
        %1349 = vmatprep.subr.mxu0 0.0
        %1350 = vmatpush1.msra.mxu0 %v1315
        %1351 = vmatprep.subr.mxu0 0.0
        %1352 = vmatpush1.msra.mxu0 %v1314
        %1353 = vmatprep.subr.mxu0 0.0
        %1354 = vmatpush1.msra.mxu0 %v1313
        %1355 = vmatprep.subr.mxu0 0.0
        %1356 = vmatpush1.msra.mxu0 %v1312
        %1357 = vmatprep.subr.mxu0 0.0
        %1358 = vmatpush1.msra.mxu0 %v1311
        %1359 = vmatprep.subr.mxu0 0.0
        %1360 = vmatpush2.msra.mxu0 0.0
        %1361 = vmatprep.subr.mxu0 0.0
        %1362 = vmatpush2.msra.mxu0 0.0
        %1363 = vmatprep.subr.mxu0 0.0
        %1364 = vmatpush2.msra.mxu0 0.0
        %1365 = vmatprep.subr.mxu0 0.0
        %1366 = vmatpush2.msra.mxu0 0.0
        %1367 = vmatprep.subr.mxu0 0.0
        %1368 = vmatpush2.msra.mxu0 0.0
        %1369 = vmatprep.subr.mxu0 0.0
        %1370 = vmatpush2.msra.mxu0 0.0
        %1371 = vmatprep.subr.mxu0 0.0
        %1372 = vmatpush2.msra.mxu0 0.0
        %1373 = vmatprep.subr.mxu0 0.0
        %1374 = vmatpush2.msra.mxu0 0.0
        %1375 = vmatprep.subr.mxu0 0.0
        %1376 = vmatpush2.msra.mxu0 0.0
        %1377 = vmatprep.subr.mxu0 0.0
        %1378 = vmatpush2.msra.mxu0 0.0
        %1379 = vmatprep.subr.mxu0 0.0
        %1380 = vmatpush2.msra.mxu0 0.0
        %1381 = vmatprep.subr.mxu0 0.0
        %1382 = vmatpush2.msra.mxu0 0.0
        %1383 = vmatprep.subr.mxu0 0.0
        %1384 = vmatpush2.msra.mxu0 0.0
        %1385 = vmatprep.subr.mxu0 0.0
        %1386 = vmatpush2.msra.mxu0 0.0
        %1387 = vmatprep.subr.mxu0 0.0
        %1388 = vmatpush2.msra.mxu0 0.0
        %1389 = vmatprep.subr.mxu0 0.0
        %1390 = vmatpush2.msra.mxu0 0.0
        %1391 = vmatprep.mubr.f32.mxu0 0.0
        %1392 = vmatmul.mubr.f32.gmra.mxu0 %v819
        %v1393 = vpop.f32.mrf.mxu0
        %v1394 = vadd.f32 0.0, %v1393
        %v1395 = vpop.f32.mrf.mxu0
        %1396 = vmatprep.mubr.f32.mxu0 0.0
        %1397 = vmatmul.mubr.f32.gmra.mxu0 %v821
        %v1398 = vpop.f32.mrf.mxu0
        %v1399 = vadd.f32 0.0, %v1398
        %v1400 = vpop.f32.mrf.mxu0
        %1401 = vmatprep.mubr.f32.mxu0 0.0
        %1402 = vmatmul.mubr.f32.gmra.mxu0 %v897
        %v1403 = vpop.f32.mrf.mxu0
        %v1404 = vadd.f32 0.0, %v1403
        %v1405 = vpop.f32.mrf.mxu0
        %1406 = vmatprep.mubr.f32.mxu0 0.0
        %1407 = vmatmul.mubr.f32.gmra.mxu0 %v824
        %v1408 = vpop.f32.mrf.mxu0
        %v1409 = vadd.f32 0.0, %v1408
        %v1410 = vpop.f32.mrf.mxu0
        %1411 = vmatprep.mubr.f32.mxu0 0.0
        %1412 = vmatmul.mubr.f32.gmra.mxu0 %v826
        %v1413 = vpop.f32.mrf.mxu0
        %v1414 = vadd.f32 0.0, %v1413
        %v1415 = vpop.f32.mrf.mxu0
        %1416 = vmatprep.mubr.f32.mxu0 0.0
        %1417 = vmatmul.mubr.f32.gmra.mxu0 %v898
        %v1418 = vpop.f32.mrf.mxu0
        %v1419 = vadd.f32 0.0, %v1418
        %v1420 = vpop.f32.mrf.mxu0
        %1421 = vmatprep.mubr.f32.mxu0 0.0
        %1422 = vmatmul.mubr.f32.gmra.mxu0 %v829
        %v1423 = vpop.f32.mrf.mxu0
        %v1424 = vadd.f32 0.0, %v1423
        %v1425 = vpop.f32.mrf.mxu0
        %1426 = vmatprep.mubr.f32.mxu0 0.0
        %1427 = vmatmul.mubr.f32.gmra.mxu0 %v831
        %v1428 = vpop.f32.mrf.mxu0
        %v1429 = vadd.f32 0.0, %v1428
        %v1430 = vpop.f32.mrf.mxu0
        %1431 = vmatprep.mubr.f32.mxu0 0.0
        %1432 = vmatmul.mubr.f32.gmra.mxu0 %v899
        %v1433 = vpop.f32.mrf.mxu0
        %v1434 = vadd.f32 0.0, %v1433
        %v1435 = vpop.f32.mrf.mxu0
        %1436 = vmatprep.mubr.f32.mxu0 0.0
        %1437 = vmatmul.mubr.f32.gmra.mxu0 %v834
        %v1438 = vpop.f32.mrf.mxu0
        %v1439 = vadd.f32 0.0, %v1438
        %v1440 = vpop.f32.mrf.mxu0
        %1441 = vmatprep.mubr.f32.mxu0 0.0
        %1442 = vmatmul.mubr.f32.gmra.mxu0 %v836
        %v1443 = vpop.f32.mrf.mxu0
        %v1444 = vadd.f32 0.0, %v1443
        %v1445 = vpop.f32.mrf.mxu0
        %1446 = vmatprep.mubr.f32.mxu0 0.0
        %1447 = vmatmul.mubr.f32.gmra.mxu0 %v900
        %v1448 = vpop.f32.mrf.mxu0
        %v1449 = vadd.f32 0.0, %v1448
        %v1450 = vpop.f32.mrf.mxu0
        %1451 = vmatprep.mubr.f32.mxu0 0.0
        %1452 = vmatmul.mubr.f32.gmra.mxu0 %v839
        %v1453 = vpop.f32.mrf.mxu0
        %v1454 = vadd.f32 0.0, %v1453
        %v1455 = vpop.f32.mrf.mxu0
        %1456 = vmatprep.mubr.f32.mxu0 0.0
        %1457 = vmatmul.mubr.f32.gmra.mxu0 %v841
        %v1458 = vpop.f32.mrf.mxu0
        %v1459 = vadd.f32 0.0, %v1458
        %v1460 = vpop.f32.mrf.mxu0
        %1461 = vmatprep.mubr.f32.mxu0 0.0
        %1462 = vmatmul.mubr.f32.gmra.mxu0 %v901
        %v1463 = vpop.f32.mrf.mxu0
        %v1464 = vadd.f32 0.0, %v1463
        %v1465 = vpop.f32.mrf.mxu0
        %1466 = vmatprep.mubr.f32.mxu0 0.0
        %1467 = vmatmul.mubr.f32.gmra.mxu0 %v844
        %v1468 = vpop.f32.mrf.mxu0
        %v1469 = vadd.f32 0.0, %v1468
        %v1470 = vpop.f32.mrf.mxu0
        %1471 = vmatprep.mubr.f32.mxu0 0.0
        %1472 = vmatmul.mubr.f32.gmra.mxu0 %v846
        %v1473 = vpop.f32.mrf.mxu0
        %v1474 = vadd.f32 0.0, %v1473
        %v1475 = vpop.f32.mrf.mxu0
        %1476 = vmatprep.mubr.f32.mxu0 0.0
        %1477 = vmatmul.mubr.f32.gmra.mxu0 %v902
        %v1478 = vpop.f32.mrf.mxu0
        %v1479 = vadd.f32 0.0, %v1478
        %v1480 = vpop.f32.mrf.mxu0
        %1481 = vmatprep.mubr.f32.mxu0 0.0
        %1482 = vmatmul.mubr.f32.gmra.mxu0 %v849
        %v1483 = vpop.f32.mrf.mxu0
        %v1484 = vadd.f32 0.0, %v1483
        %v1485 = vpop.f32.mrf.mxu0
        %1486 = vmatprep.mubr.f32.mxu0 0.0
        %1487 = vmatmul.mubr.f32.gmra.mxu0 %v851
        %v1488 = vpop.f32.mrf.mxu0
        %v1489 = vadd.f32 0.0, %v1488
        %v1490 = vpop.f32.mrf.mxu0
        %1491 = vmatprep.mubr.f32.mxu0 0.0
        %1492 = vmatmul.mubr.f32.gmra.mxu0 %v903
        %v1493 = vpop.f32.mrf.mxu0
        %v1494 = vadd.f32 0.0, %v1493
        %v1495 = vpop.f32.mrf.mxu0
        %1496 = vmatprep.mubr.f32.mxu0 0.0
        %1497 = vmatmul.mubr.f32.gmra.mxu0 %v854
        %v1498 = vpop.f32.mrf.mxu0
        %v1499 = vadd.f32 0.0, %v1498
        %v1500 = vpop.f32.mrf.mxu0
        %1501 = vmatprep.mubr.f32.mxu0 0.0
        %1502 = vmatmul.mubr.f32.gmra.mxu0 %v856
        %v1503 = vpop.f32.mrf.mxu0
        %v1504 = vadd.f32 0.0, %v1503
        %v1505 = vpop.f32.mrf.mxu0
        %1506 = vmatprep.mubr.f32.mxu0 0.0
        %1507 = vmatmul.mubr.f32.gmra.mxu0 %v904
        %v1508 = vpop.f32.mrf.mxu0
        %v1509 = vadd.f32 0.0, %v1508
        %v1510 = vpop.f32.mrf.mxu0
        %1511 = vdwg.mxu0
        %v1512 = vadd.f32 %v1192, %v1394
        %v1513 = vadd.f32 %v1197, %v1399
        %v1514 = vadd.f32 %v1202, %v1404
        %v1515 = vadd.f32 %v1207, %v1409
        %v1516 = vadd.f32 %v1212, %v1414
        %v1517 = vadd.f32 %v1217, %v1419
        %v1518 = vadd.f32 %v1222, %v1424
        %v1519 = vadd.f32 %v1227, %v1429
        %v1520 = vadd.f32 %v1232, %v1434
        %v1521 = vadd.f32 %v1237, %v1439
        %v1522 = vadd.f32 %v1242, %v1444
        %v1523 = vadd.f32 %v1247, %v1449
        %v1524 = vadd.f32 %v1252, %v1454
        %v1525 = vadd.f32 %v1257, %v1459
        %v1526 = vadd.f32 %v1262, %v1464
        %v1527 = vadd.f32 %v1267, %v1469
        %v1528 = vadd.f32 %v1272, %v1474
        %v1529 = vadd.f32 %v1277, %v1479
        %v1530 = vadd.f32 %v1282, %v1484
        %v1531 = vadd.f32 %v1287, %v1489
        %v1532 = vadd.f32 %v1292, %v1494
        %v1533 = vadd.f32 %v1297, %v1499
        %v1534 = vadd.f32 %v1302, %v1504
        %v1535 = vadd.f32 %v1307, %v1509
        %s1536 = scalar_lea.vmem [#allocation8], 384
        %v1537 = vld [vmem:[%s1536] sm:$0xff]
        %v1538 = vld [vmem:[%s1536 + $0x8] sm:$0xff]
        %v1539 = vld [vmem:[%s1536 + $0x10] sm:$0xff]
        %v1540 = vld [vmem:[%s1536 + $0x18] sm:$0xff]
        %v1541 = vld [vmem:[%s1536 + $0x20] sm:$0xff]
        %v1542 = vld [vmem:[%s1536 + $0x28] sm:$0xff]
        %v1543 = vld [vmem:[%s1536 + $0x30] sm:$0xff]
        %v1544 = vld [vmem:[%s1536 + $0x38] sm:$0xff]
        %v1545 = vld [vmem:[%s1536 + $0x40] sm:$0xff]
        %v1546 = vld [vmem:[%s1536 + $0x48] sm:$0xff]
        %v1547 = vld [vmem:[%s1536 + $0x50] sm:$0xff]
        %v1548 = vld [vmem:[%s1536 + $0x58] sm:$0xff]
        %v1549 = vld [vmem:[%s1536 + $0x60] sm:$0xff]
        %v1550 = vld [vmem:[%s1536 + $0x68] sm:$0xff]
        %v1551 = vld [vmem:[%s1536 + $0x70] sm:$0xff]
        %v1552 = vld [vmem:[%s1536 + $0x78] sm:$0xff]
        %1553 = vmatprep.subr.mxu0 0.0
        %1554 = vmatpush1.msra.mxu0 %v1552
        %1555 = vmatprep.subr.mxu0 0.0
        %1556 = vmatpush1.msra.mxu0 %v1551
        %1557 = vmatprep.subr.mxu0 0.0
        %1558 = vmatpush1.msra.mxu0 %v1550
        %1559 = vmatprep.subr.mxu0 0.0
        %1560 = vmatpush1.msra.mxu0 %v1549
        %1561 = vmatprep.subr.mxu0 0.0
        %1562 = vmatpush1.msra.mxu0 %v1548
        %1563 = vmatprep.subr.mxu0 0.0
        %1564 = vmatpush1.msra.mxu0 %v1547
        %1565 = vmatprep.subr.mxu0 0.0
        %1566 = vmatpush1.msra.mxu0 %v1546
        %1567 = vmatprep.subr.mxu0 0.0
        %1568 = vmatpush1.msra.mxu0 %v1545
        %1569 = vmatprep.subr.mxu0 0.0
        %1570 = vmatpush1.msra.mxu0 %v1544
        %1571 = vmatprep.subr.mxu0 0.0
        %1572 = vmatpush1.msra.mxu0 %v1543
        %1573 = vmatprep.subr.mxu0 0.0
        %1574 = vmatpush1.msra.mxu0 %v1542
        %1575 = vmatprep.subr.mxu0 0.0
        %1576 = vmatpush1.msra.mxu0 %v1541
        %1577 = vmatprep.subr.mxu0 0.0
        %1578 = vmatpush1.msra.mxu0 %v1540
        %1579 = vmatprep.subr.mxu0 0.0
        %1580 = vmatpush1.msra.mxu0 %v1539
        %1581 = vmatprep.subr.mxu0 0.0
        %1582 = vmatpush1.msra.mxu0 %v1538
        %1583 = vmatprep.subr.mxu0 0.0
        %1584 = vmatpush1.msra.mxu0 %v1537
        %1585 = vmatprep.subr.mxu0 0.0
        %1586 = vmatpush2.msra.mxu0 0.0
        %1587 = vmatprep.subr.mxu0 0.0
        %1588 = vmatpush2.msra.mxu0 0.0
        %1589 = vmatprep.subr.mxu0 0.0
        %1590 = vmatpush2.msra.mxu0 0.0
        %1591 = vmatprep.subr.mxu0 0.0
        %1592 = vmatpush2.msra.mxu0 0.0
        %1593 = vmatprep.subr.mxu0 0.0
        %1594 = vmatpush2.msra.mxu0 0.0
        %1595 = vmatprep.subr.mxu0 0.0
        %1596 = vmatpush2.msra.mxu0 0.0
        %1597 = vmatprep.subr.mxu0 0.0
        %1598 = vmatpush2.msra.mxu0 0.0
        %1599 = vmatprep.subr.mxu0 0.0
        %1600 = vmatpush2.msra.mxu0 0.0
        %1601 = vmatprep.subr.mxu0 0.0
        %1602 = vmatpush2.msra.mxu0 0.0
        %1603 = vmatprep.subr.mxu0 0.0
        %1604 = vmatpush2.msra.mxu0 0.0
        %1605 = vmatprep.subr.mxu0 0.0
        %1606 = vmatpush2.msra.mxu0 0.0
        %1607 = vmatprep.subr.mxu0 0.0
        %1608 = vmatpush2.msra.mxu0 0.0
        %1609 = vmatprep.subr.mxu0 0.0
        %1610 = vmatpush2.msra.mxu0 0.0
        %1611 = vmatprep.subr.mxu0 0.0
        %1612 = vmatpush2.msra.mxu0 0.0
        %1613 = vmatprep.subr.mxu0 0.0
        %1614 = vmatpush2.msra.mxu0 0.0
        %1615 = vmatprep.subr.mxu0 0.0
        %1616 = vmatpush2.msra.mxu0 0.0
        %1617 = vmatprep.mubr.f32.mxu0 0.0
        %1618 = vmatmul.mubr.f32.gmra.mxu0 %v807
        %v1619 = vpop.f32.mrf.mxu0
        %v1620 = vadd.f32 0.0, %v1619
        %v1621 = vpop.f32.mrf.mxu0
        %1622 = vmatprep.mubr.f32.mxu0 0.0
        %1623 = vmatmul.mubr.f32.gmra.mxu0 %v733
        %v1624 = vpop.f32.mrf.mxu0
        %v1625 = vadd.f32 0.0, %v1624
        %v1626 = vpop.f32.mrf.mxu0
        %1627 = vmatprep.mubr.f32.mxu0 0.0
        %1628 = vmatmul.mubr.f32.gmra.mxu0 %v735
        %v1629 = vpop.f32.mrf.mxu0
        %v1630 = vadd.f32 0.0, %v1629
        %v1631 = vpop.f32.mrf.mxu0
        %1632 = vmatprep.mubr.f32.mxu0 0.0
        %1633 = vmatmul.mubr.f32.gmra.mxu0 %v808
        %v1634 = vpop.f32.mrf.mxu0
        %v1635 = vadd.f32 0.0, %v1634
        %v1636 = vpop.f32.mrf.mxu0
        %1637 = vmatprep.mubr.f32.mxu0 0.0
        %1638 = vmatmul.mubr.f32.gmra.mxu0 %v738
        %v1639 = vpop.f32.mrf.mxu0
        %v1640 = vadd.f32 0.0, %v1639
        %v1641 = vpop.f32.mrf.mxu0
        %1642 = vmatprep.mubr.f32.mxu0 0.0
        %1643 = vmatmul.mubr.f32.gmra.mxu0 %v740
        %v1644 = vpop.f32.mrf.mxu0
        %v1645 = vadd.f32 0.0, %v1644
        %v1646 = vpop.f32.mrf.mxu0
        %1647 = vmatprep.mubr.f32.mxu0 0.0
        %1648 = vmatmul.mubr.f32.gmra.mxu0 %v809
        %v1649 = vpop.f32.mrf.mxu0
        %v1650 = vadd.f32 0.0, %v1649
        %v1651 = vpop.f32.mrf.mxu0
        %1652 = vmatprep.mubr.f32.mxu0 0.0
        %1653 = vmatmul.mubr.f32.gmra.mxu0 %v743
        %v1654 = vpop.f32.mrf.mxu0
        %v1655 = vadd.f32 0.0, %v1654
        %v1656 = vpop.f32.mrf.mxu0
        %1657 = vmatprep.mubr.f32.mxu0 0.0
        %1658 = vmatmul.mubr.f32.gmra.mxu0 %v745
        %v1659 = vpop.f32.mrf.mxu0
        %v1660 = vadd.f32 0.0, %v1659
        %v1661 = vpop.f32.mrf.mxu0
        %1662 = vmatprep.mubr.f32.mxu0 0.0
        %1663 = vmatmul.mubr.f32.gmra.mxu0 %v810
        %v1664 = vpop.f32.mrf.mxu0
        %v1665 = vadd.f32 0.0, %v1664
        %v1666 = vpop.f32.mrf.mxu0
        %1667 = vmatprep.mubr.f32.mxu0 0.0
        %1668 = vmatmul.mubr.f32.gmra.mxu0 %v748
        %v1669 = vpop.f32.mrf.mxu0
        %v1670 = vadd.f32 0.0, %v1669
        %v1671 = vpop.f32.mrf.mxu0
        %1672 = vmatprep.mubr.f32.mxu0 0.0
        %1673 = vmatmul.mubr.f32.gmra.mxu0 %v750
        %v1674 = vpop.f32.mrf.mxu0
        %v1675 = vadd.f32 0.0, %v1674
        %v1676 = vpop.f32.mrf.mxu0
        %1677 = vmatprep.mubr.f32.mxu0 0.0
        %1678 = vmatmul.mubr.f32.gmra.mxu0 %v811
        %v1679 = vpop.f32.mrf.mxu0
        %v1680 = vadd.f32 0.0, %v1679
        %v1681 = vpop.f32.mrf.mxu0
        %1682 = vmatprep.mubr.f32.mxu0 0.0
        %1683 = vmatmul.mubr.f32.gmra.mxu0 %v753
        %v1684 = vpop.f32.mrf.mxu0
        %v1685 = vadd.f32 0.0, %v1684
        %v1686 = vpop.f32.mrf.mxu0
        %1687 = vmatprep.mubr.f32.mxu0 0.0
        %1688 = vmatmul.mubr.f32.gmra.mxu0 %v755
        %v1689 = vpop.f32.mrf.mxu0
        %v1690 = vadd.f32 0.0, %v1689
        %v1691 = vpop.f32.mrf.mxu0
        %1692 = vmatprep.mubr.f32.mxu0 0.0
        %1693 = vmatmul.mubr.f32.gmra.mxu0 %v812
        %v1694 = vpop.f32.mrf.mxu0
        %v1695 = vadd.f32 0.0, %v1694
        %v1696 = vpop.f32.mrf.mxu0
        %1697 = vmatprep.mubr.f32.mxu0 0.0
        %1698 = vmatmul.mubr.f32.gmra.mxu0 %v758
        %v1699 = vpop.f32.mrf.mxu0
        %v1700 = vadd.f32 0.0, %v1699
        %v1701 = vpop.f32.mrf.mxu0
        %1702 = vmatprep.mubr.f32.mxu0 0.0
        %1703 = vmatmul.mubr.f32.gmra.mxu0 %v760
        %v1704 = vpop.f32.mrf.mxu0
        %v1705 = vadd.f32 0.0, %v1704
        %v1706 = vpop.f32.mrf.mxu0
        %1707 = vmatprep.mubr.f32.mxu0 0.0
        %1708 = vmatmul.mubr.f32.gmra.mxu0 %v813
        %v1709 = vpop.f32.mrf.mxu0
        %v1710 = vadd.f32 0.0, %v1709
        %v1711 = vpop.f32.mrf.mxu0
        %1712 = vmatprep.mubr.f32.mxu0 0.0
        %1713 = vmatmul.mubr.f32.gmra.mxu0 %v763
        %v1714 = vpop.f32.mrf.mxu0
        %v1715 = vadd.f32 0.0, %v1714
        %v1716 = vpop.f32.mrf.mxu0
        %1717 = vmatprep.mubr.f32.mxu0 0.0
        %1718 = vmatmul.mubr.f32.gmra.mxu0 %v765
        %v1719 = vpop.f32.mrf.mxu0
        %v1720 = vadd.f32 0.0, %v1719
        %v1721 = vpop.f32.mrf.mxu0
        %1722 = vmatprep.mubr.f32.mxu0 0.0
        %1723 = vmatmul.mubr.f32.gmra.mxu0 %v814
        %v1724 = vpop.f32.mrf.mxu0
        %v1725 = vadd.f32 0.0, %v1724
        %v1726 = vpop.f32.mrf.mxu0
        %1727 = vmatprep.mubr.f32.mxu0 0.0
        %1728 = vmatmul.mubr.f32.gmra.mxu0 %v768
        %v1729 = vpop.f32.mrf.mxu0
        %v1730 = vadd.f32 0.0, %v1729
        %v1731 = vpop.f32.mrf.mxu0
        %1732 = vmatprep.mubr.f32.mxu0 0.0
        %1733 = vmatmul.mubr.f32.gmra.mxu0 %v770
        %v1734 = vpop.f32.mrf.mxu0
        %v1735 = vadd.f32 0.0, %v1734
        %v1736 = vpop.f32.mrf.mxu0
        %1737 = vdwg.mxu0
        %v1738 = vadd.f32 %v1512, %v1620
        %v1739 = vadd.f32 %v1513, %v1625
        %v1740 = vadd.f32 %v1514, %v1630
        %v1741 = vadd.f32 %v1515, %v1635
        %v1742 = vadd.f32 %v1516, %v1640
        %v1743 = vadd.f32 %v1517, %v1645
        %v1744 = vadd.f32 %v1518, %v1650
        %v1745 = vadd.f32 %v1519, %v1655
        %v1746 = vadd.f32 %v1520, %v1660
        %v1747 = vadd.f32 %v1521, %v1665
        %v1748 = vadd.f32 %v1522, %v1670
        %v1749 = vadd.f32 %v1523, %v1675
        %v1750 = vadd.f32 %v1524, %v1680
        %v1751 = vadd.f32 %v1525, %v1685
        %v1752 = vadd.f32 %v1526, %v1690
        %v1753 = vadd.f32 %v1527, %v1695
        %v1754 = vadd.f32 %v1528, %v1700
        %v1755 = vadd.f32 %v1529, %v1705
        %v1756 = vadd.f32 %v1530, %v1710
        %v1757 = vadd.f32 %v1531, %v1715
        %v1758 = vadd.f32 %v1532, %v1720
        %v1759 = vadd.f32 %v1533, %v1725
        %v1760 = vadd.f32 %v1534, %v1730
        %v1761 = vadd.f32 %v1535, %v1735
        %s1762 = scalar_lea.vmem [#allocation8], 512
        %v1763 = vld [vmem:[%s1762] sm:$0xff]
        %v1764 = vld [vmem:[%s1762 + $0x8] sm:$0xff]
        %v1765 = vld [vmem:[%s1762 + $0x10] sm:$0xff]
        %v1766 = vld [vmem:[%s1762 + $0x18] sm:$0xff]
        %v1767 = vld [vmem:[%s1762 + $0x20] sm:$0xff]
        %v1768 = vld [vmem:[%s1762 + $0x28] sm:$0xff]
        %v1769 = vld [vmem:[%s1762 + $0x30] sm:$0xff]
        %v1770 = vld [vmem:[%s1762 + $0x38] sm:$0xff]
        %v1771 = vld [vmem:[%s1762 + $0x40] sm:$0xff]
        %v1772 = vld [vmem:[%s1762 + $0x48] sm:$0xff]
        %v1773 = vld [vmem:[%s1762 + $0x50] sm:$0xff]
        %v1774 = vld [vmem:[%s1762 + $0x58] sm:$0xff]
        %v1775 = vld [vmem:[%s1762 + $0x60] sm:$0xff]
        %v1776 = vld [vmem:[%s1762 + $0x68] sm:$0xff]
        %v1777 = vld [vmem:[%s1762 + $0x70] sm:$0xff]
        %v1778 = vld [vmem:[%s1762 + $0x78] sm:$0xff]
        %1779 = vmatprep.subr.mxu0 0.0
        %1780 = vmatpush1.msra.mxu0 %v1778
        %1781 = vmatprep.subr.mxu0 0.0
        %1782 = vmatpush1.msra.mxu0 %v1777
        %1783 = vmatprep.subr.mxu0 0.0
        %1784 = vmatpush1.msra.mxu0 %v1776
        %1785 = vmatprep.subr.mxu0 0.0
        %1786 = vmatpush1.msra.mxu0 %v1775
        %1787 = vmatprep.subr.mxu0 0.0
        %1788 = vmatpush1.msra.mxu0 %v1774
        %1789 = vmatprep.subr.mxu0 0.0
        %1790 = vmatpush1.msra.mxu0 %v1773
        %1791 = vmatprep.subr.mxu0 0.0
        %1792 = vmatpush1.msra.mxu0 %v1772
        %1793 = vmatprep.subr.mxu0 0.0
        %1794 = vmatpush1.msra.mxu0 %v1771
        %1795 = vmatprep.subr.mxu0 0.0
        %1796 = vmatpush1.msra.mxu0 %v1770
        %1797 = vmatprep.subr.mxu0 0.0
        %1798 = vmatpush1.msra.mxu0 %v1769
        %1799 = vmatprep.subr.mxu0 0.0
        %1800 = vmatpush1.msra.mxu0 %v1768
        %1801 = vmatprep.subr.mxu0 0.0
        %1802 = vmatpush1.msra.mxu0 %v1767
        %1803 = vmatprep.subr.mxu0 0.0
        %1804 = vmatpush1.msra.mxu0 %v1766
        %1805 = vmatprep.subr.mxu0 0.0
        %1806 = vmatpush1.msra.mxu0 %v1765
        %1807 = vmatprep.subr.mxu0 0.0
        %1808 = vmatpush1.msra.mxu0 %v1764
        %1809 = vmatprep.subr.mxu0 0.0
        %1810 = vmatpush1.msra.mxu0 %v1763
        %1811 = vmatprep.subr.mxu0 0.0
        %1812 = vmatpush2.msra.mxu0 0.0
        %1813 = vmatprep.subr.mxu0 0.0
        %1814 = vmatpush2.msra.mxu0 0.0
        %1815 = vmatprep.subr.mxu0 0.0
        %1816 = vmatpush2.msra.mxu0 0.0
        %1817 = vmatprep.subr.mxu0 0.0
        %1818 = vmatpush2.msra.mxu0 0.0
        %1819 = vmatprep.subr.mxu0 0.0
        %1820 = vmatpush2.msra.mxu0 0.0
        %1821 = vmatprep.subr.mxu0 0.0
        %1822 = vmatpush2.msra.mxu0 0.0
        %1823 = vmatprep.subr.mxu0 0.0
        %1824 = vmatpush2.msra.mxu0 0.0
        %1825 = vmatprep.subr.mxu0 0.0
        %1826 = vmatpush2.msra.mxu0 0.0
        %1827 = vmatprep.subr.mxu0 0.0
        %1828 = vmatpush2.msra.mxu0 0.0
        %1829 = vmatprep.subr.mxu0 0.0
        %1830 = vmatpush2.msra.mxu0 0.0
        %1831 = vmatprep.subr.mxu0 0.0
        %1832 = vmatpush2.msra.mxu0 0.0
        %1833 = vmatprep.subr.mxu0 0.0
        %1834 = vmatpush2.msra.mxu0 0.0
        %1835 = vmatprep.subr.mxu0 0.0
        %1836 = vmatpush2.msra.mxu0 0.0
        %1837 = vmatprep.subr.mxu0 0.0
        %1838 = vmatpush2.msra.mxu0 0.0
        %1839 = vmatprep.subr.mxu0 0.0
        %1840 = vmatpush2.msra.mxu0 0.0
        %1841 = vmatprep.subr.mxu0 0.0
        %1842 = vmatpush2.msra.mxu0 0.0
        %1843 = vmatprep.mubr.f32.mxu0 0.0
        %1844 = vmatmul.mubr.f32.gmra.mxu0 %v668
        %v1845 = vpop.f32.mrf.mxu0
        %v1846 = vadd.f32 0.0, %v1845
        %v1847 = vpop.f32.mrf.mxu0
        %1848 = vmatprep.mubr.f32.mxu0 0.0
        %1849 = vmatmul.mubr.f32.gmra.mxu0 %v669
        %v1850 = vpop.f32.mrf.mxu0
        %v1851 = vadd.f32 0.0, %v1850
        %v1852 = vpop.f32.mrf.mxu0
        %1853 = vmatprep.mubr.f32.mxu0 0.0
        %1854 = vmatmul.mubr.f32.gmra.mxu0 %v670
        %v1855 = vpop.f32.mrf.mxu0
        %v1856 = vadd.f32 0.0, %v1855
        %v1857 = vpop.f32.mrf.mxu0
        %1858 = vmatprep.mubr.f32.mxu0 0.0
        %1859 = vmatmul.mubr.f32.gmra.mxu0 %v671
        %v1860 = vpop.f32.mrf.mxu0
        %v1861 = vadd.f32 0.0, %v1860
        %v1862 = vpop.f32.mrf.mxu0
        %1863 = vmatprep.mubr.f32.mxu0 0.0
        %1864 = vmatmul.mubr.f32.gmra.mxu0 %v672
        %v1865 = vpop.f32.mrf.mxu0
        %v1866 = vadd.f32 0.0, %v1865
        %v1867 = vpop.f32.mrf.mxu0
        %1868 = vmatprep.mubr.f32.mxu0 0.0
        %1869 = vmatmul.mubr.f32.gmra.mxu0 %v673
        %v1870 = vpop.f32.mrf.mxu0
        %v1871 = vadd.f32 0.0, %v1870
        %v1872 = vpop.f32.mrf.mxu0
        %1873 = vmatprep.mubr.f32.mxu0 0.0
        %1874 = vmatmul.mubr.f32.gmra.mxu0 %v674
        %v1875 = vpop.f32.mrf.mxu0
        %v1876 = vadd.f32 0.0, %v1875
        %v1877 = vpop.f32.mrf.mxu0
        %1878 = vmatprep.mubr.f32.mxu0 0.0
        %1879 = vmatmul.mubr.f32.gmra.mxu0 %v675
        %v1880 = vpop.f32.mrf.mxu0
        %v1881 = vadd.f32 0.0, %v1880
        %v1882 = vpop.f32.mrf.mxu0
        %1883 = vmatprep.mubr.f32.mxu0 0.0
        %1884 = vmatmul.mubr.f32.gmra.mxu0 %v676
        %v1885 = vpop.f32.mrf.mxu0
        %v1886 = vadd.f32 0.0, %v1885
        %v1887 = vpop.f32.mrf.mxu0
        %1888 = vmatprep.mubr.f32.mxu0 0.0
        %1889 = vmatmul.mubr.f32.gmra.mxu0 %v677
        %v1890 = vpop.f32.mrf.mxu0
        %v1891 = vadd.f32 0.0, %v1890
        %v1892 = vpop.f32.mrf.mxu0
        %1893 = vmatprep.mubr.f32.mxu0 0.0
        %1894 = vmatmul.mubr.f32.gmra.mxu0 %v678
        %v1895 = vpop.f32.mrf.mxu0
        %v1896 = vadd.f32 0.0, %v1895
        %v1897 = vpop.f32.mrf.mxu0
        %1898 = vmatprep.mubr.f32.mxu0 0.0
        %1899 = vmatmul.mubr.f32.gmra.mxu0 %v679
        %v1900 = vpop.f32.mrf.mxu0
        %v1901 = vadd.f32 0.0, %v1900
        %v1902 = vpop.f32.mrf.mxu0
        %1903 = vmatprep.mubr.f32.mxu0 0.0
        %1904 = vmatmul.mubr.f32.gmra.mxu0 %v680
        %v1905 = vpop.f32.mrf.mxu0
        %v1906 = vadd.f32 0.0, %v1905
        %v1907 = vpop.f32.mrf.mxu0
        %1908 = vmatprep.mubr.f32.mxu0 0.0
        %1909 = vmatmul.mubr.f32.gmra.mxu0 %v681
        %v1910 = vpop.f32.mrf.mxu0
        %v1911 = vadd.f32 0.0, %v1910
        %v1912 = vpop.f32.mrf.mxu0
        %1913 = vmatprep.mubr.f32.mxu0 0.0
        %1914 = vmatmul.mubr.f32.gmra.mxu0 %v682
        %v1915 = vpop.f32.mrf.mxu0
        %v1916 = vadd.f32 0.0, %v1915
        %v1917 = vpop.f32.mrf.mxu0
        %1918 = vmatprep.mubr.f32.mxu0 0.0
        %1919 = vmatmul.mubr.f32.gmra.mxu0 %v683
        %v1920 = vpop.f32.mrf.mxu0
        %v1921 = vadd.f32 0.0, %v1920
        %v1922 = vpop.f32.mrf.mxu0
        %1923 = vmatprep.mubr.f32.mxu0 0.0
        %1924 = vmatmul.mubr.f32.gmra.mxu0 %v684
        %v1925 = vpop.f32.mrf.mxu0
        %v1926 = vadd.f32 0.0, %v1925
        %v1927 = vpop.f32.mrf.mxu0
        %1928 = vmatprep.mubr.f32.mxu0 0.0
        %1929 = vmatmul.mubr.f32.gmra.mxu0 %v685
        %v1930 = vpop.f32.mrf.mxu0
        %v1931 = vadd.f32 0.0, %v1930
        %v1932 = vpop.f32.mrf.mxu0
        %1933 = vmatprep.mubr.f32.mxu0 0.0
        %1934 = vmatmul.mubr.f32.gmra.mxu0 %v686
        %v1935 = vpop.f32.mrf.mxu0
        %v1936 = vadd.f32 0.0, %v1935
        %v1937 = vpop.f32.mrf.mxu0
        %1938 = vmatprep.mubr.f32.mxu0 0.0
        %1939 = vmatmul.mubr.f32.gmra.mxu0 %v687
        %v1940 = vpop.f32.mrf.mxu0
        %v1941 = vadd.f32 0.0, %v1940
        %v1942 = vpop.f32.mrf.mxu0
        %1943 = vmatprep.mubr.f32.mxu0 0.0
        %1944 = vmatmul.mubr.f32.gmra.mxu0 %v688
        %v1945 = vpop.f32.mrf.mxu0
        %v1946 = vadd.f32 0.0, %v1945
        %v1947 = vpop.f32.mrf.mxu0
        %1948 = vmatprep.mubr.f32.mxu0 0.0
        %1949 = vmatmul.mubr.f32.gmra.mxu0 %v689
        %v1950 = vpop.f32.mrf.mxu0
        %v1951 = vadd.f32 0.0, %v1950
        %v1952 = vpop.f32.mrf.mxu0
        %1953 = vmatprep.mubr.f32.mxu0 0.0
        %1954 = vmatmul.mubr.f32.gmra.mxu0 %v690
        %v1955 = vpop.f32.mrf.mxu0
        %v1956 = vadd.f32 0.0, %v1955
        %v1957 = vpop.f32.mrf.mxu0
        %1958 = vmatprep.mubr.f32.mxu0 0.0
        %1959 = vmatmul.mubr.f32.gmra.mxu0 %v691
        %v1960 = vpop.f32.mrf.mxu0
        %v1961 = vadd.f32 0.0, %v1960
        %v1962 = vpop.f32.mrf.mxu0
        %1963 = vdwg.mxu0
        %v1964 = vadd.f32 %v1738, %v1846
        %v1965 = vadd.f32 %v1739, %v1851
        %v1966 = vadd.f32 %v1740, %v1856
        %v1967 = vadd.f32 %v1741, %v1861
        %v1968 = vadd.f32 %v1742, %v1866
        %v1969 = vadd.f32 %v1743, %v1871
        %v1970 = vadd.f32 %v1744, %v1876
        %v1971 = vadd.f32 %v1745, %v1881
        %v1972 = vadd.f32 %v1746, %v1886
        %v1973 = vadd.f32 %v1747, %v1891
        %v1974 = vadd.f32 %v1748, %v1896
        %v1975 = vadd.f32 %v1749, %v1901
        %v1976 = vadd.f32 %v1750, %v1906
        %v1977 = vadd.f32 %v1751, %v1911
        %v1978 = vadd.f32 %v1752, %v1916
        %v1979 = vadd.f32 %v1753, %v1921
        %v1980 = vadd.f32 %v1754, %v1926
        %v1981 = vadd.f32 %v1755, %v1931
        %v1982 = vadd.f32 %v1756, %v1936
        %v1983 = vadd.f32 %v1757, %v1941
        %v1984 = vadd.f32 %v1758, %v1946
        %v1985 = vadd.f32 %v1759, %v1951
        %v1986 = vadd.f32 %v1760, %v1956
        %v1987 = vadd.f32 %v1761, %v1961
        %s1988 = scalar_lea.vmem [#allocation8], 640
        %v1989 = vld [vmem:[%s1988] sm:$0xff]
        %v1990 = vld [vmem:[%s1988 + $0x8] sm:$0xff]
        %v1991 = vld [vmem:[%s1988 + $0x10] sm:$0xff]
        %v1992 = vld [vmem:[%s1988 + $0x18] sm:$0xff]
        %v1993 = vld [vmem:[%s1988 + $0x20] sm:$0xff]
        %v1994 = vld [vmem:[%s1988 + $0x28] sm:$0xff]
        %v1995 = vld [vmem:[%s1988 + $0x30] sm:$0xff]
        %v1996 = vld [vmem:[%s1988 + $0x38] sm:$0xff]
        %v1997 = vld [vmem:[%s1988 + $0x40] sm:$0xff]
        %v1998 = vld [vmem:[%s1988 + $0x48] sm:$0xff]
        %v1999 = vld [vmem:[%s1988 + $0x50] sm:$0xff]
        %v2000 = vld [vmem:[%s1988 + $0x58] sm:$0xff]
        %v2001 = vld [vmem:[%s1988 + $0x60] sm:$0xff]
        %v2002 = vld [vmem:[%s1988 + $0x68] sm:$0xff]
        %v2003 = vld [vmem:[%s1988 + $0x70] sm:$0xff]
        %v2004 = vld [vmem:[%s1988 + $0x78] sm:$0xff]
        %2005 = vmatprep.subr.mxu0 0.0
        %2006 = vmatpush1.msra.mxu0 %v2004
        %2007 = vmatprep.subr.mxu0 0.0
        %2008 = vmatpush1.msra.mxu0 %v2003
        %2009 = vmatprep.subr.mxu0 0.0
        %2010 = vmatpush1.msra.mxu0 %v2002
        %2011 = vmatprep.subr.mxu0 0.0
        %2012 = vmatpush1.msra.mxu0 %v2001
        %2013 = vmatprep.subr.mxu0 0.0
        %2014 = vmatpush1.msra.mxu0 %v2000
        %2015 = vmatprep.subr.mxu0 0.0
        %2016 = vmatpush1.msra.mxu0 %v1999
        %2017 = vmatprep.subr.mxu0 0.0
        %2018 = vmatpush1.msra.mxu0 %v1998
        %2019 = vmatprep.subr.mxu0 0.0
        %2020 = vmatpush1.msra.mxu0 %v1997
        %2021 = vmatprep.subr.mxu0 0.0
        %2022 = vmatpush1.msra.mxu0 %v1996
        %2023 = vmatprep.subr.mxu0 0.0
        %2024 = vmatpush1.msra.mxu0 %v1995
        %2025 = vmatprep.subr.mxu0 0.0
        %2026 = vmatpush1.msra.mxu0 %v1994
        %2027 = vmatprep.subr.mxu0 0.0
        %2028 = vmatpush1.msra.mxu0 %v1993
        %2029 = vmatprep.subr.mxu0 0.0
        %2030 = vmatpush1.msra.mxu0 %v1992
        %2031 = vmatprep.subr.mxu0 0.0
        %2032 = vmatpush1.msra.mxu0 %v1991
        %2033 = vmatprep.subr.mxu0 0.0
        %2034 = vmatpush1.msra.mxu0 %v1990
        %2035 = vmatprep.subr.mxu0 0.0
        %2036 = vmatpush1.msra.mxu0 %v1989
        %2037 = vmatprep.subr.mxu0 0.0
        %2038 = vmatpush2.msra.mxu0 0.0
        %2039 = vmatprep.subr.mxu0 0.0
        %2040 = vmatpush2.msra.mxu0 0.0
        %2041 = vmatprep.subr.mxu0 0.0
        %2042 = vmatpush2.msra.mxu0 0.0
        %2043 = vmatprep.subr.mxu0 0.0
        %2044 = vmatpush2.msra.mxu0 0.0
        %2045 = vmatprep.subr.mxu0 0.0
        %2046 = vmatpush2.msra.mxu0 0.0
        %2047 = vmatprep.subr.mxu0 0.0
        %2048 = vmatpush2.msra.mxu0 0.0
        %2049 = vmatprep.subr.mxu0 0.0
        %2050 = vmatpush2.msra.mxu0 0.0
        %2051 = vmatprep.subr.mxu0 0.0
        %2052 = vmatpush2.msra.mxu0 0.0
        %2053 = vmatprep.subr.mxu0 0.0
        %2054 = vmatpush2.msra.mxu0 0.0
        %2055 = vmatprep.subr.mxu0 0.0
        %2056 = vmatpush2.msra.mxu0 0.0
        %2057 = vmatprep.subr.mxu0 0.0
        %2058 = vmatpush2.msra.mxu0 0.0
        %2059 = vmatprep.subr.mxu0 0.0
        %2060 = vmatpush2.msra.mxu0 0.0
        %2061 = vmatprep.subr.mxu0 0.0
        %2062 = vmatpush2.msra.mxu0 0.0
        %2063 = vmatprep.subr.mxu0 0.0
        %2064 = vmatpush2.msra.mxu0 0.0
        %2065 = vmatprep.subr.mxu0 0.0
        %2066 = vmatpush2.msra.mxu0 0.0
        %2067 = vmatprep.subr.mxu0 0.0
        %2068 = vmatpush2.msra.mxu0 0.0
        %2069 = vmatprep.mubr.f32.mxu0 0.0
        %2070 = vmatmul.mubr.f32.gmra.mxu0 %v824
        %v2071 = vpop.f32.mrf.mxu0
        %v2072 = vadd.f32 0.0, %v2071
        %v2073 = vpop.f32.mrf.mxu0
        %2074 = vmatprep.mubr.f32.mxu0 0.0
        %2075 = vmatmul.mubr.f32.gmra.mxu0 %v826
        %v2076 = vpop.f32.mrf.mxu0
        %v2077 = vadd.f32 0.0, %v2076
        %v2078 = vpop.f32.mrf.mxu0
        %2079 = vmatprep.mubr.f32.mxu0 0.0
        %2080 = vmatmul.mubr.f32.gmra.mxu0 %v898
        %v2081 = vpop.f32.mrf.mxu0
        %v2082 = vadd.f32 0.0, %v2081
        %v2083 = vpop.f32.mrf.mxu0
        %2084 = vmatprep.mubr.f32.mxu0 0.0
        %2085 = vmatmul.mubr.f32.gmra.mxu0 %v829
        %v2086 = vpop.f32.mrf.mxu0
        %v2087 = vadd.f32 0.0, %v2086
        %v2088 = vpop.f32.mrf.mxu0
        %2089 = vmatprep.mubr.f32.mxu0 0.0
        %2090 = vmatmul.mubr.f32.gmra.mxu0 %v831
        %v2091 = vpop.f32.mrf.mxu0
        %v2092 = vadd.f32 0.0, %v2091
        %v2093 = vpop.f32.mrf.mxu0
        %2094 = vmatprep.mubr.f32.mxu0 0.0
        %2095 = vmatmul.mubr.f32.gmra.mxu0 %v899
        %v2096 = vpop.f32.mrf.mxu0
        %v2097 = vadd.f32 0.0, %v2096
        %v2098 = vpop.f32.mrf.mxu0
        %2099 = vmatprep.mubr.f32.mxu0 0.0
        %2100 = vmatmul.mubr.f32.gmra.mxu0 %v834
        %v2101 = vpop.f32.mrf.mxu0
        %v2102 = vadd.f32 0.0, %v2101
        %v2103 = vpop.f32.mrf.mxu0
        %2104 = vmatprep.mubr.f32.mxu0 0.0
        %2105 = vmatmul.mubr.f32.gmra.mxu0 %v836
        %v2106 = vpop.f32.mrf.mxu0
        %v2107 = vadd.f32 0.0, %v2106
        %v2108 = vpop.f32.mrf.mxu0
        %2109 = vmatprep.mubr.f32.mxu0 0.0
        %2110 = vmatmul.mubr.f32.gmra.mxu0 %v900
        %v2111 = vpop.f32.mrf.mxu0
        %v2112 = vadd.f32 0.0, %v2111
        %v2113 = vpop.f32.mrf.mxu0
        %2114 = vmatprep.mubr.f32.mxu0 0.0
        %2115 = vmatmul.mubr.f32.gmra.mxu0 %v839
        %v2116 = vpop.f32.mrf.mxu0
        %v2117 = vadd.f32 0.0, %v2116
        %v2118 = vpop.f32.mrf.mxu0
        %2119 = vmatprep.mubr.f32.mxu0 0.0
        %2120 = vmatmul.mubr.f32.gmra.mxu0 %v841
        %v2121 = vpop.f32.mrf.mxu0
        %v2122 = vadd.f32 0.0, %v2121
        %v2123 = vpop.f32.mrf.mxu0
        %2124 = vmatprep.mubr.f32.mxu0 0.0
        %2125 = vmatmul.mubr.f32.gmra.mxu0 %v901
        %v2126 = vpop.f32.mrf.mxu0
        %v2127 = vadd.f32 0.0, %v2126
        %v2128 = vpop.f32.mrf.mxu0
        %2129 = vmatprep.mubr.f32.mxu0 0.0
        %2130 = vmatmul.mubr.f32.gmra.mxu0 %v844
        %v2131 = vpop.f32.mrf.mxu0
        %v2132 = vadd.f32 0.0, %v2131
        %v2133 = vpop.f32.mrf.mxu0
        %2134 = vmatprep.mubr.f32.mxu0 0.0
        %2135 = vmatmul.mubr.f32.gmra.mxu0 %v846
        %v2136 = vpop.f32.mrf.mxu0
        %v2137 = vadd.f32 0.0, %v2136
        %v2138 = vpop.f32.mrf.mxu0
        %2139 = vmatprep.mubr.f32.mxu0 0.0
        %2140 = vmatmul.mubr.f32.gmra.mxu0 %v902
        %v2141 = vpop.f32.mrf.mxu0
        %v2142 = vadd.f32 0.0, %v2141
        %v2143 = vpop.f32.mrf.mxu0
        %2144 = vmatprep.mubr.f32.mxu0 0.0
        %2145 = vmatmul.mubr.f32.gmra.mxu0 %v849
        %v2146 = vpop.f32.mrf.mxu0
        %v2147 = vadd.f32 0.0, %v2146
        %v2148 = vpop.f32.mrf.mxu0
        %2149 = vmatprep.mubr.f32.mxu0 0.0
        %2150 = vmatmul.mubr.f32.gmra.mxu0 %v851
        %v2151 = vpop.f32.mrf.mxu0
        %v2152 = vadd.f32 0.0, %v2151
        %v2153 = vpop.f32.mrf.mxu0
        %2154 = vmatprep.mubr.f32.mxu0 0.0
        %2155 = vmatmul.mubr.f32.gmra.mxu0 %v903
        %v2156 = vpop.f32.mrf.mxu0
        %v2157 = vadd.f32 0.0, %v2156
        %v2158 = vpop.f32.mrf.mxu0
        %2159 = vmatprep.mubr.f32.mxu0 0.0
        %2160 = vmatmul.mubr.f32.gmra.mxu0 %v854
        %v2161 = vpop.f32.mrf.mxu0
        %v2162 = vadd.f32 0.0, %v2161
        %v2163 = vpop.f32.mrf.mxu0
        %2164 = vmatprep.mubr.f32.mxu0 0.0
        %2165 = vmatmul.mubr.f32.gmra.mxu0 %v856
        %v2166 = vpop.f32.mrf.mxu0
        %v2167 = vadd.f32 0.0, %v2166
        %v2168 = vpop.f32.mrf.mxu0
        %2169 = vmatprep.mubr.f32.mxu0 0.0
        %2170 = vmatmul.mubr.f32.gmra.mxu0 %v904
        %v2171 = vpop.f32.mrf.mxu0
        %v2172 = vadd.f32 0.0, %v2171
        %v2173 = vpop.f32.mrf.mxu0
        %2174 = vmatprep.mubr.f32.mxu0 0.0
        %2175 = vmatmul.mubr.f32.gmra.mxu0 %v859
        %v2176 = vpop.f32.mrf.mxu0
        %v2177 = vadd.f32 0.0, %v2176
        %v2178 = vpop.f32.mrf.mxu0
        %2179 = vmatprep.mubr.f32.mxu0 0.0
        %2180 = vmatmul.mubr.f32.gmra.mxu0 %v861
        %v2181 = vpop.f32.mrf.mxu0
        %v2182 = vadd.f32 0.0, %v2181
        %v2183 = vpop.f32.mrf.mxu0
        %2184 = vmatprep.mubr.f32.mxu0 0.0
        %2185 = vmatmul.mubr.f32.gmra.mxu0 %v905
        %v2186 = vpop.f32.mrf.mxu0
        %v2187 = vadd.f32 0.0, %v2186
        %v2188 = vpop.f32.mrf.mxu0
        %2189 = vdwg.mxu0
        %v2190 = vadd.f32 %v1964, %v2072
        %v2191 = vadd.f32 %v1965, %v2077
        %v2192 = vadd.f32 %v1966, %v2082
        %v2193 = vadd.f32 %v1967, %v2087
        %v2194 = vadd.f32 %v1968, %v2092
        %v2195 = vadd.f32 %v1969, %v2097
        %v2196 = vadd.f32 %v1970, %v2102
        %v2197 = vadd.f32 %v1971, %v2107
        %v2198 = vadd.f32 %v1972, %v2112
        %v2199 = vadd.f32 %v1973, %v2117
        %v2200 = vadd.f32 %v1974, %v2122
        %v2201 = vadd.f32 %v1975, %v2127
        %v2202 = vadd.f32 %v1976, %v2132
        %v2203 = vadd.f32 %v1977, %v2137
        %v2204 = vadd.f32 %v1978, %v2142
        %v2205 = vadd.f32 %v1979, %v2147
        %v2206 = vadd.f32 %v1980, %v2152
        %v2207 = vadd.f32 %v1981, %v2157
        %v2208 = vadd.f32 %v1982, %v2162
        %v2209 = vadd.f32 %v1983, %v2167
        %v2210 = vadd.f32 %v1984, %v2172
        %v2211 = vadd.f32 %v1985, %v2177
        %v2212 = vadd.f32 %v1986, %v2182
        %v2213 = vadd.f32 %v1987, %v2187
        %s2214 = scalar_lea.vmem [#allocation8], 768
        %v2215 = vld [vmem:[%s2214] sm:$0xff]
        %v2216 = vld [vmem:[%s2214 + $0x8] sm:$0xff]
        %v2217 = vld [vmem:[%s2214 + $0x10] sm:$0xff]
        %v2218 = vld [vmem:[%s2214 + $0x18] sm:$0xff]
        %v2219 = vld [vmem:[%s2214 + $0x20] sm:$0xff]
        %v2220 = vld [vmem:[%s2214 + $0x28] sm:$0xff]
        %v2221 = vld [vmem:[%s2214 + $0x30] sm:$0xff]
        %v2222 = vld [vmem:[%s2214 + $0x38] sm:$0xff]
        %v2223 = vld [vmem:[%s2214 + $0x40] sm:$0xff]
        %v2224 = vld [vmem:[%s2214 + $0x48] sm:$0xff]
        %v2225 = vld [vmem:[%s2214 + $0x50] sm:$0xff]
        %v2226 = vld [vmem:[%s2214 + $0x58] sm:$0xff]
        %v2227 = vld [vmem:[%s2214 + $0x60] sm:$0xff]
        %v2228 = vld [vmem:[%s2214 + $0x68] sm:$0xff]
        %v2229 = vld [vmem:[%s2214 + $0x70] sm:$0xff]
        %v2230 = vld [vmem:[%s2214 + $0x78] sm:$0xff]
        %2231 = vmatprep.subr.mxu0 0.0
        %2232 = vmatpush1.msra.mxu0 %v2230
        %2233 = vmatprep.subr.mxu0 0.0
        %2234 = vmatpush1.msra.mxu0 %v2229
        %2235 = vmatprep.subr.mxu0 0.0
        %2236 = vmatpush1.msra.mxu0 %v2228
        %2237 = vmatprep.subr.mxu0 0.0
        %2238 = vmatpush1.msra.mxu0 %v2227
        %2239 = vmatprep.subr.mxu0 0.0
        %2240 = vmatpush1.msra.mxu0 %v2226
        %2241 = vmatprep.subr.mxu0 0.0
        %2242 = vmatpush1.msra.mxu0 %v2225
        %2243 = vmatprep.subr.mxu0 0.0
        %2244 = vmatpush1.msra.mxu0 %v2224
        %2245 = vmatprep.subr.mxu0 0.0
        %2246 = vmatpush1.msra.mxu0 %v2223
        %2247 = vmatprep.subr.mxu0 0.0
        %2248 = vmatpush1.msra.mxu0 %v2222
        %2249 = vmatprep.subr.mxu0 0.0
        %2250 = vmatpush1.msra.mxu0 %v2221
        %2251 = vmatprep.subr.mxu0 0.0
        %2252 = vmatpush1.msra.mxu0 %v2220
        %2253 = vmatprep.subr.mxu0 0.0
        %2254 = vmatpush1.msra.mxu0 %v2219
        %2255 = vmatprep.subr.mxu0 0.0
        %2256 = vmatpush1.msra.mxu0 %v2218
        %2257 = vmatprep.subr.mxu0 0.0
        %2258 = vmatpush1.msra.mxu0 %v2217
        %2259 = vmatprep.subr.mxu0 0.0
        %2260 = vmatpush1.msra.mxu0 %v2216
        %2261 = vmatprep.subr.mxu0 0.0
        %2262 = vmatpush1.msra.mxu0 %v2215
        %2263 = vmatprep.subr.mxu0 0.0
        %2264 = vmatpush2.msra.mxu0 0.0
        %2265 = vmatprep.subr.mxu0 0.0
        %2266 = vmatpush2.msra.mxu0 0.0
        %2267 = vmatprep.subr.mxu0 0.0
        %2268 = vmatpush2.msra.mxu0 0.0
        %2269 = vmatprep.subr.mxu0 0.0
        %2270 = vmatpush2.msra.mxu0 0.0
        %2271 = vmatprep.subr.mxu0 0.0
        %2272 = vmatpush2.msra.mxu0 0.0
        %2273 = vmatprep.subr.mxu0 0.0
        %2274 = vmatpush2.msra.mxu0 0.0
        %2275 = vmatprep.subr.mxu0 0.0
        %2276 = vmatpush2.msra.mxu0 0.0
        %2277 = vmatprep.subr.mxu0 0.0
        %2278 = vmatpush2.msra.mxu0 0.0
        %2279 = vmatprep.subr.mxu0 0.0
        %2280 = vmatpush2.msra.mxu0 0.0
        %2281 = vmatprep.subr.mxu0 0.0
        %2282 = vmatpush2.msra.mxu0 0.0
        %2283 = vmatprep.subr.mxu0 0.0
        %2284 = vmatpush2.msra.mxu0 0.0
        %2285 = vmatprep.subr.mxu0 0.0
        %2286 = vmatpush2.msra.mxu0 0.0
        %2287 = vmatprep.subr.mxu0 0.0
        %2288 = vmatpush2.msra.mxu0 0.0
        %2289 = vmatprep.subr.mxu0 0.0
        %2290 = vmatpush2.msra.mxu0 0.0
        %2291 = vmatprep.subr.mxu0 0.0
        %2292 = vmatpush2.msra.mxu0 0.0
        %2293 = vmatprep.subr.mxu0 0.0
        %2294 = vmatpush2.msra.mxu0 0.0
        %2295 = vmatprep.mubr.f32.mxu0 0.0
        %2296 = vmatmul.mubr.f32.gmra.mxu0 %v808
        %v2297 = vpop.f32.mrf.mxu0
        %v2298 = vadd.f32 0.0, %v2297
        %v2299 = vpop.f32.mrf.mxu0
        %2300 = vmatprep.mubr.f32.mxu0 0.0
        %2301 = vmatmul.mubr.f32.gmra.mxu0 %v738
        %v2302 = vpop.f32.mrf.mxu0
        %v2303 = vadd.f32 0.0, %v2302
        %v2304 = vpop.f32.mrf.mxu0
        %2305 = vmatprep.mubr.f32.mxu0 0.0
        %2306 = vmatmul.mubr.f32.gmra.mxu0 %v740
        %v2307 = vpop.f32.mrf.mxu0
        %v2308 = vadd.f32 0.0, %v2307
        %v2309 = vpop.f32.mrf.mxu0
        %2310 = vmatprep.mubr.f32.mxu0 0.0
        %2311 = vmatmul.mubr.f32.gmra.mxu0 %v809
        %v2312 = vpop.f32.mrf.mxu0
        %v2313 = vadd.f32 0.0, %v2312
        %v2314 = vpop.f32.mrf.mxu0
        %2315 = vmatprep.mubr.f32.mxu0 0.0
        %2316 = vmatmul.mubr.f32.gmra.mxu0 %v743
        %v2317 = vpop.f32.mrf.mxu0
        %v2318 = vadd.f32 0.0, %v2317
        %v2319 = vpop.f32.mrf.mxu0
        %2320 = vmatprep.mubr.f32.mxu0 0.0
        %2321 = vmatmul.mubr.f32.gmra.mxu0 %v745
        %v2322 = vpop.f32.mrf.mxu0
        %v2323 = vadd.f32 0.0, %v2322
        %v2324 = vpop.f32.mrf.mxu0
        %2325 = vmatprep.mubr.f32.mxu0 0.0
        %2326 = vmatmul.mubr.f32.gmra.mxu0 %v810
        %v2327 = vpop.f32.mrf.mxu0
        %v2328 = vadd.f32 0.0, %v2327
        %v2329 = vpop.f32.mrf.mxu0
        %2330 = vmatprep.mubr.f32.mxu0 0.0
        %2331 = vmatmul.mubr.f32.gmra.mxu0 %v748
        %v2332 = vpop.f32.mrf.mxu0
        %v2333 = vadd.f32 0.0, %v2332
        %v2334 = vpop.f32.mrf.mxu0
        %2335 = vmatprep.mubr.f32.mxu0 0.0
        %2336 = vmatmul.mubr.f32.gmra.mxu0 %v750
        %v2337 = vpop.f32.mrf.mxu0
        %v2338 = vadd.f32 0.0, %v2337
        %v2339 = vpop.f32.mrf.mxu0
        %2340 = vmatprep.mubr.f32.mxu0 0.0
        %2341 = vmatmul.mubr.f32.gmra.mxu0 %v811
        %v2342 = vpop.f32.mrf.mxu0
        %v2343 = vadd.f32 0.0, %v2342
        %v2344 = vpop.f32.mrf.mxu0
        %2345 = vmatprep.mubr.f32.mxu0 0.0
        %2346 = vmatmul.mubr.f32.gmra.mxu0 %v753
        %v2347 = vpop.f32.mrf.mxu0
        %v2348 = vadd.f32 0.0, %v2347
        %v2349 = vpop.f32.mrf.mxu0
        %2350 = vmatprep.mubr.f32.mxu0 0.0
        %2351 = vmatmul.mubr.f32.gmra.mxu0 %v755
        %v2352 = vpop.f32.mrf.mxu0
        %v2353 = vadd.f32 0.0, %v2352
        %v2354 = vpop.f32.mrf.mxu0
        %2355 = vmatprep.mubr.f32.mxu0 0.0
        %2356 = vmatmul.mubr.f32.gmra.mxu0 %v812
        %v2357 = vpop.f32.mrf.mxu0
        %v2358 = vadd.f32 0.0, %v2357
        %v2359 = vpop.f32.mrf.mxu0
        %2360 = vmatprep.mubr.f32.mxu0 0.0
        %2361 = vmatmul.mubr.f32.gmra.mxu0 %v758
        %v2362 = vpop.f32.mrf.mxu0
        %v2363 = vadd.f32 0.0, %v2362
        %v2364 = vpop.f32.mrf.mxu0
        %2365 = vmatprep.mubr.f32.mxu0 0.0
        %2366 = vmatmul.mubr.f32.gmra.mxu0 %v760
        %v2367 = vpop.f32.mrf.mxu0
        %v2368 = vadd.f32 0.0, %v2367
        %v2369 = vpop.f32.mrf.mxu0
        %2370 = vmatprep.mubr.f32.mxu0 0.0
        %2371 = vmatmul.mubr.f32.gmra.mxu0 %v813
        %v2372 = vpop.f32.mrf.mxu0
        %v2373 = vadd.f32 0.0, %v2372
        %v2374 = vpop.f32.mrf.mxu0
        %2375 = vmatprep.mubr.f32.mxu0 0.0
        %2376 = vmatmul.mubr.f32.gmra.mxu0 %v763
        %v2377 = vpop.f32.mrf.mxu0
        %v2378 = vadd.f32 0.0, %v2377
        %v2379 = vpop.f32.mrf.mxu0
        %2380 = vmatprep.mubr.f32.mxu0 0.0
        %2381 = vmatmul.mubr.f32.gmra.mxu0 %v765
        %v2382 = vpop.f32.mrf.mxu0
        %v2383 = vadd.f32 0.0, %v2382
        %v2384 = vpop.f32.mrf.mxu0
        %2385 = vmatprep.mubr.f32.mxu0 0.0
        %2386 = vmatmul.mubr.f32.gmra.mxu0 %v814
        %v2387 = vpop.f32.mrf.mxu0
        %v2388 = vadd.f32 0.0, %v2387
        %v2389 = vpop.f32.mrf.mxu0
        %2390 = vmatprep.mubr.f32.mxu0 0.0
        %2391 = vmatmul.mubr.f32.gmra.mxu0 %v768
        %v2392 = vpop.f32.mrf.mxu0
        %v2393 = vadd.f32 0.0, %v2392
        %v2394 = vpop.f32.mrf.mxu0
        %2395 = vmatprep.mubr.f32.mxu0 0.0
        %2396 = vmatmul.mubr.f32.gmra.mxu0 %v770
        %v2397 = vpop.f32.mrf.mxu0
        %v2398 = vadd.f32 0.0, %v2397
        %v2399 = vpop.f32.mrf.mxu0
        %2400 = vmatprep.mubr.f32.mxu0 0.0
        %2401 = vmatmul.mubr.f32.gmra.mxu0 %v815
        %v2402 = vpop.f32.mrf.mxu0
        %v2403 = vadd.f32 0.0, %v2402
        %v2404 = vpop.f32.mrf.mxu0
        %2405 = vmatprep.mubr.f32.mxu0 0.0
        %2406 = vmatmul.mubr.f32.gmra.mxu0 %v773
        %v2407 = vpop.f32.mrf.mxu0
        %v2408 = vadd.f32 0.0, %v2407
        %v2409 = vpop.f32.mrf.mxu0
        %2410 = vmatprep.mubr.f32.mxu0 0.0
        %2411 = vmatmul.mubr.f32.gmra.mxu0 %v775
        %v2412 = vpop.f32.mrf.mxu0
        %v2413 = vadd.f32 0.0, %v2412
        %v2414 = vpop.f32.mrf.mxu0
        %2415 = vdwg.mxu0
        %v2416 = vadd.f32 %v2190, %v2298
        %v2417 = vadd.f32 %v2191, %v2303
        %v2418 = vadd.f32 %v2192, %v2308
        %v2419 = vadd.f32 %v2193, %v2313
        %v2420 = vadd.f32 %v2194, %v2318
        %v2421 = vadd.f32 %v2195, %v2323
        %v2422 = vadd.f32 %v2196, %v2328
        %v2423 = vadd.f32 %v2197, %v2333
        %v2424 = vadd.f32 %v2198, %v2338
        %v2425 = vadd.f32 %v2199, %v2343
        %v2426 = vadd.f32 %v2200, %v2348
        %v2427 = vadd.f32 %v2201, %v2353
        %v2428 = vadd.f32 %v2202, %v2358
        %v2429 = vadd.f32 %v2203, %v2363
        %v2430 = vadd.f32 %v2204, %v2368
        %v2431 = vadd.f32 %v2205, %v2373
        %v2432 = vadd.f32 %v2206, %v2378
        %v2433 = vadd.f32 %v2207, %v2383
        %v2434 = vadd.f32 %v2208, %v2388
        %v2435 = vadd.f32 %v2209, %v2393
        %v2436 = vadd.f32 %v2210, %v2398
        %v2437 = vadd.f32 %v2211, %v2403
        %v2438 = vadd.f32 %v2212, %v2408
        %v2439 = vadd.f32 %v2213, %v2413
        %s2440 = scalar_lea.vmem [#allocation8], 896
        %v2441 = vld [vmem:[%s2440] sm:$0xff]
        %v2442 = vld [vmem:[%s2440 + $0x8] sm:$0xff]
        %v2443 = vld [vmem:[%s2440 + $0x10] sm:$0xff]
        %v2444 = vld [vmem:[%s2440 + $0x18] sm:$0xff]
        %v2445 = vld [vmem:[%s2440 + $0x20] sm:$0xff]
        %v2446 = vld [vmem:[%s2440 + $0x28] sm:$0xff]
        %v2447 = vld [vmem:[%s2440 + $0x30] sm:$0xff]
        %v2448 = vld [vmem:[%s2440 + $0x38] sm:$0xff]
        %v2449 = vld [vmem:[%s2440 + $0x40] sm:$0xff]
        %v2450 = vld [vmem:[%s2440 + $0x48] sm:$0xff]
        %v2451 = vld [vmem:[%s2440 + $0x50] sm:$0xff]
        %v2452 = vld [vmem:[%s2440 + $0x58] sm:$0xff]
        %v2453 = vld [vmem:[%s2440 + $0x60] sm:$0xff]
        %v2454 = vld [vmem:[%s2440 + $0x68] sm:$0xff]
        %v2455 = vld [vmem:[%s2440 + $0x70] sm:$0xff]
        %v2456 = vld [vmem:[%s2440 + $0x78] sm:$0xff]
        %2457 = vmatprep.subr.mxu0 0.0
        %2458 = vmatpush1.msra.mxu0 %v2456
        %2459 = vmatprep.subr.mxu0 0.0
        %2460 = vmatpush1.msra.mxu0 %v2455
        %2461 = vmatprep.subr.mxu0 0.0
        %2462 = vmatpush1.msra.mxu0 %v2454
        %2463 = vmatprep.subr.mxu0 0.0
        %2464 = vmatpush1.msra.mxu0 %v2453
        %2465 = vmatprep.subr.mxu0 0.0
        %2466 = vmatpush1.msra.mxu0 %v2452
        %2467 = vmatprep.subr.mxu0 0.0
        %2468 = vmatpush1.msra.mxu0 %v2451
        %2469 = vmatprep.subr.mxu0 0.0
        %2470 = vmatpush1.msra.mxu0 %v2450
        %2471 = vmatprep.subr.mxu0 0.0
        %2472 = vmatpush1.msra.mxu0 %v2449
        %2473 = vmatprep.subr.mxu0 0.0
        %2474 = vmatpush1.msra.mxu0 %v2448
        %2475 = vmatprep.subr.mxu0 0.0
        %2476 = vmatpush1.msra.mxu0 %v2447
        %2477 = vmatprep.subr.mxu0 0.0
        %2478 = vmatpush1.msra.mxu0 %v2446
        %2479 = vmatprep.subr.mxu0 0.0
        %2480 = vmatpush1.msra.mxu0 %v2445
        %2481 = vmatprep.subr.mxu0 0.0
        %2482 = vmatpush1.msra.mxu0 %v2444
        %2483 = vmatprep.subr.mxu0 0.0
        %2484 = vmatpush1.msra.mxu0 %v2443
        %2485 = vmatprep.subr.mxu0 0.0
        %2486 = vmatpush1.msra.mxu0 %v2442
        %2487 = vmatprep.subr.mxu0 0.0
        %2488 = vmatpush1.msra.mxu0 %v2441
        %2489 = vmatprep.subr.mxu0 0.0
        %2490 = vmatpush2.msra.mxu0 0.0
        %2491 = vmatprep.subr.mxu0 0.0
        %2492 = vmatpush2.msra.mxu0 0.0
        %2493 = vmatprep.subr.mxu0 0.0
        %2494 = vmatpush2.msra.mxu0 0.0
        %2495 = vmatprep.subr.mxu0 0.0
        %2496 = vmatpush2.msra.mxu0 0.0
        %2497 = vmatprep.subr.mxu0 0.0
        %2498 = vmatpush2.msra.mxu0 0.0
        %2499 = vmatprep.subr.mxu0 0.0
        %2500 = vmatpush2.msra.mxu0 0.0
        %2501 = vmatprep.subr.mxu0 0.0
        %2502 = vmatpush2.msra.mxu0 0.0
        %2503 = vmatprep.subr.mxu0 0.0
        %2504 = vmatpush2.msra.mxu0 0.0
        %2505 = vmatprep.subr.mxu0 0.0
        %2506 = vmatpush2.msra.mxu0 0.0
        %2507 = vmatprep.subr.mxu0 0.0
        %2508 = vmatpush2.msra.mxu0 0.0
        %2509 = vmatprep.subr.mxu0 0.0
        %2510 = vmatpush2.msra.mxu0 0.0
        %2511 = vmatprep.subr.mxu0 0.0
        %2512 = vmatpush2.msra.mxu0 0.0
        %2513 = vmatprep.subr.mxu0 0.0
        %2514 = vmatpush2.msra.mxu0 0.0
        %2515 = vmatprep.subr.mxu0 0.0
        %2516 = vmatpush2.msra.mxu0 0.0
        %2517 = vmatprep.subr.mxu0 0.0
        %2518 = vmatpush2.msra.mxu0 0.0
        %2519 = vmatprep.subr.mxu0 0.0
        %2520 = vmatpush2.msra.mxu0 0.0
        %2521 = vmatprep.mubr.f32.mxu0 0.0
        %2522 = vmatmul.mubr.f32.gmra.mxu0 %v671
        %v2523 = vpop.f32.mrf.mxu0
        %v2524 = vadd.f32 0.0, %v2523
        %v2525 = vpop.f32.mrf.mxu0
        %2526 = vmatprep.mubr.f32.mxu0 0.0
        %2527 = vmatmul.mubr.f32.gmra.mxu0 %v672
        %v2528 = vpop.f32.mrf.mxu0
        %v2529 = vadd.f32 0.0, %v2528
        %v2530 = vpop.f32.mrf.mxu0
        %2531 = vmatprep.mubr.f32.mxu0 0.0
        %2532 = vmatmul.mubr.f32.gmra.mxu0 %v673
        %v2533 = vpop.f32.mrf.mxu0
        %v2534 = vadd.f32 0.0, %v2533
        %v2535 = vpop.f32.mrf.mxu0
        %2536 = vmatprep.mubr.f32.mxu0 0.0
        %2537 = vmatmul.mubr.f32.gmra.mxu0 %v674
        %v2538 = vpop.f32.mrf.mxu0
        %v2539 = vadd.f32 0.0, %v2538
        %v2540 = vpop.f32.mrf.mxu0
        %2541 = vmatprep.mubr.f32.mxu0 0.0
        %2542 = vmatmul.mubr.f32.gmra.mxu0 %v675
        %v2543 = vpop.f32.mrf.mxu0
        %v2544 = vadd.f32 0.0, %v2543
        %v2545 = vpop.f32.mrf.mxu0
        %2546 = vmatprep.mubr.f32.mxu0 0.0
        %2547 = vmatmul.mubr.f32.gmra.mxu0 %v676
        %v2548 = vpop.f32.mrf.mxu0
        %v2549 = vadd.f32 0.0, %v2548
        %v2550 = vpop.f32.mrf.mxu0
        %2551 = vmatprep.mubr.f32.mxu0 0.0
        %2552 = vmatmul.mubr.f32.gmra.mxu0 %v677
        %v2553 = vpop.f32.mrf.mxu0
        %v2554 = vadd.f32 0.0, %v2553
        %v2555 = vpop.f32.mrf.mxu0
        %2556 = vmatprep.mubr.f32.mxu0 0.0
        %2557 = vmatmul.mubr.f32.gmra.mxu0 %v678
        %v2558 = vpop.f32.mrf.mxu0
        %v2559 = vadd.f32 0.0, %v2558
        %v2560 = vpop.f32.mrf.mxu0
        %2561 = vmatprep.mubr.f32.mxu0 0.0
        %2562 = vmatmul.mubr.f32.gmra.mxu0 %v679
        %v2563 = vpop.f32.mrf.mxu0
        %v2564 = vadd.f32 0.0, %v2563
        %v2565 = vpop.f32.mrf.mxu0
        %2566 = vmatprep.mubr.f32.mxu0 0.0
        %2567 = vmatmul.mubr.f32.gmra.mxu0 %v680
        %v2568 = vpop.f32.mrf.mxu0
        %v2569 = vadd.f32 0.0, %v2568
        %v2570 = vpop.f32.mrf.mxu0
        %2571 = vmatprep.mubr.f32.mxu0 0.0
        %2572 = vmatmul.mubr.f32.gmra.mxu0 %v681
        %v2573 = vpop.f32.mrf.mxu0
        %v2574 = vadd.f32 0.0, %v2573
        %v2575 = vpop.f32.mrf.mxu0
        %2576 = vmatprep.mubr.f32.mxu0 0.0
        %2577 = vmatmul.mubr.f32.gmra.mxu0 %v682
        %v2578 = vpop.f32.mrf.mxu0
        %v2579 = vadd.f32 0.0, %v2578
        %v2580 = vpop.f32.mrf.mxu0
        %2581 = vmatprep.mubr.f32.mxu0 0.0
        %2582 = vmatmul.mubr.f32.gmra.mxu0 %v683
        %v2583 = vpop.f32.mrf.mxu0
        %v2584 = vadd.f32 0.0, %v2583
        %v2585 = vpop.f32.mrf.mxu0
        %2586 = vmatprep.mubr.f32.mxu0 0.0
        %2587 = vmatmul.mubr.f32.gmra.mxu0 %v684
        %v2588 = vpop.f32.mrf.mxu0
        %v2589 = vadd.f32 0.0, %v2588
        %v2590 = vpop.f32.mrf.mxu0
        %2591 = vmatprep.mubr.f32.mxu0 0.0
        %2592 = vmatmul.mubr.f32.gmra.mxu0 %v685
        %v2593 = vpop.f32.mrf.mxu0
        %v2594 = vadd.f32 0.0, %v2593
        %v2595 = vpop.f32.mrf.mxu0
        %2596 = vmatprep.mubr.f32.mxu0 0.0
        %2597 = vmatmul.mubr.f32.gmra.mxu0 %v686
        %v2598 = vpop.f32.mrf.mxu0
        %v2599 = vadd.f32 0.0, %v2598
        %v2600 = vpop.f32.mrf.mxu0
        %2601 = vmatprep.mubr.f32.mxu0 0.0
        %2602 = vmatmul.mubr.f32.gmra.mxu0 %v687
        %v2603 = vpop.f32.mrf.mxu0
        %v2604 = vadd.f32 0.0, %v2603
        %v2605 = vpop.f32.mrf.mxu0
        %2606 = vmatprep.mubr.f32.mxu0 0.0
        %2607 = vmatmul.mubr.f32.gmra.mxu0 %v688
        %v2608 = vpop.f32.mrf.mxu0
        %v2609 = vadd.f32 0.0, %v2608
        %v2610 = vpop.f32.mrf.mxu0
        %2611 = vmatprep.mubr.f32.mxu0 0.0
        %2612 = vmatmul.mubr.f32.gmra.mxu0 %v689
        %v2613 = vpop.f32.mrf.mxu0
        %v2614 = vadd.f32 0.0, %v2613
        %v2615 = vpop.f32.mrf.mxu0
        %2616 = vmatprep.mubr.f32.mxu0 0.0
        %2617 = vmatmul.mubr.f32.gmra.mxu0 %v690
        %v2618 = vpop.f32.mrf.mxu0
        %v2619 = vadd.f32 0.0, %v2618
        %v2620 = vpop.f32.mrf.mxu0
        %2621 = vmatprep.mubr.f32.mxu0 0.0
        %2622 = vmatmul.mubr.f32.gmra.mxu0 %v691
        %v2623 = vpop.f32.mrf.mxu0
        %v2624 = vadd.f32 0.0, %v2623
        %v2625 = vpop.f32.mrf.mxu0
        %2626 = vmatprep.mubr.f32.mxu0 0.0
        %2627 = vmatmul.mubr.f32.gmra.mxu0 %v692
        %v2628 = vpop.f32.mrf.mxu0
        %v2629 = vadd.f32 0.0, %v2628
        %v2630 = vpop.f32.mrf.mxu0
        %2631 = vmatprep.mubr.f32.mxu0 0.0
        %2632 = vmatmul.mubr.f32.gmra.mxu0 %v693
        %v2633 = vpop.f32.mrf.mxu0
        %v2634 = vadd.f32 0.0, %v2633
        %v2635 = vpop.f32.mrf.mxu0
        %2636 = vmatprep.mubr.f32.mxu0 0.0
        %2637 = vmatmul.mubr.f32.gmra.mxu0 %v694
        %v2638 = vpop.f32.mrf.mxu0
        %v2639 = vadd.f32 0.0, %v2638
        %v2640 = vpop.f32.mrf.mxu0
        %2641 = vdwg.mxu0
        %v2642 = vadd.f32 %v2416, %v2524
        %v2643 = vadd.f32 %v2417, %v2529
        %v2644 = vadd.f32 %v2418, %v2534
        %v2645 = vadd.f32 %v2419, %v2539
        %v2646 = vadd.f32 %v2420, %v2544
        %v2647 = vadd.f32 %v2421, %v2549
        %v2648 = vadd.f32 %v2422, %v2554
        %v2649 = vadd.f32 %v2423, %v2559
        %v2650 = vadd.f32 %v2424, %v2564
        %v2651 = vadd.f32 %v2425, %v2569
        %v2652 = vadd.f32 %v2426, %v2574
        %v2653 = vadd.f32 %v2427, %v2579
        %v2654 = vadd.f32 %v2428, %v2584
        %v2655 = vadd.f32 %v2429, %v2589
        %v2656 = vadd.f32 %v2430, %v2594
        %v2657 = vadd.f32 %v2431, %v2599
        %v2658 = vadd.f32 %v2432, %v2604
        %v2659 = vadd.f32 %v2433, %v2609
        %v2660 = vadd.f32 %v2434, %v2614
        %v2661 = vadd.f32 %v2435, %v2619
        %v2662 = vadd.f32 %v2436, %v2624
        %v2663 = vadd.f32 %v2437, %v2629
        %v2664 = vadd.f32 %v2438, %v2634
        %v2665 = vadd.f32 %v2439, %v2639
        %s2666 = scalar_lea.vmem [#allocation8], 1024
        %v2667 = vld [vmem:[%s2666] sm:$0xff]
        %v2668 = vld [vmem:[%s2666 + $0x8] sm:$0xff]
        %v2669 = vld [vmem:[%s2666 + $0x10] sm:$0xff]
        %v2670 = vld [vmem:[%s2666 + $0x18] sm:$0xff]
        %v2671 = vld [vmem:[%s2666 + $0x20] sm:$0xff]
        %v2672 = vld [vmem:[%s2666 + $0x28] sm:$0xff]
        %v2673 = vld [vmem:[%s2666 + $0x30] sm:$0xff]
        %v2674 = vld [vmem:[%s2666 + $0x38] sm:$0xff]
        %v2675 = vld [vmem:[%s2666 + $0x40] sm:$0xff]
        %v2676 = vld [vmem:[%s2666 + $0x48] sm:$0xff]
        %v2677 = vld [vmem:[%s2666 + $0x50] sm:$0xff]
        %v2678 = vld [vmem:[%s2666 + $0x58] sm:$0xff]
        %v2679 = vld [vmem:[%s2666 + $0x60] sm:$0xff]
        %v2680 = vld [vmem:[%s2666 + $0x68] sm:$0xff]
        %v2681 = vld [vmem:[%s2666 + $0x70] sm:$0xff]
        %v2682 = vld [vmem:[%s2666 + $0x78] sm:$0xff]
        %2683 = vmatprep.subr.mxu0 0.0
        %2684 = vmatpush1.msra.mxu0 %v2682
        %2685 = vmatprep.subr.mxu0 0.0
        %2686 = vmatpush1.msra.mxu0 %v2681
        %2687 = vmatprep.subr.mxu0 0.0
        %2688 = vmatpush1.msra.mxu0 %v2680
        %2689 = vmatprep.subr.mxu0 0.0
        %2690 = vmatpush1.msra.mxu0 %v2679
        %2691 = vmatprep.subr.mxu0 0.0
        %2692 = vmatpush1.msra.mxu0 %v2678
        %2693 = vmatprep.subr.mxu0 0.0
        %2694 = vmatpush1.msra.mxu0 %v2677
        %2695 = vmatprep.subr.mxu0 0.0
        %2696 = vmatpush1.msra.mxu0 %v2676
        %2697 = vmatprep.subr.mxu0 0.0
        %2698 = vmatpush1.msra.mxu0 %v2675
        %2699 = vmatprep.subr.mxu0 0.0
        %2700 = vmatpush1.msra.mxu0 %v2674
        %2701 = vmatprep.subr.mxu0 0.0
        %2702 = vmatpush1.msra.mxu0 %v2673
        %2703 = vmatprep.subr.mxu0 0.0
        %2704 = vmatpush1.msra.mxu0 %v2672
        %2705 = vmatprep.subr.mxu0 0.0
        %2706 = vmatpush1.msra.mxu0 %v2671
        %2707 = vmatprep.subr.mxu0 0.0
        %2708 = vmatpush1.msra.mxu0 %v2670
        %2709 = vmatprep.subr.mxu0 0.0
        %2710 = vmatpush1.msra.mxu0 %v2669
        %2711 = vmatprep.subr.mxu0 0.0
        %2712 = vmatpush1.msra.mxu0 %v2668
        %2713 = vmatprep.subr.mxu0 0.0
        %2714 = vmatpush1.msra.mxu0 %v2667
        %2715 = vmatprep.subr.mxu0 0.0
        %2716 = vmatpush2.msra.mxu0 0.0
        %2717 = vmatprep.subr.mxu0 0.0
        %2718 = vmatpush2.msra.mxu0 0.0
        %2719 = vmatprep.subr.mxu0 0.0
        %2720 = vmatpush2.msra.mxu0 0.0
        %2721 = vmatprep.subr.mxu0 0.0
        %2722 = vmatpush2.msra.mxu0 0.0
        %2723 = vmatprep.subr.mxu0 0.0
        %2724 = vmatpush2.msra.mxu0 0.0
        %2725 = vmatprep.subr.mxu0 0.0
        %2726 = vmatpush2.msra.mxu0 0.0
        %2727 = vmatprep.subr.mxu0 0.0
        %2728 = vmatpush2.msra.mxu0 0.0
        %2729 = vmatprep.subr.mxu0 0.0
        %2730 = vmatpush2.msra.mxu0 0.0
        %2731 = vmatprep.subr.mxu0 0.0
        %2732 = vmatpush2.msra.mxu0 0.0
        %2733 = vmatprep.subr.mxu0 0.0
        %2734 = vmatpush2.msra.mxu0 0.0
        %2735 = vmatprep.subr.mxu0 0.0
        %2736 = vmatpush2.msra.mxu0 0.0
        %2737 = vmatprep.subr.mxu0 0.0
        %2738 = vmatpush2.msra.mxu0 0.0
        %2739 = vmatprep.subr.mxu0 0.0
        %2740 = vmatpush2.msra.mxu0 0.0
        %2741 = vmatprep.subr.mxu0 0.0
        %2742 = vmatpush2.msra.mxu0 0.0
        %2743 = vmatprep.subr.mxu0 0.0
        %2744 = vmatpush2.msra.mxu0 0.0
        %2745 = vmatprep.subr.mxu0 0.0
        %2746 = vmatpush2.msra.mxu0 0.0
        %2747 = vmatprep.mubr.f32.mxu0 0.0
        %2748 = vmatmul.mubr.f32.gmra.mxu0 %v829
        %v2749 = vpop.f32.mrf.mxu0
        %v2750 = vadd.f32 0.0, %v2749
        %v2751 = vpop.f32.mrf.mxu0
        %2752 = vmatprep.mubr.f32.mxu0 0.0
        %2753 = vmatmul.mubr.f32.gmra.mxu0 %v831
        %v2754 = vpop.f32.mrf.mxu0
        %v2755 = vadd.f32 0.0, %v2754
        %v2756 = vpop.f32.mrf.mxu0
        %2757 = vmatprep.mubr.f32.mxu0 0.0
        %2758 = vmatmul.mubr.f32.gmra.mxu0 %v899
        %v2759 = vpop.f32.mrf.mxu0
        %v2760 = vadd.f32 0.0, %v2759
        %v2761 = vpop.f32.mrf.mxu0
        %2762 = vmatprep.mubr.f32.mxu0 0.0
        %2763 = vmatmul.mubr.f32.gmra.mxu0 %v834
        %v2764 = vpop.f32.mrf.mxu0
        %v2765 = vadd.f32 0.0, %v2764
        %v2766 = vpop.f32.mrf.mxu0
        %2767 = vmatprep.mubr.f32.mxu0 0.0
        %2768 = vmatmul.mubr.f32.gmra.mxu0 %v836
        %v2769 = vpop.f32.mrf.mxu0
        %v2770 = vadd.f32 0.0, %v2769
        %v2771 = vpop.f32.mrf.mxu0
        %2772 = vmatprep.mubr.f32.mxu0 0.0
        %2773 = vmatmul.mubr.f32.gmra.mxu0 %v900
        %v2774 = vpop.f32.mrf.mxu0
        %v2775 = vadd.f32 0.0, %v2774
        %v2776 = vpop.f32.mrf.mxu0
        %2777 = vmatprep.mubr.f32.mxu0 0.0
        %2778 = vmatmul.mubr.f32.gmra.mxu0 %v839
        %v2779 = vpop.f32.mrf.mxu0
        %v2780 = vadd.f32 0.0, %v2779
        %v2781 = vpop.f32.mrf.mxu0
        %2782 = vmatprep.mubr.f32.mxu0 0.0
        %2783 = vmatmul.mubr.f32.gmra.mxu0 %v841
        %v2784 = vpop.f32.mrf.mxu0
        %v2785 = vadd.f32 0.0, %v2784
        %v2786 = vpop.f32.mrf.mxu0
        %2787 = vmatprep.mubr.f32.mxu0 0.0
        %2788 = vmatmul.mubr.f32.gmra.mxu0 %v901
        %v2789 = vpop.f32.mrf.mxu0
        %v2790 = vadd.f32 0.0, %v2789
        %v2791 = vpop.f32.mrf.mxu0
        %2792 = vmatprep.mubr.f32.mxu0 0.0
        %2793 = vmatmul.mubr.f32.gmra.mxu0 %v844
        %v2794 = vpop.f32.mrf.mxu0
        %v2795 = vadd.f32 0.0, %v2794
        %v2796 = vpop.f32.mrf.mxu0
        %2797 = vmatprep.mubr.f32.mxu0 0.0
        %2798 = vmatmul.mubr.f32.gmra.mxu0 %v846
        %v2799 = vpop.f32.mrf.mxu0
        %v2800 = vadd.f32 0.0, %v2799
        %v2801 = vpop.f32.mrf.mxu0
        %2802 = vmatprep.mubr.f32.mxu0 0.0
        %2803 = vmatmul.mubr.f32.gmra.mxu0 %v902
        %v2804 = vpop.f32.mrf.mxu0
        %v2805 = vadd.f32 0.0, %v2804
        %v2806 = vpop.f32.mrf.mxu0
        %2807 = vmatprep.mubr.f32.mxu0 0.0
        %2808 = vmatmul.mubr.f32.gmra.mxu0 %v849
        %v2809 = vpop.f32.mrf.mxu0
        %v2810 = vadd.f32 0.0, %v2809
        %v2811 = vpop.f32.mrf.mxu0
        %2812 = vmatprep.mubr.f32.mxu0 0.0
        %2813 = vmatmul.mubr.f32.gmra.mxu0 %v851
        %v2814 = vpop.f32.mrf.mxu0
        %v2815 = vadd.f32 0.0, %v2814
        %v2816 = vpop.f32.mrf.mxu0
        %2817 = vmatprep.mubr.f32.mxu0 0.0
        %2818 = vmatmul.mubr.f32.gmra.mxu0 %v903
        %v2819 = vpop.f32.mrf.mxu0
        %v2820 = vadd.f32 0.0, %v2819
        %v2821 = vpop.f32.mrf.mxu0
        %2822 = vmatprep.mubr.f32.mxu0 0.0
        %2823 = vmatmul.mubr.f32.gmra.mxu0 %v854
        %v2824 = vpop.f32.mrf.mxu0
        %v2825 = vadd.f32 0.0, %v2824
        %v2826 = vpop.f32.mrf.mxu0
        %2827 = vmatprep.mubr.f32.mxu0 0.0
        %2828 = vmatmul.mubr.f32.gmra.mxu0 %v856
        %v2829 = vpop.f32.mrf.mxu0
        %v2830 = vadd.f32 0.0, %v2829
        %v2831 = vpop.f32.mrf.mxu0
        %2832 = vmatprep.mubr.f32.mxu0 0.0
        %2833 = vmatmul.mubr.f32.gmra.mxu0 %v904
        %v2834 = vpop.f32.mrf.mxu0
        %v2835 = vadd.f32 0.0, %v2834
        %v2836 = vpop.f32.mrf.mxu0
        %2837 = vmatprep.mubr.f32.mxu0 0.0
        %2838 = vmatmul.mubr.f32.gmra.mxu0 %v859
        %v2839 = vpop.f32.mrf.mxu0
        %v2840 = vadd.f32 0.0, %v2839
        %v2841 = vpop.f32.mrf.mxu0
        %2842 = vmatprep.mubr.f32.mxu0 0.0
        %2843 = vmatmul.mubr.f32.gmra.mxu0 %v861
        %v2844 = vpop.f32.mrf.mxu0
        %v2845 = vadd.f32 0.0, %v2844
        %v2846 = vpop.f32.mrf.mxu0
        %2847 = vmatprep.mubr.f32.mxu0 0.0
        %2848 = vmatmul.mubr.f32.gmra.mxu0 %v905
        %v2849 = vpop.f32.mrf.mxu0
        %v2850 = vadd.f32 0.0, %v2849
        %v2851 = vpop.f32.mrf.mxu0
        %2852 = vmatprep.mubr.f32.mxu0 0.0
        %2853 = vmatmul.mubr.f32.gmra.mxu0 %v864
        %v2854 = vpop.f32.mrf.mxu0
        %v2855 = vadd.f32 0.0, %v2854
        %v2856 = vpop.f32.mrf.mxu0
        %2857 = vmatprep.mubr.f32.mxu0 0.0
        %2858 = vmatmul.mubr.f32.gmra.mxu0 %v866
        %v2859 = vpop.f32.mrf.mxu0
        %v2860 = vadd.f32 0.0, %v2859
        %v2861 = vpop.f32.mrf.mxu0
        %2862 = vmatprep.mubr.f32.mxu0 0.0
        %2863 = vmatmul.mubr.f32.gmra.mxu0 %v906
        %v2864 = vpop.f32.mrf.mxu0
        %v2865 = vadd.f32 0.0, %v2864
        %v2866 = vpop.f32.mrf.mxu0
        %2867 = vdwg.mxu0
        %v2868 = vadd.f32 %v2642, %v2750
        %v2869 = vadd.f32 %v2643, %v2755
        %v2870 = vadd.f32 %v2644, %v2760
        %v2871 = vadd.f32 %v2645, %v2765
        %v2872 = vadd.f32 %v2646, %v2770
        %v2873 = vadd.f32 %v2647, %v2775
        %v2874 = vadd.f32 %v2648, %v2780
        %v2875 = vadd.f32 %v2649, %v2785
        %v2876 = vadd.f32 %v2650, %v2790
        %v2877 = vadd.f32 %v2651, %v2795
        %v2878 = vadd.f32 %v2652, %v2800
        %v2879 = vadd.f32 %v2653, %v2805
        %v2880 = vadd.f32 %v2654, %v2810
        %v2881 = vadd.f32 %v2655, %v2815
        %v2882 = vadd.f32 %v2656, %v2820
        %v2883 = vadd.f32 %v2657, %v2825
        %v2884 = vadd.f32 %v2658, %v2830
        %v2885 = vadd.f32 %v2659, %v2835
        %v2886 = vadd.f32 %v2660, %v2840
        %v2887 = vadd.f32 %v2661, %v2845
        %v2888 = vadd.f32 %v2662, %v2850
        %v2889 = vadd.f32 %v2663, %v2855
        %v2890 = vadd.f32 %v2664, %v2860
        %v2891 = vadd.f32 %v2665, %v2865
        %v2892 = vadd.s32 %v506, 24
        %v2893 = vadd.s32 %v506, 32
        %v2894 = vadd.s32 %v506, 40
        %v2895 = vadd.s32 %v506, 48
        %v2896 = vadd.s32 %v506, 56
        %v2897 = vadd.s32 %v506, 64
        %v2898 = vadd.s32 %v506, 72
        %v2899 = vadd.s32 %v506, 80
        %v2900 = vadd.s32 %v506, 88
        %v2901 = vadd.s32 %v506, 96
        %v2902 = vadd.s32 %v506, 104
        %v2903 = vadd.s32 %v506, 112
        %v2904 = vadd.s32 %v506, 120
        %v2905 = vadd.s32 %v506, 128
        %v2906 = vadd.s32 %v506, 136
        %v2907 = vadd.s32 %v506, 144
        %v2908 = vadd.s32 %v506, 152
        %v2909 = vadd.s32 %v506, 160
        %v2910 = vadd.s32 %v506, 168
        %v2911 = vadd.s32 %v506, 176
        %v2912 = vadd.s32 %v506, 184
        %vm2913 = vcmp.lt.s32.totalorder %v506, 0
        %v2914 = vsub.s32 0, %v506
        %v2915 = vsel %vm2913, %v2914, %v506
        %v2916 = vmul.u32.u64.compose %v2915, 2863311531
        %v2917 = vextract.low.u32 %v2916
        %v2918 = vextract.high.u32 %v2916
        %v2919 = vshrl.u32 %v2918, 4
        %v2920 = vmul.u32 %v2919, 24
        %v2921 = vsub.s32 %v2915, %v2920
        %v2922 = vsub.s32 0, %v2921
        %v2923 = vsel %vm2913, %v2922, %v2921
        %vm2924 = vcmp.lt.s32.totalorder %v507, 0
        %v2925 = vsub.s32 0, %v507
        %v2926 = vsel %vm2924, %v2925, %v507
        %v2927 = vmul.u32.u64.compose %v2926, 2863311531
        %v2928 = vextract.low.u32 %v2927
        %v2929 = vextract.high.u32 %v2927
        %v2930 = vshrl.u32 %v2929, 4
        %v2931 = vmul.u32 %v2930, 24
        %v2932 = vsub.s32 %v2926, %v2931
        %v2933 = vsub.s32 0, %v2932
        %v2934 = vsel %vm2924, %v2933, %v2932
        %vm2935 = vcmp.lt.s32.totalorder %v508, 0
        %v2936 = vsub.s32 0, %v508
        %v2937 = vsel %vm2935, %v2936, %v508
        %v2938 = vmul.u32.u64.compose %v2937, 2863311531
        %v2939 = vextract.low.u32 %v2938
        %v2940 = vextract.high.u32 %v2938
        %v2941 = vshrl.u32 %v2940, 4
        %v2942 = vmul.u32 %v2941, 24
        %v2943 = vsub.s32 %v2937, %v2942
        %v2944 = vsub.s32 0, %v2943
        %v2945 = vsel %vm2935, %v2944, %v2943
        %vm2946 = vcmp.lt.s32.totalorder %v2892, 0
        %v2947 = vsub.s32 0, %v2892
        %v2948 = vsel %vm2946, %v2947, %v2892
        %v2949 = vmul.u32.u64.compose %v2948, 2863311531
        %v2950 = vextract.low.u32 %v2949
        %v2951 = vextract.high.u32 %v2949
        %v2952 = vshrl.u32 %v2951, 4
        %v2953 = vmul.u32 %v2952, 24
        %v2954 = vsub.s32 %v2948, %v2953
        %v2955 = vsub.s32 0, %v2954
        %v2956 = vsel %vm2946, %v2955, %v2954
        %vm2957 = vcmp.lt.s32.totalorder %v2893, 0
        %v2958 = vsub.s32 0, %v2893
        %v2959 = vsel %vm2957, %v2958, %v2893
        %v2960 = vmul.u32.u64.compose %v2959, 2863311531
        %v2961 = vextract.low.u32 %v2960
        %v2962 = vextract.high.u32 %v2960
        %v2963 = vshrl.u32 %v2962, 4
        %v2964 = vmul.u32 %v2963, 24
        %v2965 = vsub.s32 %v2959, %v2964
        %v2966 = vsub.s32 0, %v2965
        %v2967 = vsel %vm2957, %v2966, %v2965
        %vm2968 = vcmp.lt.s32.totalorder %v2894, 0
        %v2969 = vsub.s32 0, %v2894
        %v2970 = vsel %vm2968, %v2969, %v2894
        %v2971 = vmul.u32.u64.compose %v2970, 2863311531
        %v2972 = vextract.low.u32 %v2971
        %v2973 = vextract.high.u32 %v2971
        %v2974 = vshrl.u32 %v2973, 4
        %v2975 = vmul.u32 %v2974, 24
        %v2976 = vsub.s32 %v2970, %v2975
        %v2977 = vsub.s32 0, %v2976
        %v2978 = vsel %vm2968, %v2977, %v2976
        %vm2979 = vcmp.lt.s32.totalorder %v2895, 0
        %v2980 = vsub.s32 0, %v2895
        %v2981 = vsel %vm2979, %v2980, %v2895
        %v2982 = vmul.u32.u64.compose %v2981, 2863311531
        %v2983 = vextract.low.u32 %v2982
        %v2984 = vextract.high.u32 %v2982
        %v2985 = vshrl.u32 %v2984, 4
        %v2986 = vmul.u32 %v2985, 24
        %v2987 = vsub.s32 %v2981, %v2986
        %v2988 = vsub.s32 0, %v2987
        %v2989 = vsel %vm2979, %v2988, %v2987
        %vm2990 = vcmp.lt.s32.totalorder %v2896, 0
        %v2991 = vsub.s32 0, %v2896
        %v2992 = vsel %vm2990, %v2991, %v2896
        %v2993 = vmul.u32.u64.compose %v2992, 2863311531
        %v2994 = vextract.low.u32 %v2993
        %v2995 = vextract.high.u32 %v2993
        %v2996 = vshrl.u32 %v2995, 4
        %v2997 = vmul.u32 %v2996, 24
        %v2998 = vsub.s32 %v2992, %v2997
        %v2999 = vsub.s32 0, %v2998
        %v3000 = vsel %vm2990, %v2999, %v2998
        %vm3001 = vcmp.lt.s32.totalorder %v2897, 0
        %v3002 = vsub.s32 0, %v2897
        %v3003 = vsel %vm3001, %v3002, %v2897
        %v3004 = vmul.u32.u64.compose %v3003, 2863311531
        %v3005 = vextract.low.u32 %v3004
        %v3006 = vextract.high.u32 %v3004
        %v3007 = vshrl.u32 %v3006, 4
        %v3008 = vmul.u32 %v3007, 24
        %v3009 = vsub.s32 %v3003, %v3008
        %v3010 = vsub.s32 0, %v3009
        %v3011 = vsel %vm3001, %v3010, %v3009
        %vm3012 = vcmp.lt.s32.totalorder %v2898, 0
        %v3013 = vsub.s32 0, %v2898
        %v3014 = vsel %vm3012, %v3013, %v2898
        %v3015 = vmul.u32.u64.compose %v3014, 2863311531
        %v3016 = vextract.low.u32 %v3015
        %v3017 = vextract.high.u32 %v3015
        %v3018 = vshrl.u32 %v3017, 4
        %v3019 = vmul.u32 %v3018, 24
        %v3020 = vsub.s32 %v3014, %v3019
        %v3021 = vsub.s32 0, %v3020
        %v3022 = vsel %vm3012, %v3021, %v3020
        %vm3023 = vcmp.lt.s32.totalorder %v2899, 0
        %v3024 = vsub.s32 0, %v2899
        %v3025 = vsel %vm3023, %v3024, %v2899
        %v3026 = vmul.u32.u64.compose %v3025, 2863311531
        %v3027 = vextract.low.u32 %v3026
        %v3028 = vextract.high.u32 %v3026
        %v3029 = vshrl.u32 %v3028, 4
        %v3030 = vmul.u32 %v3029, 24
        %v3031 = vsub.s32 %v3025, %v3030
        %v3032 = vsub.s32 0, %v3031
        %v3033 = vsel %vm3023, %v3032, %v3031
        %vm3034 = vcmp.lt.s32.totalorder %v2900, 0
        %v3035 = vsub.s32 0, %v2900
        %v3036 = vsel %vm3034, %v3035, %v2900
        %v3037 = vmul.u32.u64.compose %v3036, 2863311531
        %v3038 = vextract.low.u32 %v3037
        %v3039 = vextract.high.u32 %v3037
        %v3040 = vshrl.u32 %v3039, 4
        %v3041 = vmul.u32 %v3040, 24
        %v3042 = vsub.s32 %v3036, %v3041
        %v3043 = vsub.s32 0, %v3042
        %v3044 = vsel %vm3034, %v3043, %v3042
        %vm3045 = vcmp.lt.s32.totalorder %v2901, 0
        %v3046 = vsub.s32 0, %v2901
        %v3047 = vsel %vm3045, %v3046, %v2901
        %v3048 = vmul.u32.u64.compose %v3047, 2863311531
        %v3049 = vextract.low.u32 %v3048
        %v3050 = vextract.high.u32 %v3048
        %v3051 = vshrl.u32 %v3050, 4
        %v3052 = vmul.u32 %v3051, 24
        %v3053 = vsub.s32 %v3047, %v3052
        %v3054 = vsub.s32 0, %v3053
        %v3055 = vsel %vm3045, %v3054, %v3053
        %vm3056 = vcmp.lt.s32.totalorder %v2902, 0
        %v3057 = vsub.s32 0, %v2902
        %v3058 = vsel %vm3056, %v3057, %v2902
        %v3059 = vmul.u32.u64.compose %v3058, 2863311531
        %v3060 = vextract.low.u32 %v3059
        %v3061 = vextract.high.u32 %v3059
        %v3062 = vshrl.u32 %v3061, 4
        %v3063 = vmul.u32 %v3062, 24
        %v3064 = vsub.s32 %v3058, %v3063
        %v3065 = vsub.s32 0, %v3064
        %v3066 = vsel %vm3056, %v3065, %v3064
        %vm3067 = vcmp.lt.s32.totalorder %v2903, 0
        %v3068 = vsub.s32 0, %v2903
        %v3069 = vsel %vm3067, %v3068, %v2903
        %v3070 = vmul.u32.u64.compose %v3069, 2863311531
        %v3071 = vextract.low.u32 %v3070
        %v3072 = vextract.high.u32 %v3070
        %v3073 = vshrl.u32 %v3072, 4
        %v3074 = vmul.u32 %v3073, 24
        %v3075 = vsub.s32 %v3069, %v3074
        %v3076 = vsub.s32 0, %v3075
        %v3077 = vsel %vm3067, %v3076, %v3075
        %vm3078 = vcmp.lt.s32.totalorder %v2904, 0
        %v3079 = vsub.s32 0, %v2904
        %v3080 = vsel %vm3078, %v3079, %v2904
        %v3081 = vmul.u32.u64.compose %v3080, 2863311531
        %v3082 = vextract.low.u32 %v3081
        %v3083 = vextract.high.u32 %v3081
        %v3084 = vshrl.u32 %v3083, 4
        %v3085 = vmul.u32 %v3084, 24
        %v3086 = vsub.s32 %v3080, %v3085
        %v3087 = vsub.s32 0, %v3086
        %v3088 = vsel %vm3078, %v3087, %v3086
        %vm3089 = vcmp.lt.s32.totalorder %v2905, 0
        %v3090 = vsub.s32 0, %v2905
        %v3091 = vsel %vm3089, %v3090, %v2905
        %v3092 = vmul.u32.u64.compose %v3091, 2863311531
        %v3093 = vextract.low.u32 %v3092
        %v3094 = vextract.high.u32 %v3092
        %v3095 = vshrl.u32 %v3094, 4
        %v3096 = vmul.u32 %v3095, 24
        %v3097 = vsub.s32 %v3091, %v3096
        %v3098 = vsub.s32 0, %v3097
        %v3099 = vsel %vm3089, %v3098, %v3097
        %vm3100 = vcmp.lt.s32.totalorder %v2906, 0
        %v3101 = vsub.s32 0, %v2906
        %v3102 = vsel %vm3100, %v3101, %v2906
        %v3103 = vmul.u32.u64.compose %v3102, 2863311531
        %v3104 = vextract.low.u32 %v3103
        %v3105 = vextract.high.u32 %v3103
        %v3106 = vshrl.u32 %v3105, 4
        %v3107 = vmul.u32 %v3106, 24
        %v3108 = vsub.s32 %v3102, %v3107
        %v3109 = vsub.s32 0, %v3108
        %v3110 = vsel %vm3100, %v3109, %v3108
        %vm3111 = vcmp.lt.s32.totalorder %v2907, 0
        %v3112 = vsub.s32 0, %v2907
        %v3113 = vsel %vm3111, %v3112, %v2907
        %v3114 = vmul.u32.u64.compose %v3113, 2863311531
        %v3115 = vextract.low.u32 %v3114
        %v3116 = vextract.high.u32 %v3114
        %v3117 = vshrl.u32 %v3116, 4
        %v3118 = vmul.u32 %v3117, 24
        %v3119 = vsub.s32 %v3113, %v3118
        %v3120 = vsub.s32 0, %v3119
        %v3121 = vsel %vm3111, %v3120, %v3119
        %vm3122 = vcmp.lt.s32.totalorder %v2908, 0
        %v3123 = vsub.s32 0, %v2908
        %v3124 = vsel %vm3122, %v3123, %v2908
        %v3125 = vmul.u32.u64.compose %v3124, 2863311531
        %v3126 = vextract.low.u32 %v3125
        %v3127 = vextract.high.u32 %v3125
        %v3128 = vshrl.u32 %v3127, 4
        %v3129 = vmul.u32 %v3128, 24
        %v3130 = vsub.s32 %v3124, %v3129
        %v3131 = vsub.s32 0, %v3130
        %v3132 = vsel %vm3122, %v3131, %v3130
        %vm3133 = vcmp.lt.s32.totalorder %v2909, 0
        %v3134 = vsub.s32 0, %v2909
        %v3135 = vsel %vm3133, %v3134, %v2909
        %v3136 = vmul.u32.u64.compose %v3135, 2863311531
        %v3137 = vextract.low.u32 %v3136
        %v3138 = vextract.high.u32 %v3136
        %v3139 = vshrl.u32 %v3138, 4
        %v3140 = vmul.u32 %v3139, 24
        %v3141 = vsub.s32 %v3135, %v3140
        %v3142 = vsub.s32 0, %v3141
        %v3143 = vsel %vm3133, %v3142, %v3141
        %vm3144 = vcmp.lt.s32.totalorder %v2910, 0
        %v3145 = vsub.s32 0, %v2910
        %v3146 = vsel %vm3144, %v3145, %v2910
        %v3147 = vmul.u32.u64.compose %v3146, 2863311531
        %v3148 = vextract.low.u32 %v3147
        %v3149 = vextract.high.u32 %v3147
        %v3150 = vshrl.u32 %v3149, 4
        %v3151 = vmul.u32 %v3150, 24
        %v3152 = vsub.s32 %v3146, %v3151
        %v3153 = vsub.s32 0, %v3152
        %v3154 = vsel %vm3144, %v3153, %v3152
        %vm3155 = vcmp.lt.s32.totalorder %v2911, 0
        %v3156 = vsub.s32 0, %v2911
        %v3157 = vsel %vm3155, %v3156, %v2911
        %v3158 = vmul.u32.u64.compose %v3157, 2863311531
        %v3159 = vextract.low.u32 %v3158
        %v3160 = vextract.high.u32 %v3158
        %v3161 = vshrl.u32 %v3160, 4
        %v3162 = vmul.u32 %v3161, 24
        %v3163 = vsub.s32 %v3157, %v3162
        %v3164 = vsub.s32 0, %v3163
        %v3165 = vsel %vm3155, %v3164, %v3163
        %vm3166 = vcmp.lt.s32.totalorder %v2912, 0
        %v3167 = vsub.s32 0, %v2912
        %v3168 = vsel %vm3166, %v3167, %v2912
        %v3169 = vmul.u32.u64.compose %v3168, 2863311531
        %v3170 = vextract.low.u32 %v3169
        %v3171 = vextract.high.u32 %v3169
        %v3172 = vshrl.u32 %v3171, 4
        %v3173 = vmul.u32 %v3172, 24
        %v3174 = vsub.s32 %v3168, %v3173
        %v3175 = vsub.s32 0, %v3174
        %v3176 = vsel %vm3166, %v3175, %v3174
        %vm3177 = vcmp.ne.s32.totalorder %v2923, 0
        %vm3178 = vcmp.ne.s32.totalorder %v2934, 0
        %vm3179 = vcmp.ne.s32.totalorder %v2945, 0
        %vm3180 = vcmp.ne.s32.totalorder %v2956, 0
        %vm3181 = vcmp.ne.s32.totalorder %v2967, 0
        %vm3182 = vcmp.ne.s32.totalorder %v2978, 0
        %vm3183 = vcmp.ne.s32.totalorder %v2989, 0
        %vm3184 = vcmp.ne.s32.totalorder %v3000, 0
        %vm3185 = vcmp.ne.s32.totalorder %v3011, 0
        %vm3186 = vcmp.ne.s32.totalorder %v3022, 0
        %vm3187 = vcmp.ne.s32.totalorder %v3033, 0
        %vm3188 = vcmp.ne.s32.totalorder %v3044, 0
        %vm3189 = vcmp.ne.s32.totalorder %v3055, 0
        %vm3190 = vcmp.ne.s32.totalorder %v3066, 0
        %vm3191 = vcmp.ne.s32.totalorder %v3077, 0
        %vm3192 = vcmp.ne.s32.totalorder %v3088, 0
        %vm3193 = vcmp.ne.s32.totalorder %v3099, 0
        %vm3194 = vcmp.ne.s32.totalorder %v3110, 0
        %vm3195 = vcmp.ne.s32.totalorder %v3121, 0
        %vm3196 = vcmp.ne.s32.totalorder %v3132, 0
        %vm3197 = vcmp.ne.s32.totalorder %v3143, 0
        %vm3198 = vcmp.ne.s32.totalorder %v3154, 0
        %vm3199 = vcmp.ne.s32.totalorder %v3165, 0
        %vm3200 = vcmp.ne.s32.totalorder %v3176, 0
        %vm3201 = vcmp.lt.s32.totalorder %v2923, 0
        %vm3202 = vcmp.lt.s32.totalorder %v2934, 0
        %vm3203 = vcmp.lt.s32.totalorder %v2945, 0
        %vm3204 = vcmp.lt.s32.totalorder %v2956, 0
        %vm3205 = vcmp.lt.s32.totalorder %v2967, 0
        %vm3206 = vcmp.lt.s32.totalorder %v2978, 0
        %vm3207 = vcmp.lt.s32.totalorder %v2989, 0
        %vm3208 = vcmp.lt.s32.totalorder %v3000, 0
        %vm3209 = vcmp.lt.s32.totalorder %v3011, 0
        %vm3210 = vcmp.lt.s32.totalorder %v3022, 0
        %vm3211 = vcmp.lt.s32.totalorder %v3033, 0
        %vm3212 = vcmp.lt.s32.totalorder %v3044, 0
        %vm3213 = vcmp.lt.s32.totalorder %v3055, 0
        %vm3214 = vcmp.lt.s32.totalorder %v3066, 0
        %vm3215 = vcmp.lt.s32.totalorder %v3077, 0
        %vm3216 = vcmp.lt.s32.totalorder %v3088, 0
        %vm3217 = vcmp.lt.s32.totalorder %v3099, 0
        %vm3218 = vcmp.lt.s32.totalorder %v3110, 0
        %vm3219 = vcmp.lt.s32.totalorder %v3121, 0
        %vm3220 = vcmp.lt.s32.totalorder %v3132, 0
        %vm3221 = vcmp.lt.s32.totalorder %v3143, 0
        %vm3222 = vcmp.lt.s32.totalorder %v3154, 0
        %vm3223 = vcmp.lt.s32.totalorder %v3165, 0
        %vm3224 = vcmp.lt.s32.totalorder %v3176, 0
        %vm3225 = vmand %vm3201, %vm3177
        %vm3226 = vmand %vm3202, %vm3178
        %vm3227 = vmand %vm3203, %vm3179
        %vm3228 = vmand %vm3204, %vm3180
        %vm3229 = vmand %vm3205, %vm3181
        %vm3230 = vmand %vm3206, %vm3182
        %vm3231 = vmand %vm3207, %vm3183
        %vm3232 = vmand %vm3208, %vm3184
        %vm3233 = vmand %vm3209, %vm3185
        %vm3234 = vmand %vm3210, %vm3186
        %vm3235 = vmand %vm3211, %vm3187
        %vm3236 = vmand %vm3212, %vm3188
        %vm3237 = vmand %vm3213, %vm3189
        %vm3238 = vmand %vm3214, %vm3190
        %vm3239 = vmand %vm3215, %vm3191
        %vm3240 = vmand %vm3216, %vm3192
        %vm3241 = vmand %vm3217, %vm3193
        %vm3242 = vmand %vm3218, %vm3194
        %vm3243 = vmand %vm3219, %vm3195
        %vm3244 = vmand %vm3220, %vm3196
        %vm3245 = vmand %vm3221, %vm3197
        %vm3246 = vmand %vm3222, %vm3198
        %vm3247 = vmand %vm3223, %vm3199
        %vm3248 = vmand %vm3224, %vm3200
        %v3249 = vadd.s32 %v2923, 24
        %v3250 = vadd.s32 %v2934, 24
        %v3251 = vadd.s32 %v2945, 24
        %v3252 = vadd.s32 %v2956, 24
        %v3253 = vadd.s32 %v2967, 24
        %v3254 = vadd.s32 %v2978, 24
        %v3255 = vadd.s32 %v2989, 24
        %v3256 = vadd.s32 %v3000, 24
        %v3257 = vadd.s32 %v3011, 24
        %v3258 = vadd.s32 %v3022, 24
        %v3259 = vadd.s32 %v3033, 24
        %v3260 = vadd.s32 %v3044, 24
        %v3261 = vadd.s32 %v3055, 24
        %v3262 = vadd.s32 %v3066, 24
        %v3263 = vadd.s32 %v3077, 24
        %v3264 = vadd.s32 %v3088, 24
        %v3265 = vadd.s32 %v3099, 24
        %v3266 = vadd.s32 %v3110, 24
        %v3267 = vadd.s32 %v3121, 24
        %v3268 = vadd.s32 %v3132, 24
        %v3269 = vadd.s32 %v3143, 24
        %v3270 = vadd.s32 %v3154, 24
        %v3271 = vadd.s32 %v3165, 24
        %v3272 = vadd.s32 %v3176, 24
        %v3273 = vsel %vm3225, %v3249, %v2923
        %v3274 = vsel %vm3226, %v3250, %v2934
        %v3275 = vsel %vm3227, %v3251, %v2945
        %v3276 = vsel %vm3228, %v3252, %v2956
        %v3277 = vsel %vm3229, %v3253, %v2967
        %v3278 = vsel %vm3230, %v3254, %v2978
        %v3279 = vsel %vm3231, %v3255, %v2989
        %v3280 = vsel %vm3232, %v3256, %v3000
        %v3281 = vsel %vm3233, %v3257, %v3011
        %v3282 = vsel %vm3234, %v3258, %v3022
        %v3283 = vsel %vm3235, %v3259, %v3033
        %v3284 = vsel %vm3236, %v3260, %v3044
        %v3285 = vsel %vm3237, %v3261, %v3055
        %v3286 = vsel %vm3238, %v3262, %v3066
        %v3287 = vsel %vm3239, %v3263, %v3077
        %v3288 = vsel %vm3240, %v3264, %v3088
        %v3289 = vsel %vm3241, %v3265, %v3099
        %v3290 = vsel %vm3242, %v3266, %v3110
        %v3291 = vsel %vm3243, %v3267, %v3121
        %v3292 = vsel %vm3244, %v3268, %v3132
        %v3293 = vsel %vm3245, %v3269, %v3143
        %v3294 = vsel %vm3246, %v3270, %v3154
        %v3295 = vsel %vm3247, %v3271, %v3165
        %v3296 = vsel %vm3248, %v3272, %v3176
        %vm3297 = vcmp.ge.s32.totalorder %v3273, 1
        %vm3298 = vcmp.ge.s32.totalorder %v3274, 1
        %vm3299 = vcmp.ge.s32.totalorder %v3275, 1
        %vm3300 = vcmp.ge.s32.totalorder %v3276, 1
        %vm3301 = vcmp.ge.s32.totalorder %v3277, 1
        %vm3302 = vcmp.ge.s32.totalorder %v3278, 1
        %vm3303 = vcmp.ge.s32.totalorder %v3279, 1
        %vm3304 = vcmp.ge.s32.totalorder %v3280, 1
        %vm3305 = vcmp.ge.s32.totalorder %v3281, 1
        %vm3306 = vcmp.ge.s32.totalorder %v3282, 1
        %vm3307 = vcmp.ge.s32.totalorder %v3283, 1
        %vm3308 = vcmp.ge.s32.totalorder %v3284, 1
        %vm3309 = vcmp.ge.s32.totalorder %v3285, 1
        %vm3310 = vcmp.ge.s32.totalorder %v3286, 1
        %vm3311 = vcmp.ge.s32.totalorder %v3287, 1
        %vm3312 = vcmp.ge.s32.totalorder %v3288, 1
        %vm3313 = vcmp.ge.s32.totalorder %v3289, 1
        %vm3314 = vcmp.ge.s32.totalorder %v3290, 1
        %vm3315 = vcmp.ge.s32.totalorder %v3291, 1
        %vm3316 = vcmp.ge.s32.totalorder %v3292, 1
        %vm3317 = vcmp.ge.s32.totalorder %v3293, 1
        %vm3318 = vcmp.ge.s32.totalorder %v3294, 1
        %vm3319 = vcmp.ge.s32.totalorder %v3295, 1
        %vm3320 = vcmp.ge.s32.totalorder %v3296, 1
        %vm3321 = vcmp.le.s32.totalorder %v3273, 16
        %vm3322 = vcmp.le.s32.totalorder %v3274, 16
        %vm3323 = vcmp.le.s32.totalorder %v3275, 16
        %vm3324 = vcmp.le.s32.totalorder %v3276, 16
        %vm3325 = vcmp.le.s32.totalorder %v3277, 16
        %vm3326 = vcmp.le.s32.totalorder %v3278, 16
        %vm3327 = vcmp.le.s32.totalorder %v3279, 16
        %vm3328 = vcmp.le.s32.totalorder %v3280, 16
        %vm3329 = vcmp.le.s32.totalorder %v3281, 16
        %vm3330 = vcmp.le.s32.totalorder %v3282, 16
        %vm3331 = vcmp.le.s32.totalorder %v3283, 16
        %vm3332 = vcmp.le.s32.totalorder %v3284, 16
        %vm3333 = vcmp.le.s32.totalorder %v3285, 16
        %vm3334 = vcmp.le.s32.totalorder %v3286, 16
        %vm3335 = vcmp.le.s32.totalorder %v3287, 16
        %vm3336 = vcmp.le.s32.totalorder %v3288, 16
        %vm3337 = vcmp.le.s32.totalorder %v3289, 16
        %vm3338 = vcmp.le.s32.totalorder %v3290, 16
        %vm3339 = vcmp.le.s32.totalorder %v3291, 16
        %vm3340 = vcmp.le.s32.totalorder %v3292, 16
        %vm3341 = vcmp.le.s32.totalorder %v3293, 16
        %vm3342 = vcmp.le.s32.totalorder %v3294, 16
        %vm3343 = vcmp.le.s32.totalorder %v3295, 16
        %vm3344 = vcmp.le.s32.totalorder %v3296, 16
        %vm3345 = vmand %vm3297, %vm3321
        %vm3346 = vmand %vm3298, %vm3322
        %vm3347 = vmand %vm3299, %vm3323
        %vm3348 = vmand %vm3300, %vm3324
        %vm3349 = vmand %vm3301, %vm3325
        %vm3350 = vmand %vm3302, %vm3326
        %vm3351 = vmand %vm3303, %vm3327
        %vm3352 = vmand %vm3304, %vm3328
        %vm3353 = vmand %vm3305, %vm3329
        %vm3354 = vmand %vm3306, %vm3330
        %vm3355 = vmand %vm3307, %vm3331
        %vm3356 = vmand %vm3308, %vm3332
        %vm3357 = vmand %vm3309, %vm3333
        %vm3358 = vmand %vm3310, %vm3334
        %vm3359 = vmand %vm3311, %vm3335
        %vm3360 = vmand %vm3312, %vm3336
        %vm3361 = vmand %vm3313, %vm3337
        %vm3362 = vmand %vm3314, %vm3338
        %vm3363 = vmand %vm3315, %vm3339
        %vm3364 = vmand %vm3316, %vm3340
        %vm3365 = vmand %vm3317, %vm3341
        %vm3366 = vmand %vm3318, %vm3342
        %vm3367 = vmand %vm3319, %vm3343
        %vm3368 = vmand %vm3320, %vm3344
        %v3369 = vsel %vm3345, 1, 0
        %v3370 = vsel %vm3346, 1, 0
        %v3371 = vsel %vm3347, 1, 0
        %v3372 = vsel %vm3348, 1, 0
        %v3373 = vsel %vm3349, 1, 0
        %v3374 = vsel %vm3350, 1, 0
        %v3375 = vsel %vm3351, 1, 0
        %v3376 = vsel %vm3352, 1, 0
        %v3377 = vsel %vm3353, 1, 0
        %v3378 = vsel %vm3354, 1, 0
        %v3379 = vsel %vm3355, 1, 0
        %v3380 = vsel %vm3356, 1, 0
        %v3381 = vsel %vm3357, 1, 0
        %v3382 = vsel %vm3358, 1, 0
        %v3383 = vsel %vm3359, 1, 0
        %v3384 = vsel %vm3360, 1, 0
        %v3385 = vsel %vm3361, 1, 0
        %v3386 = vsel %vm3362, 1, 0
        %v3387 = vsel %vm3363, 1, 0
        %v3388 = vsel %vm3364, 1, 0
        %v3389 = vsel %vm3365, 1, 0
        %v3390 = vsel %vm3366, 1, 0
        %v3391 = vsel %vm3367, 1, 0
        %v3392 = vsel %vm3368, 1, 0
        %vm3393 = vcmp.eq.s32.totalorder %v3369, 1
        %vm3394 = vcmp.eq.s32.totalorder %v3370, 1
        %vm3395 = vcmp.eq.s32.totalorder %v3371, 1
        %vm3396 = vcmp.eq.s32.totalorder %v3372, 1
        %vm3397 = vcmp.eq.s32.totalorder %v3373, 1
        %vm3398 = vcmp.eq.s32.totalorder %v3374, 1
        %vm3399 = vcmp.eq.s32.totalorder %v3375, 1
        %vm3400 = vcmp.eq.s32.totalorder %v3376, 1
        %vm3401 = vcmp.eq.s32.totalorder %v3377, 1
        %vm3402 = vcmp.eq.s32.totalorder %v3378, 1
        %vm3403 = vcmp.eq.s32.totalorder %v3379, 1
        %vm3404 = vcmp.eq.s32.totalorder %v3380, 1
        %vm3405 = vcmp.eq.s32.totalorder %v3381, 1
        %vm3406 = vcmp.eq.s32.totalorder %v3382, 1
        %vm3407 = vcmp.eq.s32.totalorder %v3383, 1
        %vm3408 = vcmp.eq.s32.totalorder %v3384, 1
        %vm3409 = vcmp.eq.s32.totalorder %v3385, 1
        %vm3410 = vcmp.eq.s32.totalorder %v3386, 1
        %vm3411 = vcmp.eq.s32.totalorder %v3387, 1
        %vm3412 = vcmp.eq.s32.totalorder %v3388, 1
        %vm3413 = vcmp.eq.s32.totalorder %v3389, 1
        %vm3414 = vcmp.eq.s32.totalorder %v3390, 1
        %vm3415 = vcmp.eq.s32.totalorder %v3391, 1
        %vm3416 = vcmp.eq.s32.totalorder %v3392, 1
        %v3417 = vsel %vm3393, %v2868, 0.0
        %v3418 = vsel %vm3394, %v2869, 0.0
        %v3419 = vsel %vm3395, %v2870, 0.0
        %v3420 = vsel %vm3396, %v2871, 0.0
        %v3421 = vsel %vm3397, %v2872, 0.0
        %v3422 = vsel %vm3398, %v2873, 0.0
        %v3423 = vsel %vm3399, %v2874, 0.0
        %v3424 = vsel %vm3400, %v2875, 0.0
        %v3425 = vsel %vm3401, %v2876, 0.0
        %v3426 = vsel %vm3402, %v2877, 0.0
        %v3427 = vsel %vm3403, %v2878, 0.0
        %v3428 = vsel %vm3404, %v2879, 0.0
        %v3429 = vsel %vm3405, %v2880, 0.0
        %v3430 = vsel %vm3406, %v2881, 0.0
        %v3431 = vsel %vm3407, %v2882, 0.0
        %v3432 = vsel %vm3408, %v2883, 0.0
        %v3433 = vsel %vm3409, %v2884, 0.0
        %v3434 = vsel %vm3410, %v2885, 0.0
        %v3435 = vsel %vm3411, %v2886, 0.0
        %v3436 = vsel %vm3412, %v2887, 0.0
        %v3437 = vsel %vm3413, %v2888, 0.0
        %v3438 = vsel %vm3414, %v2889, 0.0
        %v3439 = vsel %vm3415, %v2890, 0.0
        %v3440 = vsel %vm3416, %v2891, 0.0
        %v3441 = vadd.f32 %v3417, %v3418
        %v3442 = vadd.f32 %v3441, %v3419
        %v3443 = vadd.f32 %v3442, %v3420
        %v3444 = vadd.f32 %v3443, %v3421
        %v3445 = vadd.f32 %v3444, %v3422
        %v3446 = vadd.f32 %v3445, %v3423
        %v3447 = vadd.f32 %v3446, %v3424
        %v3448 = vadd.f32 %v3447, %v3425
        %v3449 = vadd.f32 %v3448, %v3426
        %v3450 = vadd.f32 %v3449, %v3427
        %v3451 = vadd.f32 %v3450, %v3428
        %v3452 = vadd.f32 %v3451, %v3429
        %v3453 = vadd.f32 %v3452, %v3430
        %v3454 = vadd.f32 %v3453, %v3431
        %v3455 = vadd.f32 %v3454, %v3432
        %v3456 = vadd.f32 %v3455, %v3433
        %v3457 = vadd.f32 %v3456, %v3434
        %v3458 = vadd.f32 %v3457, %v3435
        %v3459 = vadd.f32 %v3458, %v3436
        %v3460 = vadd.f32 %v3459, %v3437
        %v3461 = vadd.f32 %v3460, %v3438
        %v3462 = vadd.f32 %v3461, %v3439
        %v3463 = vadd.f32 %v3462, %v3440
        %v3464 = vrot.slane %v3463, 4
        %v3465 = vadd.f32 %v3463, %v3464
        %v3466 = vrot.slane %v3465, 2
        %v3467 = vadd.f32 %v3465, %v3466
        %v3468 = vrot.slane %v3467, 1
        %v3469 = vadd.f32 %v3467, %v3468
        %v3470 = vmul.f32 %v3469, 0.0078125
        %v3471 = vsub.f32 %v3417, %v3470
        %v3472 = vsub.f32 %v3418, %v3470
        %v3473 = vsub.f32 %v3419, %v3470
        %v3474 = vsub.f32 %v3420, %v3470
        %v3475 = vsub.f32 %v3421, %v3470
        %v3476 = vsub.f32 %v3422, %v3470
        %v3477 = vsub.f32 %v3423, %v3470
        %v3478 = vsub.f32 %v3424, %v3470
        %v3479 = vsub.f32 %v3425, %v3470
        %v3480 = vsub.f32 %v3426, %v3470
        %v3481 = vsub.f32 %v3427, %v3470
        %v3482 = vsub.f32 %v3428, %v3470
        %v3483 = vsub.f32 %v3429, %v3470
        %v3484 = vsub.f32 %v3430, %v3470
        %v3485 = vsub.f32 %v3431, %v3470
        %v3486 = vsub.f32 %v3432, %v3470
        %v3487 = vsub.f32 %v3433, %v3470
        %v3488 = vsub.f32 %v3434, %v3470
        %v3489 = vsub.f32 %v3435, %v3470
        %v3490 = vsub.f32 %v3436, %v3470
        %v3491 = vsub.f32 %v3437, %v3470
        %v3492 = vsub.f32 %v3438, %v3470
        %v3493 = vsub.f32 %v3439, %v3470
        %v3494 = vsub.f32 %v3440, %v3470
        %v3495 = vsel %vm3393, %v3471, 0.0
        %v3496 = vsel %vm3394, %v3472, 0.0
        %v3497 = vsel %vm3395, %v3473, 0.0
        %v3498 = vsel %vm3396, %v3474, 0.0
        %v3499 = vsel %vm3397, %v3475, 0.0
        %v3500 = vsel %vm3398, %v3476, 0.0
        %v3501 = vsel %vm3399, %v3477, 0.0
        %v3502 = vsel %vm3400, %v3478, 0.0
        %v3503 = vsel %vm3401, %v3479, 0.0
        %v3504 = vsel %vm3402, %v3480, 0.0
        %v3505 = vsel %vm3403, %v3481, 0.0
        %v3506 = vsel %vm3404, %v3482, 0.0
        %v3507 = vsel %vm3405, %v3483, 0.0
        %v3508 = vsel %vm3406, %v3484, 0.0
        %v3509 = vsel %vm3407, %v3485, 0.0
        %v3510 = vsel %vm3408, %v3486, 0.0
        %v3511 = vsel %vm3409, %v3487, 0.0
        %v3512 = vsel %vm3410, %v3488, 0.0
        %v3513 = vsel %vm3411, %v3489, 0.0
        %v3514 = vsel %vm3412, %v3490, 0.0
        %v3515 = vsel %vm3413, %v3491, 0.0
        %v3516 = vsel %vm3414, %v3492, 0.0
        %v3517 = vsel %vm3415, %v3493, 0.0
        %v3518 = vsel %vm3416, %v3494, 0.0
        %v3519 = vmul.f32 %v3495, %v3495
        %v3520 = vmul.f32 %v3496, %v3496
        %v3521 = vmul.f32 %v3497, %v3497
        %v3522 = vmul.f32 %v3498, %v3498
        %v3523 = vmul.f32 %v3499, %v3499
        %v3524 = vmul.f32 %v3500, %v3500
        %v3525 = vmul.f32 %v3501, %v3501
        %v3526 = vmul.f32 %v3502, %v3502
        %v3527 = vmul.f32 %v3503, %v3503
        %v3528 = vmul.f32 %v3504, %v3504
        %v3529 = vmul.f32 %v3505, %v3505
        %v3530 = vmul.f32 %v3506, %v3506
        %v3531 = vmul.f32 %v3507, %v3507
        %v3532 = vmul.f32 %v3508, %v3508
        %v3533 = vmul.f32 %v3509, %v3509
        %v3534 = vmul.f32 %v3510, %v3510
        %v3535 = vmul.f32 %v3511, %v3511
        %v3536 = vmul.f32 %v3512, %v3512
        %v3537 = vmul.f32 %v3513, %v3513
        %v3538 = vmul.f32 %v3514, %v3514
        %v3539 = vmul.f32 %v3515, %v3515
        %v3540 = vmul.f32 %v3516, %v3516
        %v3541 = vmul.f32 %v3517, %v3517
        %v3542 = vmul.f32 %v3518, %v3518
        %v3543 = vadd.f32 %v3519, %v3520
        %v3544 = vadd.f32 %v3543, %v3521
        %v3545 = vadd.f32 %v3544, %v3522
        %v3546 = vadd.f32 %v3545, %v3523
        %v3547 = vadd.f32 %v3546, %v3524
        %v3548 = vadd.f32 %v3547, %v3525
        %v3549 = vadd.f32 %v3548, %v3526
        %v3550 = vadd.f32 %v3549, %v3527
        %v3551 = vadd.f32 %v3550, %v3528
        %v3552 = vadd.f32 %v3551, %v3529
        %v3553 = vadd.f32 %v3552, %v3530
        %v3554 = vadd.f32 %v3553, %v3531
        %v3555 = vadd.f32 %v3554, %v3532
        %v3556 = vadd.f32 %v3555, %v3533
        %v3557 = vadd.f32 %v3556, %v3534
        %v3558 = vadd.f32 %v3557, %v3535
        %v3559 = vadd.f32 %v3558, %v3536
        %v3560 = vadd.f32 %v3559, %v3537
        %v3561 = vadd.f32 %v3560, %v3538
        %v3562 = vadd.f32 %v3561, %v3539
        %v3563 = vadd.f32 %v3562, %v3540
        %v3564 = vadd.f32 %v3563, %v3541
        %v3565 = vadd.f32 %v3564, %v3542
        %v3566 = vrot.slane %v3565, 4
        %v3567 = vadd.f32 %v3565, %v3566
        %v3568 = vrot.slane %v3567, 2
        %v3569 = vadd.f32 %v3567, %v3568
        %v3570 = vrot.slane %v3569, 1
        %v3571 = vadd.f32 %v3569, %v3570
        %v3572 = vsel %vm725, %v3469, %v3571
        %3573 = vst [vmem:[%s452] sm:$0x3] %v3572
        %3574 = vst [vmem:[%s445] sm:$0xff] %v3417
        %3575 = vst [vmem:[%s445 + $0x8] sm:$0xff] %v3418
        %3576 = vst [vmem:[%s445 + $0x10] sm:$0xff] %v3419
        %3577 = vst [vmem:[%s445 + $0x18] sm:$0xff] %v3420
        %3578 = vst [vmem:[%s445 + $0x20] sm:$0xff] %v3421
        %3579 = vst [vmem:[%s445 + $0x28] sm:$0xff] %v3422
        %3580 = vst [vmem:[%s445 + $0x30] sm:$0xff] %v3423
        %3581 = vst [vmem:[%s445 + $0x38] sm:$0xff] %v3424
        %3582 = vst [vmem:[%s445 + $0x40] sm:$0xff] %v3425
        %3583 = vst [vmem:[%s445 + $0x48] sm:$0xff] %v3426
        %3584 = vst [vmem:[%s445 + $0x50] sm:$0xff] %v3427
        %3585 = vst [vmem:[%s445 + $0x58] sm:$0xff] %v3428
        %3586 = vst [vmem:[%s445 + $0x60] sm:$0xff] %v3429
        %3587 = vst [vmem:[%s445 + $0x68] sm:$0xff] %v3430
        %3588 = vst [vmem:[%s445 + $0x70] sm:$0xff] %v3431
        %3589 = vst [vmem:[%s445 + $0x78] sm:$0xff] %v3432
        %3590 = vst [vmem:[%s445 + $0x80] sm:$0xff] %v3433
        %3591 = vst [vmem:[%s445 + $0x88] sm:$0xff] %v3434
        %3592 = vst [vmem:[%s445 + $0x90] sm:$0xff] %v3435
        %3593 = vst [vmem:[%s445 + $0x98] sm:$0xff] %v3436
        %3594 = vst [vmem:[%s445 + $0xa0] sm:$0xff] %v3437
        %3595 = vst [vmem:[%s445 + $0xa8] sm:$0xff] %v3438
        %3596 = vst [vmem:[%s445 + $0xb0] sm:$0xff] %v3439
        %3597 = vst [vmem:[%s445 + $0xb8] sm:$0xff] %v3440
        %s3598 = sand.u32 %s217, 1
        %s3599 = scalar_lea.sflag [#allocation4], %s3598
        %s3600 = sand.u32 %s217, 1
        %s3601 = smul.addr %s3600, 192
        %s3602 = scalar_lea.vmem [#allocation10], %s3601
        %s3603 = sand.u32 %s245, 1
        %s3604 = scalar_lea.sflag [#allocation12], %s3603
        %s3605 = sand.u32 %s245, 1
        %s3606 = smul.addr %s3605, 2
        %s3607 = scalar_lea.vmem [#allocation11], %s3606
        // Predicated region
        $region61: #{tpu_custom_call.1} parent=43 // pred_check
          %p3608 = pneg %p227
        $region62: #{tpu_custom_call.1} parent=43 // pred_check_branch
          %3610 = sbr.rel (%p3608) target = $region64
        $region63: #{tpu_custom_call.1} parent=43 // pred_region
          %s3611 = smul.u32 8, %s37
          %s3613 = ssub.s32 3072, 3072
          %3614 = vsyncadd %s3599, %s3613
          %s3615 = smul.addr %s3611, 3
          %s3616 = smul.addr %s36, 48
          %s3617 = sadd.s32 %s3615, %s3616
          %s3618 = smul.addr %s3617, 128
          %s3619 = scalar_lea.hbm %s6, %s3618
          %s3620 = sshll.u32 %s3602, 4
          %s3621 = int_to_ptr.vmem [resolvable:$true] %s3620
          %3626 = dma.vmem_to_hbm [thread:$0]  %s3621, 3072, %s3619, %s3599, 128, 128, 8
        $region64: #{tpu_custom_call.1} parent=43 // pred_fallthru
          _
        // Predicated region
        $region65: #{tpu_custom_call.1} parent=43 // pred_check
          %p3627 = pneg %p255
        $region66: #{tpu_custom_call.1} parent=43 // pred_check_branch
          %3629 = sbr.rel (%p3627) target = $region68
        $region67: #{tpu_custom_call.1} parent=43 // pred_region
          %s3631 = ssub.s32 32, 32
          %3632 = vsyncadd %s3604, %s3631
          %s3633 = smul.addr %s36, 2
          %s3634 = sadd.s32 %s37, %s3633
          %s3635 = smul.addr %s3634, 32
          %s3636 = scalar_lea.hbm %s7, %s3635
          %s3638 = sshll.u32 %s3607, 4
          %s3639 = int_to_ptr.vmem [resolvable:$true] %s3638
          %3641 = dma.vmem_to_hbm [thread:$0]  %s3639, 32, %s3636, %s3604
        $region68: #{tpu_custom_call.1} parent=43 // pred_fallthru
          _
      $region44: #{tpu_custom_call.1} parent=5 // pred_fallthru
        _
      %p3642 = scmp.le.s32.totalorder 2, %s27
      // Predicated region
      $region69: #{tpu_custom_call.1} parent=5 // pred_check
        %p3643 = pneg %p3642
      $region70: #{tpu_custom_call.1} parent=5 // pred_check_branch
        %3645 = sbr.rel (%p3643) target = $region72
      $region71: #{tpu_custom_call.1} parent=5 // pred_region
        %s3646 = ssub.s32 %s27, 2
        // Predicated region
        $region73: #{tpu_custom_call.1} parent=71 // pred_check
          %p3647 = pneg %p233
        $region74: #{tpu_custom_call.1} parent=71 // pred_check_branch
          %3649 = sbr.rel (%p3647) target = $region76
        $region75: #{tpu_custom_call.1} parent=71 // pred_region
          %s3650 = sand.u32 %s218, 1
          %s3651 = scalar_lea.sflag [#allocation4], %s3650
          %s3652 = sand.u32 %s218, 1
          %s3653 = smul.addr %s3652, 192
          %s3654 = scalar_lea.vmem [#allocation10], %s3653
          %3655 = dma.done %s3651, 3072
        $region76: #{tpu_custom_call.1} parent=71 // pred_fallthru
          _
        // Predicated region
        $region77: #{tpu_custom_call.1} parent=71 // pred_check
          %p3656 = pneg %p261
        $region78: #{tpu_custom_call.1} parent=71 // pred_check_branch
          %3658 = sbr.rel (%p3656) target = $region80
        $region79: #{tpu_custom_call.1} parent=71 // pred_region
          %s3659 = sand.u32 %s246, 1
          %s3660 = scalar_lea.sflag [#allocation12], %s3659
          %s3661 = sand.u32 %s246, 1
          %s3662 = smul.addr %s3661, 2
          %s3663 = scalar_lea.vmem [#allocation11], %s3662
          %3664 = dma.done %s3660, 32
        $region80: #{tpu_custom_call.1} parent=71 // pred_fallthru
          _
      $region72: #{tpu_custom_call.1} parent=5 // pred_fallthru
        _
    $region6: #{tpu_custom_call.1} parent=1 // loop_footer
      %s31 = sadd.s32 1, %s27
    $region7: #{tpu_custom_call.1} parent=1 // loop_footer_branch
      %26 = sbr.rel target = $region3
    $region8: #{tpu_custom_call.1} parent=1 // loop_exit
      _
    %3665 = vsyncpa [#allocation3], 1
    %s3666 = scalar_lea.sflag [#allocation3], 1
    %3667 = vsyncpa %s3666, 1
    %3668 = vsyncpa [#allocation6], 1
    %s3669 = scalar_lea.sflag [#allocation6], 1
    %3670 = vsyncpa %s3669, 1
    %3671 = vsyncpa [#allocation9], 1
    %3672 = vsyncpa [#allocation4], 1
    %s3673 = scalar_lea.sflag [#allocation4], 1
    %3674 = vsyncpa %s3673, 1
    %3675 = vsyncpa [#allocation12], 1
    %s3676 = scalar_lea.sflag [#allocation12], 1
    %3677 = vsyncpa %s3676, 1

</llo_original>
